<compile_context>
chip_gen: v6e
topology: v6e:2x2x1
jax: 0.10.0
libtpu: 0.0.40
codegen_flags: <defaults>
</compile_context>

<pallas_src>
import jax
import jax.numpy as jnp
import numpy as np
from jax.experimental import pallas as pl
from jax.experimental.pallas import tpu as pltpu

B = 2       # batch
T = 8       # seq_len
K = 4       # stock_num
H_ENC = 32  # hidden_dim_encoder
H_DEC = 32  # hidden_dim_decoder  (must equal H_ENC for the 128-wide slab packing)


# ----------------------------------------------------------------------------- #
# Pallas kernel: full DARNN_Exp2 forward (encoder + decoder + output head)
# ----------------------------------------------------------------------------- #
def _darnn_kernel(x_ref, xbk_ref, y0_ref, slab128_ref, slab8_ref, slab32_ref,
                  yhat_ref, alpha_ref):
    # ---- unpack parameter slabs (static, sublane-aligned slices) -------------- #
    small128 = slab128_ref[0:3, :]                         # (3, 4H)
    be     = small128[0:1, :]                              # encoder LSTM bias [i,f,o,g]
    wihd_T = small128[1:2, :]                              # decoder LSTM Wih^T (in dim 1)
    bd     = small128[2:3, :]                              # decoder LSTM bias  [i,f,o,g]
    w_enc_T = slab128_ref[8:8 + K + H_ENC, :]              # fused [Wih_e; Whh_e]^T (K+H,4H)

    ue_wT = slab8_ref[0:T, :]                              # (T, T)
    we_hT = slab8_ref[T:T + H_ENC, :]                      # (H, T)
    we_sT = slab8_ref[T + H_ENC:T + 2 * H_ENC, :]          # (H, T)
    b8 = slab8_ref[T + 2 * H_ENC:T + 2 * H_ENC + 3, :]     # rows 72:75
    ue_b, we_b, ve_w = b8[0:1, :], b8[1:2, :], b8[2:3, :]  # each (1, T)

    ud_wT = slab32_ref[0:H_ENC, :]                                    # (H, H)
    wy_dT = slab32_ref[H_ENC:H_ENC + H_DEC, :]                        # (H_DEC, H_DEC)
    wy_cT = slab32_ref[H_ENC + H_DEC:H_ENC + H_DEC + H_ENC, :]        # (H_ENC, H_DEC)
    b32 = slab32_ref[H_ENC + H_DEC + H_ENC:H_ENC + H_DEC + H_ENC + 6, :]   # (6, H)
    udwd_b = b32[0:1, :]      # U_d bias + W_d bias (W_d acts on zero state)
    vd_w   = b32[1:2, :]
    wy_b   = b32[2:3, :]
    vy_w   = b32[3:4, :]
    wt_wc  = b32[4:5, :]      # first H_ENC columns of w_tilde weight
    scal   = b32[5:6, :]      # packed scalars
    wt_wy = scal[0:1, 0:1]
    wt_b  = scal[0:1, 1:2]
    ve_b  = scal[0:1, 2:3]
    vd_b  = scal[0:1, 3:4]
    vy_b  = scal[0:1, 4:5]

    x   = x_ref[...]          # (B, T, K)
    xbk = xbk_ref[...]        # (B*K, T)  row b*K+k = x[b, :, k]
    y0  = y0_ref[...]         # (B, 1)

    # ----- Encoder with input attention ---------------------------------------- #
    # U_e(x_k) for every (b,k) in ONE matmul (it is t-invariant).
    ue_all = jnp.dot(xbk, ue_wT, preferred_element_type=jnp.float32) + ue_b   # (B*K, T)
    ue_3d = ue_all.reshape(B, K, T)

    h = jnp.zeros((B, H_ENC), jnp.float32)
    s = jnp.zeros((B, H_ENC), jnp.float32)
    alpha = jnp.zeros((B, K), jnp.float32)
    h_list = []

    for t in range(T):
        x_t = x[:, t, :]                                                      # (B, K)
        # We([h, s]) without the lane-axis concat.
        we_hs = (jnp.dot(h, we_hT, preferred_element_type=jnp.float32)
                 + jnp.dot(s, we_sT, preferred_element_type=jnp.float32)
                 + we_b)                                                      # (B, T)
        re1 = jnp.tanh(we_hs[:, None, :] + ue_3d)                             # (B,K,T) 1 tanh
        e = jnp.sum(re1 * ve_w, axis=-1) + ve_b                               # (B, K)
        e = e - jnp.max(e, axis=-1, keepdims=True)                            # stable softmax
        ee = jnp.exp(e)
        alpha = ee / jnp.sum(ee, axis=-1, keepdims=True)                      # (B, K)
        x_tilde = alpha * x_t                                                 # (B, K)

        # Fused LSTM gates: one matmul per step, gate rows pre-ordered [i,f,o,g].
        xh = jnp.concatenate([x_tilde, h], axis=1)                            # (B, K+H)
        gates = jnp.dot(xh, w_enc_T, preferred_element_type=jnp.float32) + be  # (B, 4H)
        ifo = jax.nn.sigmoid(gates[:, :3 * H_ENC])                            # 1 sigmoid
        g = jnp.tanh(gates[:, 3 * H_ENC:])                                    # 1 tanh
        i_g = ifo[:, 0:H_ENC]
        f_g = ifo[:, H_ENC:2 * H_ENC]
        o_g = ifo[:, 2 * H_ENC:3 * H_ENC]
        s = f_g * s + i_g * g
        h = o_g * jnp.tanh(s)
        h_list.append(h)

    # ----- Decoder with temporal attention -------------------------------------- #
    # PyTorch decoder returns inside its loop -> exactly one step from zero state,
    # so W_d contributes only its bias and Whh_d / the f-gate product drop out.
    h_stack = jnp.concatenate([ht[:, None, :] for ht in h_list], axis=1)      # (B, T, H)
    h_flat = h_stack.reshape(B * T, H_ENC)                                    # (B*T, H)
    re1d = jnp.tanh(jnp.dot(h_flat, ud_wT, preferred_element_type=jnp.float32)
                    + udwd_b)                                                 # 1 matmul, 1 tanh
    l = jnp.sum(re1d.reshape(B, T, H_ENC) * vd_w, axis=-1) + vd_b             # (B, T)
    l = l - jnp.max(l, axis=-1, keepdims=True)
    el = jnp.exp(l)
    beta = el / jnp.sum(el, axis=-1, keepdims=True)                           # (B, T)
    c_t = jnp.sum(beta[:, :, None] * h_stack, axis=1)                         # (B, H)

    y_tilde = (jnp.sum(c_t * wt_wc, axis=-1, keepdims=True)
               + y0 * wt_wy + wt_b)                                           # (B, 1)

    # Decoder LSTM single step from zero (hidden, cell); gates ordered [i,f,o,g].
    gates_d = y_tilde * wihd_T + bd                                           # (B, 4*H_DEC)
    ifo_d = jax.nn.sigmoid(gates_d[:, :3 * H_DEC])
    g_d = jnp.tanh(gates_d[:, 3 * H_DEC:])
    i_d = ifo_d[:, 0:H_DEC]
    o_d = ifo_d[:, 2 * H_DEC:3 * H_DEC]
    d_t = o_d * jnp.tanh(i_d * g_d)                                           # (B, H_DEC)

    # ----- Output head ----------------------------------------------------------- #
    hid = (jnp.dot(d_t, wy_dT, preferred_element_type=jnp.float32)
           + jnp.dot(c_t, wy_cT, preferred_element_type=jnp.float32) + wy_b)  # (B, H_DEC)
    yhat = jnp.sum(hid * vy_w, axis=-1, keepdims=True) + vy_b                 # (B, 1)

    yhat_ref[...] = yhat
    alpha_ref[...] = alpha                                                    # (B, K)


# ----------------------------------------------------------------------------- #
# Wrapper: gate reordering, weight fusion, slab packing, pallas_call
# ----------------------------------------------------------------------------- #
def _reorder_gates(a):
    # PyTorch LSTM row order [i, f, g, o] -> [i, f, o, g] (axis 0)
    H = a.shape[0] // 4
    return jnp.concatenate([a[:2 * H], a[3 * H:], a[2 * H:3 * H]], axis=0)


def darnn_forward(x, y, p):
    xbk = jnp.transpose(x, (0, 2, 1)).reshape(B * K, T)      # row b*K+k = x[b,:,k]
    y0 = y[:, 0, :]                                          # only y[:,0] is used

    # Encoder LSTM: fuse Wih/Whh, reorder gates; decoder LSTM: reorder gates.
    w_enc = jnp.concatenate([_reorder_gates(p['Wih_e']),
                             _reorder_gates(p['Whh_e'])], axis=1)     # (4H, K+H)
    be = _reorder_gates(p['bih_e'] + p['bhh_e'])[None, :]             # (1, 4H)
    wihd_T = _reorder_gates(p['Wih_d']).T                             # (1, 4H_DEC)
    bd = _reorder_gates(p['bih_d'] + p['bhh_d'])[None, :]             # (1, 4H_DEC)

    # Slab A: width 4H = 128.  Rows 0:3 small vectors, 3:8 pad (sublane align), 8:44 fused W.
    slab128 = jnp.concatenate([
        be, wihd_T, bd,
        jnp.zeros((5, 4 * H_ENC), jnp.float32),
        w_enc.T,
    ], axis=0)                                                        # (44, 128)

    # Slab B: width T = 8.
    slab8 = jnp.concatenate([
        p['Ue_w'].T,                       # rows 0:T
        p['We_w'][:, :H_ENC].T,            # rows T:T+H      (acts on h)
        p['We_w'][:, H_ENC:].T,            # rows T+H:T+2H   (acts on s)
        p['Ue_b'][None, :],
        p['We_b'][None, :],
        p['ve_w'],
    ], axis=0)                                                        # (75, 8)

    # Slab C: width H = 32.
    scalars = jnp.zeros((1, H_ENC), jnp.float32)
    scalars = scalars.at[0, 0].set(p['wt_w'][0, H_ENC])
    scalars = scalars.at[0, 1].set(p['wt_b'][0])
    scalars = scalars.at[0, 2].set(p['ve_b'][0])
    scalars = scalars.at[0, 3].set(p['vd_b'][0])
    scalars = scalars.at[0, 4].set(p['vy_b'][0])
    slab32 = jnp.concatenate([
        p['Ud_w'].T,                        # rows 0:32
        p['Wy_w'].T,                        # rows 32:96  ([d | c_t] order)
        (p['Ud_b'] + p['Wd_b'])[None, :],   # row 96
        p['vd_w'],                          # row 97
        p['Wy_b'][None, :],                 # row 98
        p['vy_w'],                          # row 99
        p['wt_w'][:, :H_ENC],               # row 100
        scalars,                            # row 101
    ], axis=0)                                                        # (102, 32)

    vmem = pl.BlockSpec(memory_space=pltpu.MemorySpace.VMEM)
    out_shape = (jax.ShapeDtypeStruct((B, 1), jnp.float32),
                 jax.ShapeDtypeStruct((B, K), jnp.float32))
    # TODO(synk): if batch is scaled up (>=8 per tile), add a leading grid axis over
    # batch tiles with dimension_semantics=("parallel",) so both v7x TensorCores run.
    y_hat, alpha = pl.pallas_call(
        _darnn_kernel,
        out_shape=out_shape,
        in_specs=[vmem] * 6,
        out_specs=(vmem, vmem),
    )(x, xbk, y0, slab128, slab8, slab32)
    return y_hat, alpha[:, None, :]                                   # (B,1), (B,1,K)


# ----------------------------------------------------------------------------- #
# Deterministic parameter init (PyTorch default-style uniform, shapes from __init__)
# ----------------------------------------------------------------------------- #
def init_params(key):
    def lin(k, out_f, in_f):
        k1, k2 = jax.random.split(k)
        bound = 1.0 / np.sqrt(in_f)
        w = jax.random.uniform(k1, (out_f, in_f), jnp.float32, -bound, bound)
        b = jax.random.uniform(k2, (out_f,), jnp.float32, -bound, bound)
        return w, b

    def lstm(k, in_f, hid):
        k1, k2, k3, k4 = jax.random.split(k, 4)
        bound = 1.0 / np.sqrt(hid)
        wih = jax.random.uniform(k1, (4 * hid, in_f), jnp.float32, -bound, bound)
        whh = jax.random.uniform(k2, (4 * hid, hid), jnp.float32, -bound, bound)
        bih = jax.random.uniform(k3, (4 * hid,), jnp.float32, -bound, bound)
        bhh = jax.random.uniform(k4, (4 * hid,), jnp.float32, -bound, bound)
        return wih, whh, bih, bhh

    ks = jax.random.split(key, 11)
    p = {}
    p['Wih_e'], p['Whh_e'], p['bih_e'], p['bhh_e'] = lstm(ks[0], K, H_ENC)
    p['Ue_w'], p['Ue_b'] = lin(ks[1], T, T)
    p['We_w'], p['We_b'] = lin(ks[2], T, 2 * H_ENC)
    p['ve_w'], p['ve_b'] = lin(ks[3], 1, T)
    p['Wd_w'], p['Wd_b'] = lin(ks[4], H_ENC, 2 * H_DEC)
    p['Ud_w'], p['Ud_b'] = lin(ks[5], H_ENC, H_ENC)
    p['vd_w'], p['vd_b'] = lin(ks[6], 1, H_ENC)
    p['wt_w'], p['wt_b'] = lin(ks[7], 1, H_ENC + 1)
    p['Wih_d'], p['Whh_d'], p['bih_d'], p['bhh_d'] = lstm(ks[8], 1, H_DEC)
    p['Wy_w'], p['Wy_b'] = lin(ks[9], H_DEC, H_DEC + H_ENC)
    p['vy_w'], p['vy_b'] = lin(ks[10], 1, H_DEC)
    return p


# ----------------------------------------------------------------------------- #
# Pure-JAX reference mirroring the PyTorch code literally (for verification)
# ----------------------------------------------------------------------------- #
def reference_forward(x, y, p):
    hp = jax.lax.Precision.HIGHEST

    def linear(v, w, b):
        return jnp.dot(v, w.T, precision=hp) + b

    def lstm_step(inp, h, c, wih, whh, bih, bhh):
        gates = (jnp.dot(inp, wih.T, precision=hp) + bih
                 + jnp.dot(h, whh.T, precision=hp) + bhh)
        i, f, g, o = jnp.split(gates, 4, axis=1)
        i, f, o = jax.nn.sigmoid(i), jax.nn.sigmoid(f), jax.nn.sigmoid(o)
        g = jnp.tanh(g)
        c = f * c + i * g
        h = o * jnp.tanh(c)
        return h, c

    h = jnp.zeros((B, H_ENC), jnp.float32)
    s = jnp.zeros((B, H_ENC), jnp.float32)
    h_enc, alpha = [], None
    for t in range(T):
        x_t = x[:, t, :]
        e_cols = []
        for k in range(K):
            x_k = x[:, :, k]
            hs = jnp.concatenate([h, s], axis=1)
            re1 = jnp.tanh(linear(hs, p['We_w'], p['We_b']) + linear(x_k, p['Ue_w'], p['Ue_b']))
            e_cols.append(linear(re1, p['ve_w'], p['ve_b']))
        e = jnp.concatenate(e_cols, axis=1)
        alpha = jax.nn.softmax(e, axis=1)
        x_tilde = alpha * x_t
        h, s = lstm_step(x_tilde, h, s, p['Wih_e'], p['Whh_e'], p['bih_e'], p['bhh_e'])
        h_enc.append(h)
    h_enc = jnp.stack(h_enc, axis=1)                                     # (B, T, H_ENC)

    d = jnp.zeros((B, H_DEC), jnp.float32)
    sd = jnp.zeros((B, H_DEC), jnp.float32)
    l_cols = []
    for i in range(T):
        h_i = h_enc[:, i, :]
        ds = jnp.concatenate([d, sd], axis=1)
        re1 = jnp.tanh(linear(ds, p['Wd_w'], p['Wd_b']) + linear(h_i, p['Ud_w'], p['Ud_b']))
        l_cols.append(linear(re1, p['vd_w'], p['vd_b']))
    l = jnp.concatenate(l_cols, axis=1)
    beta = jax.nn.softmax(l, axis=1)
    c_t = jnp.sum(beta[:, :, None] * h_enc, axis=1)
    y_tilde = linear(jnp.concatenate([c_t, y[:, 0]], axis=1), p['wt_w'], p['wt_b'])
    d, sd = lstm_step(y_tilde, d, sd, p['Wih_d'], p['Whh_d'], p['bih_d'], p['bhh_d'])

    y_hat = linear(linear(jnp.concatenate([d, c_t], axis=1), p['Wy_w'], p['Wy_b']),
                   p['vy_w'], p['vy_b'])
    return y_hat, alpha[:, None, :]


if __name__ == "__main__":
    key = jax.random.PRNGKey(0)
    kx, ky, kp = jax.random.split(key, 3)
    x = jax.random.normal(kx, (B, T, K), jnp.float32)
    y = jax.random.normal(ky, (B, T, 1), jnp.float32)
    params = init_params(kp)

    y_hat, alpha = darnn_forward(x, y, params)
    jax.block_until_ready((y_hat, alpha))

    y_hat_ref, alpha_ref = reference_forward(x, y, params)
    np.testing.assert_allclose(np.asarray(y_hat), np.asarray(y_hat_ref), atol=2e-3, rtol=2e-3)
    np.testing.assert_allclose(np.asarray(alpha), np.asarray(alpha_ref), atol=2e-3, rtol=2e-3)
    print("KERNEL_OK")
</pallas_src>

<mosaic_0001>
module attributes {stable_mosaic.version = 11 : i64} {
  func.func @_darnn_kernel(%arg0: memref<2x8x4xf32, #tpu.memory_space<vmem>>, %arg1: memref<8x8xf32, #tpu.memory_space<vmem>>, %arg2: memref<2x1xf32, #tpu.memory_space<vmem>>, %arg3: memref<44x128xf32, #tpu.memory_space<vmem>>, %arg4: memref<75x8xf32, #tpu.memory_space<vmem>>, %arg5: memref<102x32xf32, #tpu.memory_space<vmem>>, %arg6: memref<2x1xf32, #tpu.memory_space<vmem>>, %arg7: memref<2x4xf32, #tpu.memory_space<vmem>>) attributes {dimension_semantics = [], scalar_prefetch = 0 : i64, scratch_operands = 0 : i64, tpu.core_type = #tpu.core_type<tc>} {
    %c0 = arith.constant 0 : index
    %c0_0 = arith.constant 0 : index
    %0 = vector.load %arg3[%c0, %c0_0] : memref<44x128xf32, #tpu.memory_space<vmem>>, vector<3x128xf32>
    %1 = vector.extract_strided_slice %0 {offsets = [0, 0], sizes = [1, 128], strides = [1, 1]} : vector<3x128xf32> to vector<1x128xf32>
    %2 = vector.extract_strided_slice %0 {offsets = [1, 0], sizes = [1, 128], strides = [1, 1]} : vector<3x128xf32> to vector<1x128xf32>
    %3 = vector.extract_strided_slice %0 {offsets = [2, 0], sizes = [1, 128], strides = [1, 1]} : vector<3x128xf32> to vector<1x128xf32>
    %c8 = arith.constant 8 : index
    %c0_1 = arith.constant 0 : index
    %4 = vector.load %arg3[%c8, %c0_1] : memref<44x128xf32, #tpu.memory_space<vmem>>, vector<36x128xf32>
    %c0_2 = arith.constant 0 : index
    %c0_3 = arith.constant 0 : index
    %5 = vector.load %arg4[%c0_2, %c0_3] : memref<75x8xf32, #tpu.memory_space<vmem>>, vector<8x8xf32>
    %c8_4 = arith.constant 8 : index
    %c0_5 = arith.constant 0 : index
    %6 = vector.load %arg4[%c8_4, %c0_5] : memref<75x8xf32, #tpu.memory_space<vmem>>, vector<32x8xf32>
    %c40 = arith.constant 40 : index
    %c0_6 = arith.constant 0 : index
    %7 = vector.load %arg4[%c40, %c0_6] : memref<75x8xf32, #tpu.memory_space<vmem>>, vector<32x8xf32>
    %c72 = arith.constant 72 : index
    %c0_7 = arith.constant 0 : index
    %8 = vector.load %arg4[%c72, %c0_7] : memref<75x8xf32, #tpu.memory_space<vmem>>, vector<3x8xf32>
    %9 = vector.extract_strided_slice %8 {offsets = [0, 0], sizes = [1, 8], strides = [1, 1]} : vector<3x8xf32> to vector<1x8xf32>
    %10 = vector.extract_strided_slice %8 {offsets = [1, 0], sizes = [1, 8], strides = [1, 1]} : vector<3x8xf32> to vector<1x8xf32>
    %11 = vector.extract_strided_slice %8 {offsets = [2, 0], sizes = [1, 8], strides = [1, 1]} : vector<3x8xf32> to vector<1x8xf32>
    %c0_8 = arith.constant 0 : index
    %c0_9 = arith.constant 0 : index
    %12 = vector.load %arg5[%c0_8, %c0_9] : memref<102x32xf32, #tpu.memory_space<vmem>>, vector<32x32xf32>
    %c32 = arith.constant 32 : index
    %c0_10 = arith.constant 0 : index
    %13 = vector.load %arg5[%c32, %c0_10] : memref<102x32xf32, #tpu.memory_space<vmem>>, vector<32x32xf32>
    %c64 = arith.constant 64 : index
    %c0_11 = arith.constant 0 : index
    %14 = vector.load %arg5[%c64, %c0_11] : memref<102x32xf32, #tpu.memory_space<vmem>>, vector<32x32xf32>
    %c96 = arith.constant 96 : index
    %c0_12 = arith.constant 0 : index
    %15 = vector.load %arg5[%c96, %c0_12] : memref<102x32xf32, #tpu.memory_space<vmem>>, vector<6x32xf32>
    %16 = vector.extract_strided_slice %15 {offsets = [0, 0], sizes = [1, 32], strides = [1, 1]} : vector<6x32xf32> to vector<1x32xf32>
    %17 = vector.extract_strided_slice %15 {offsets = [1, 0], sizes = [1, 32], strides = [1, 1]} : vector<6x32xf32> to vector<1x32xf32>
    %18 = vector.extract_strided_slice %15 {offsets = [2, 0], sizes = [1, 32], strides = [1, 1]} : vector<6x32xf32> to vector<1x32xf32>
    %19 = vector.extract_strided_slice %15 {offsets = [3, 0], sizes = [1, 32], strides = [1, 1]} : vector<6x32xf32> to vector<1x32xf32>
    %20 = vector.extract_strided_slice %15 {offsets = [4, 0], sizes = [1, 32], strides = [1, 1]} : vector<6x32xf32> to vector<1x32xf32>
    %21 = vector.extract_strided_slice %15 {offsets = [5, 0], sizes = [1, 32], strides = [1, 1]} : vector<6x32xf32> to vector<1x32xf32>
    %22 = vector.extract_strided_slice %21 {offsets = [0, 0], sizes = [1, 1], strides = [1, 1]} : vector<1x32xf32> to vector<1x1xf32>
    %23 = vector.extract_strided_slice %21 {offsets = [0, 1], sizes = [1, 1], strides = [1, 1]} : vector<1x32xf32> to vector<1x1xf32>
    %24 = vector.extract_strided_slice %21 {offsets = [0, 2], sizes = [1, 1], strides = [1, 1]} : vector<1x32xf32> to vector<1x1xf32>
    %25 = vector.extract_strided_slice %21 {offsets = [0, 3], sizes = [1, 1], strides = [1, 1]} : vector<1x32xf32> to vector<1x1xf32>
    %26 = vector.extract_strided_slice %21 {offsets = [0, 4], sizes = [1, 1], strides = [1, 1]} : vector<1x32xf32> to vector<1x1xf32>
    %c0_13 = arith.constant 0 : index
    %c0_14 = arith.constant 0 : index
    %c0_15 = arith.constant 0 : index
    %27 = vector.load %arg0[%c0_13, %c0_14, %c0_15] : memref<2x8x4xf32, #tpu.memory_space<vmem>>, vector<2x8x4xf32>
    %c0_16 = arith.constant 0 : index
    %c0_17 = arith.constant 0 : index
    %28 = vector.load %arg1[%c0_16, %c0_17] : memref<8x8xf32, #tpu.memory_space<vmem>>, vector<8x8xf32>
    %c0_18 = arith.constant 0 : index
    %c0_19 = arith.constant 0 : index
    %29 = vector.load %arg2[%c0_18, %c0_19] : memref<2x1xf32, #tpu.memory_space<vmem>>, vector<2x1xf32>
    %cst = arith.constant dense<0.000000e+00> : vector<8x8xf32>
    %30 = tpu.matmul %28, %5, %cst {dimension_numbers = #tpu.dot_dimension_numbers<[1], [0], [0], [1], [0, 0, 1, 1], [], []>} : vector<8x8xf32>, vector<8x8xf32>, vector<8x8xf32> -> vector<8x8xf32>
    %31 = vector.broadcast %9 : vector<1x8xf32> to vector<8x8xf32>
    %32 = arith.addf %30, %31 : vector<8x8xf32>
    %33 = vector.shape_cast %32 : vector<8x8xf32> to vector<2x4x8xf32>
    %cst_20 = arith.constant 0.000000e+00 : f32
    %34 = vector.broadcast %cst_20 : f32 to vector<2x32xf32>
    %cst_21 = arith.constant 0.000000e+00 : f32
    %35 = vector.broadcast %cst_21 : f32 to vector<2x32xf32>
    %36 = vector.extract_strided_slice %27 {offsets = [0, 0, 0], sizes = [2, 1, 4], strides = [1, 1, 1]} : vector<2x8x4xf32> to vector<2x1x4xf32>
    %37 = vector.shape_cast %36 : vector<2x1x4xf32> to vector<2x4xf32>
    %cst_22 = arith.constant dense<0.000000e+00> : vector<2x8xf32>
    %38 = tpu.matmul %34, %6, %cst_22 {dimension_numbers = #tpu.dot_dimension_numbers<[1], [0], [0], [1], [0, 0, 1, 1], [], []>} : vector<2x32xf32>, vector<32x8xf32>, vector<2x8xf32> -> vector<2x8xf32>
    %cst_23 = arith.constant dense<0.000000e+00> : vector<2x8xf32>
    %39 = tpu.matmul %35, %7, %cst_23 {dimension_numbers = #tpu.dot_dimension_numbers<[1], [0], [0], [1], [0, 0, 1, 1], [], []>} : vector<2x32xf32>, vector<32x8xf32>, vector<2x8xf32> -> vector<2x8xf32>
    %40 = arith.addf %38, %39 : vector<2x8xf32>
    %41 = vector.broadcast %10 : vector<1x8xf32> to vector<2x8xf32>
    %42 = arith.addf %40, %41 : vector<2x8xf32>
    %43 = vector.shape_cast %42 : vector<2x8xf32> to vector<2x1x8xf32>
    %44 = vector.broadcast %43 : vector<2x1x8xf32> to vector<2x4x8xf32>
    %45 = arith.addf %44, %33 : vector<2x4x8xf32>
    %46 = math.tanh %45 : vector<2x4x8xf32>
    %47 = vector.shape_cast %11 : vector<1x8xf32> to vector<1x1x8xf32>
    %48 = vector.broadcast %47 : vector<1x1x8xf32> to vector<2x4x8xf32>
    %49 = arith.mulf %46, %48 : vector<2x4x8xf32>
    %cst_24 = arith.constant dense<0.000000e+00> : vector<2x4xf32>
    %50 = vector.multi_reduction <add>, %49, %cst_24 [2] : vector<2x4x8xf32> to vector<2x4xf32>
    %51 = vector.broadcast %24 : vector<1x1xf32> to vector<2x4xf32>
    %52 = arith.addf %50, %51 : vector<2x4xf32>
    %cst_25 = arith.constant dense<0xFF800000> : vector<2xf32>
    %53 = vector.multi_reduction <maximumf>, %52, %cst_25 [1] : vector<2x4xf32> to vector<2xf32>
    %54 = vector.shape_cast %53 : vector<2xf32> to vector<2x1xf32>
    %55 = vector.broadcast %54 : vector<2x1xf32> to vector<2x4xf32>
    %56 = arith.subf %52, %55 : vector<2x4xf32>
    %57 = math.exp %56 : vector<2x4xf32>
    %cst_26 = arith.constant dense<0.000000e+00> : vector<2xf32>
    %58 = vector.multi_reduction <add>, %57, %cst_26 [1] : vector<2x4xf32> to vector<2xf32>
    %59 = vector.shape_cast %58 : vector<2xf32> to vector<2x1xf32>
    %60 = vector.broadcast %59 : vector<2x1xf32> to vector<2x4xf32>
    %61 = arith.divf %57, %60 : vector<2x4xf32>
    %62 = arith.mulf %61, %37 : vector<2x4xf32>
    %63 = tpu.concatenate %62, %34 in 1 : vector<2x4xf32>, vector<2x32xf32> -> vector<2x36xf32>
    %cst_27 = arith.constant dense<0.000000e+00> : vector<2x128xf32>
    %64 = tpu.matmul %63, %4, %cst_27 {dimension_numbers = #tpu.dot_dimension_numbers<[1], [0], [0], [1], [0, 0, 1, 1], [], []>} : vector<2x36xf32>, vector<36x128xf32>, vector<2x128xf32> -> vector<2x128xf32>
    %65 = vector.broadcast %1 : vector<1x128xf32> to vector<2x128xf32>
    %66 = arith.addf %64, %65 : vector<2x128xf32>
    %67 = vector.extract_strided_slice %66 {offsets = [0, 0], sizes = [2, 96], strides = [1, 1]} : vector<2x128xf32> to vector<2x96xf32>
    %68 = arith.negf %67 : vector<2x96xf32>
    %69 = math.exp %68 : vector<2x96xf32>
    %cst_28 = arith.constant 1.000000e+00 : f32
    %70 = vector.broadcast %cst_28 : f32 to vector<2x96xf32>
    %71 = arith.addf %70, %69 : vector<2x96xf32>
    %72 = arith.divf %70, %71 : vector<2x96xf32>
    %73 = vector.extract_strided_slice %66 {offsets = [0, 96], sizes = [2, 32], strides = [1, 1]} : vector<2x128xf32> to vector<2x32xf32>
    %74 = math.tanh %73 : vector<2x32xf32>
    %75 = vector.extract_strided_slice %72 {offsets = [0, 0], sizes = [2, 32], strides = [1, 1]} : vector<2x96xf32> to vector<2x32xf32>
    %76 = vector.extract_strided_slice %72 {offsets = [0, 32], sizes = [2, 32], strides = [1, 1]} : vector<2x96xf32> to vector<2x32xf32>
    %77 = vector.extract_strided_slice %72 {offsets = [0, 64], sizes = [2, 32], strides = [1, 1]} : vector<2x96xf32> to vector<2x32xf32>
    %78 = arith.mulf %76, %35 : vector<2x32xf32>
    %79 = arith.mulf %75, %74 : vector<2x32xf32>
    %80 = arith.addf %78, %79 : vector<2x32xf32>
    %81 = math.tanh %80 : vector<2x32xf32>
    %82 = arith.mulf %77, %81 : vector<2x32xf32>
    %83 = vector.extract_strided_slice %27 {offsets = [0, 1, 0], sizes = [2, 1, 4], strides = [1, 1, 1]} : vector<2x8x4xf32> to vector<2x1x4xf32>
    %84 = vector.shape_cast %83 : vector<2x1x4xf32> to vector<2x4xf32>
    %cst_29 = arith.constant dense<0.000000e+00> : vector<2x8xf32>
    %85 = tpu.matmul %82, %6, %cst_29 {dimension_numbers = #tpu.dot_dimension_numbers<[1], [0], [0], [1], [0, 0, 1, 1], [], []>} : vector<2x32xf32>, vector<32x8xf32>, vector<2x8xf32> -> vector<2x8xf32>
    %cst_30 = arith.constant dense<0.000000e+00> : vector<2x8xf32>
    %86 = tpu.matmul %80, %7, %cst_30 {dimension_numbers = #tpu.dot_dimension_numbers<[1], [0], [0], [1], [0, 0, 1, 1], [], []>} : vector<2x32xf32>, vector<32x8xf32>, vector<2x8xf32> -> vector<2x8xf32>
    %87 = arith.addf %85, %86 : vector<2x8xf32>
    %88 = vector.broadcast %10 : vector<1x8xf32> to vector<2x8xf32>
    %89 = arith.addf %87, %88 : vector<2x8xf32>
    %90 = vector.shape_cast %89 : vector<2x8xf32> to vector<2x1x8xf32>
    %91 = vector.broadcast %90 : vector<2x1x8xf32> to vector<2x4x8xf32>
    %92 = arith.addf %91, %33 : vector<2x4x8xf32>
    %93 = math.tanh %92 : vector<2x4x8xf32>
    %94 = vector.shape_cast %11 : vector<1x8xf32> to vector<1x1x8xf32>
    %95 = vector.broadcast %94 : vector<1x1x8xf32> to vector<2x4x8xf32>
    %96 = arith.mulf %93, %95 : vector<2x4x8xf32>
    %cst_31 = arith.constant dense<0.000000e+00> : vector<2x4xf32>
    %97 = vector.multi_reduction <add>, %96, %cst_31 [2] : vector<2x4x8xf32> to vector<2x4xf32>
    %98 = vector.broadcast %24 : vector<1x1xf32> to vector<2x4xf32>
    %99 = arith.addf %97, %98 : vector<2x4xf32>
    %cst_32 = arith.constant dense<0xFF800000> : vector<2xf32>
    %100 = vector.multi_reduction <maximumf>, %99, %cst_32 [1] : vector<2x4xf32> to vector<2xf32>
    %101 = vector.shape_cast %100 : vector<2xf32> to vector<2x1xf32>
    %102 = vector.broadcast %101 : vector<2x1xf32> to vector<2x4xf32>
    %103 = arith.subf %99, %102 : vector<2x4xf32>
    %104 = math.exp %103 : vector<2x4xf32>
    %cst_33 = arith.constant dense<0.000000e+00> : vector<2xf32>
    %105 = vector.multi_reduction <add>, %104, %cst_33 [1] : vector<2x4xf32> to vector<2xf32>
    %106 = vector.shape_cast %105 : vector<2xf32> to vector<2x1xf32>
    %107 = vector.broadcast %106 : vector<2x1xf32> to vector<2x4xf32>
    %108 = arith.divf %104, %107 : vector<2x4xf32>
    %109 = arith.mulf %108, %84 : vector<2x4xf32>
    %110 = tpu.concatenate %109, %82 in 1 : vector<2x4xf32>, vector<2x32xf32> -> vector<2x36xf32>
    %cst_34 = arith.constant dense<0.000000e+00> : vector<2x128xf32>
    %111 = tpu.matmul %110, %4, %cst_34 {dimension_numbers = #tpu.dot_dimension_numbers<[1], [0], [0], [1], [0, 0, 1, 1], [], []>} : vector<2x36xf32>, vector<36x128xf32>, vector<2x128xf32> -> vector<2x128xf32>
    %112 = vector.broadcast %1 : vector<1x128xf32> to vector<2x128xf32>
    %113 = arith.addf %111, %112 : vector<2x128xf32>
    %114 = vector.extract_strided_slice %113 {offsets = [0, 0], sizes = [2, 96], strides = [1, 1]} : vector<2x128xf32> to vector<2x96xf32>
    %115 = arith.negf %114 : vector<2x96xf32>
    %116 = math.exp %115 : vector<2x96xf32>
    %cst_35 = arith.constant 1.000000e+00 : f32
    %117 = vector.broadcast %cst_35 : f32 to vector<2x96xf32>
    %118 = arith.addf %117, %116 : vector<2x96xf32>
    %119 = arith.divf %117, %118 : vector<2x96xf32>
    %120 = vector.extract_strided_slice %113 {offsets = [0, 96], sizes = [2, 32], strides = [1, 1]} : vector<2x128xf32> to vector<2x32xf32>
    %121 = math.tanh %120 : vector<2x32xf32>
    %122 = vector.extract_strided_slice %119 {offsets = [0, 0], sizes = [2, 32], strides = [1, 1]} : vector<2x96xf32> to vector<2x32xf32>
    %123 = vector.extract_strided_slice %119 {offsets = [0, 32], sizes = [2, 32], strides = [1, 1]} : vector<2x96xf32> to vector<2x32xf32>
    %124 = vector.extract_strided_slice %119 {offsets = [0, 64], sizes = [2, 32], strides = [1, 1]} : vector<2x96xf32> to vector<2x32xf32>
    %125 = arith.mulf %123, %80 : vector<2x32xf32>
    %126 = arith.mulf %122, %121 : vector<2x32xf32>
    %127 = arith.addf %125, %126 : vector<2x32xf32>
    %128 = math.tanh %127 : vector<2x32xf32>
    %129 = arith.mulf %124, %128 : vector<2x32xf32>
    %130 = vector.extract_strided_slice %27 {offsets = [0, 2, 0], sizes = [2, 1, 4], strides = [1, 1, 1]} : vector<2x8x4xf32> to vector<2x1x4xf32>
    %131 = vector.shape_cast %130 : vector<2x1x4xf32> to vector<2x4xf32>
    %cst_36 = arith.constant dense<0.000000e+00> : vector<2x8xf32>
    %132 = tpu.matmul %129, %6, %cst_36 {dimension_numbers = #tpu.dot_dimension_numbers<[1], [0], [0], [1], [0, 0, 1, 1], [], []>} : vector<2x32xf32>, vector<32x8xf32>, vector<2x8xf32> -> vector<2x8xf32>
    %cst_37 = arith.constant dense<0.000000e+00> : vector<2x8xf32>
    %133 = tpu.matmul %127, %7, %cst_37 {dimension_numbers = #tpu.dot_dimension_numbers<[1], [0], [0], [1], [0, 0, 1, 1], [], []>} : vector<2x32xf32>, vector<32x8xf32>, vector<2x8xf32> -> vector<2x8xf32>
    %134 = arith.addf %132, %133 : vector<2x8xf32>
    %135 = vector.broadcast %10 : vector<1x8xf32> to vector<2x8xf32>
    %136 = arith.addf %134, %135 : vector<2x8xf32>
    %137 = vector.shape_cast %136 : vector<2x8xf32> to vector<2x1x8xf32>
    %138 = vector.broadcast %137 : vector<2x1x8xf32> to vector<2x4x8xf32>
    %139 = arith.addf %138, %33 : vector<2x4x8xf32>
    %140 = math.tanh %139 : vector<2x4x8xf32>
    %141 = vector.shape_cast %11 : vector<1x8xf32> to vector<1x1x8xf32>
    %142 = vector.broadcast %141 : vector<1x1x8xf32> to vector<2x4x8xf32>
    %143 = arith.mulf %140, %142 : vector<2x4x8xf32>
    %cst_38 = arith.constant dense<0.000000e+00> : vector<2x4xf32>
    %144 = vector.multi_reduction <add>, %143, %cst_38 [2] : vector<2x4x8xf32> to vector<2x4xf32>
    %145 = vector.broadcast %24 : vector<1x1xf32> to vector<2x4xf32>
    %146 = arith.addf %144, %145 : vector<2x4xf32>
    %cst_39 = arith.constant dense<0xFF800000> : vector<2xf32>
    %147 = vector.multi_reduction <maximumf>, %146, %cst_39 [1] : vector<2x4xf32> to vector<2xf32>
    %148 = vector.shape_cast %147 : vector<2xf32> to vector<2x1xf32>
    %149 = vector.broadcast %148 : vector<2x1xf32> to vector<2x4xf32>
    %150 = arith.subf %146, %149 : vector<2x4xf32>
    %151 = math.exp %150 : vector<2x4xf32>
    %cst_40 = arith.constant dense<0.000000e+00> : vector<2xf32>
    %152 = vector.multi_reduction <add>, %151, %cst_40 [1] : vector<2x4xf32> to vector<2xf32>
    %153 = vector.shape_cast %152 : vector<2xf32> to vector<2x1xf32>
    %154 = vector.broadcast %153 : vector<2x1xf32> to vector<2x4xf32>
    %155 = arith.divf %151, %154 : vector<2x4xf32>
    %156 = arith.mulf %155, %131 : vector<2x4xf32>
    %157 = tpu.concatenate %156, %129 in 1 : vector<2x4xf32>, vector<2x32xf32> -> vector<2x36xf32>
    %cst_41 = arith.constant dense<0.000000e+00> : vector<2x128xf32>
    %158 = tpu.matmul %157, %4, %cst_41 {dimension_numbers = #tpu.dot_dimension_numbers<[1], [0], [0], [1], [0, 0, 1, 1], [], []>} : vector<2x36xf32>, vector<36x128xf32>, vector<2x128xf32> -> vector<2x128xf32>
    %159 = vector.broadcast %1 : vector<1x128xf32> to vector<2x128xf32>
    %160 = arith.addf %158, %159 : vector<2x128xf32>
    %161 = vector.extract_strided_slice %160 {offsets = [0, 0], sizes = [2, 96], strides = [1, 1]} : vector<2x128xf32> to vector<2x96xf32>
    %162 = arith.negf %161 : vector<2x96xf32>
    %163 = math.exp %162 : vector<2x96xf32>
    %cst_42 = arith.constant 1.000000e+00 : f32
    %164 = vector.broadcast %cst_42 : f32 to vector<2x96xf32>
    %165 = arith.addf %164, %163 : vector<2x96xf32>
    %166 = arith.divf %164, %165 : vector<2x96xf32>
    %167 = vector.extract_strided_slice %160 {offsets = [0, 96], sizes = [2, 32], strides = [1, 1]} : vector<2x128xf32> to vector<2x32xf32>
    %168 = math.tanh %167 : vector<2x32xf32>
    %169 = vector.extract_strided_slice %166 {offsets = [0, 0], sizes = [2, 32], strides = [1, 1]} : vector<2x96xf32> to vector<2x32xf32>
    %170 = vector.extract_strided_slice %166 {offsets = [0, 32], sizes = [2, 32], strides = [1, 1]} : vector<2x96xf32> to vector<2x32xf32>
    %171 = vector.extract_strided_slice %166 {offsets = [0, 64], sizes = [2, 32], strides = [1, 1]} : vector<2x96xf32> to vector<2x32xf32>
    %172 = arith.mulf %170, %127 : vector<2x32xf32>
    %173 = arith.mulf %169, %168 : vector<2x32xf32>
    %174 = arith.addf %172, %173 : vector<2x32xf32>
    %175 = math.tanh %174 : vector<2x32xf32>
    %176 = arith.mulf %171, %175 : vector<2x32xf32>
    %177 = vector.extract_strided_slice %27 {offsets = [0, 3, 0], sizes = [2, 1, 4], strides = [1, 1, 1]} : vector<2x8x4xf32> to vector<2x1x4xf32>
    %178 = vector.shape_cast %177 : vector<2x1x4xf32> to vector<2x4xf32>
    %cst_43 = arith.constant dense<0.000000e+00> : vector<2x8xf32>
    %179 = tpu.matmul %176, %6, %cst_43 {dimension_numbers = #tpu.dot_dimension_numbers<[1], [0], [0], [1], [0, 0, 1, 1], [], []>} : vector<2x32xf32>, vector<32x8xf32>, vector<2x8xf32> -> vector<2x8xf32>
    %cst_44 = arith.constant dense<0.000000e+00> : vector<2x8xf32>
    %180 = tpu.matmul %174, %7, %cst_44 {dimension_numbers = #tpu.dot_dimension_numbers<[1], [0], [0], [1], [0, 0, 1, 1], [], []>} : vector<2x32xf32>, vector<32x8xf32>, vector<2x8xf32> -> vector<2x8xf32>
    %181 = arith.addf %179, %180 : vector<2x8xf32>
    %182 = vector.broadcast %10 : vector<1x8xf32> to vector<2x8xf32>
    %183 = arith.addf %181, %182 : vector<2x8xf32>
    %184 = vector.shape_cast %183 : vector<2x8xf32> to vector<2x1x8xf32>
    %185 = vector.broadcast %184 : vector<2x1x8xf32> to vector<2x4x8xf32>
    %186 = arith.addf %185, %33 : vector<2x4x8xf32>
    %187 = math.tanh %186 : vector<2x4x8xf32>
    %188 = vector.shape_cast %11 : vector<1x8xf32> to vector<1x1x8xf32>
    %189 = vector.broadcast %188 : vector<1x1x8xf32> to vector<2x4x8xf32>
    %190 = arith.mulf %187, %189 : vector<2x4x8xf32>
    %cst_45 = arith.constant dense<0.000000e+00> : vector<2x4xf32>
    %191 = vector.multi_reduction <add>, %190, %cst_45 [2] : vector<2x4x8xf32> to vector<2x4xf32>
    %192 = vector.broadcast %24 : vector<1x1xf32> to vector<2x4xf32>
    %193 = arith.addf %191, %192 : vector<2x4xf32>
    %cst_46 = arith.constant dense<0xFF800000> : vector<2xf32>
    %194 = vector.multi_reduction <maximumf>, %193, %cst_46 [1] : vector<2x4xf32> to vector<2xf32>
    %195 = vector.shape_cast %194 : vector<2xf32> to vector<2x1xf32>
    %196 = vector.broadcast %195 : vector<2x1xf32> to vector<2x4xf32>
    %197 = arith.subf %193, %196 : vector<2x4xf32>
    %198 = math.exp %197 : vector<2x4xf32>
    %cst_47 = arith.constant dense<0.000000e+00> : vector<2xf32>
    %199 = vector.multi_reduction <add>, %198, %cst_47 [1] : vector<2x4xf32> to vector<2xf32>
    %200 = vector.shape_cast %199 : vector<2xf32> to vector<2x1xf32>
    %201 = vector.broadcast %200 : vector<2x1xf32> to vector<2x4xf32>
    %202 = arith.divf %198, %201 : vector<2x4xf32>
    %203 = arith.mulf %202, %178 : vector<2x4xf32>
    %204 = tpu.concatenate %203, %176 in 1 : vector<2x4xf32>, vector<2x32xf32> -> vector<2x36xf32>
    %cst_48 = arith.constant dense<0.000000e+00> : vector<2x128xf32>
    %205 = tpu.matmul %204, %4, %cst_48 {dimension_numbers = #tpu.dot_dimension_numbers<[1], [0], [0], [1], [0, 0, 1, 1], [], []>} : vector<2x36xf32>, vector<36x128xf32>, vector<2x128xf32> -> vector<2x128xf32>
    %206 = vector.broadcast %1 : vector<1x128xf32> to vector<2x128xf32>
    %207 = arith.addf %205, %206 : vector<2x128xf32>
    %208 = vector.extract_strided_slice %207 {offsets = [0, 0], sizes = [2, 96], strides = [1, 1]} : vector<2x128xf32> to vector<2x96xf32>
    %209 = arith.negf %208 : vector<2x96xf32>
    %210 = math.exp %209 : vector<2x96xf32>
    %cst_49 = arith.constant 1.000000e+00 : f32
    %211 = vector.broadcast %cst_49 : f32 to vector<2x96xf32>
    %212 = arith.addf %211, %210 : vector<2x96xf32>
    %213 = arith.divf %211, %212 : vector<2x96xf32>
    %214 = vector.extract_strided_slice %207 {offsets = [0, 96], sizes = [2, 32], strides = [1, 1]} : vector<2x128xf32> to vector<2x32xf32>
    %215 = math.tanh %214 : vector<2x32xf32>
    %216 = vector.extract_strided_slice %213 {offsets = [0, 0], sizes = [2, 32], strides = [1, 1]} : vector<2x96xf32> to vector<2x32xf32>
    %217 = vector.extract_strided_slice %213 {offsets = [0, 32], sizes = [2, 32], strides = [1, 1]} : vector<2x96xf32> to vector<2x32xf32>
    %218 = vector.extract_strided_slice %213 {offsets = [0, 64], sizes = [2, 32], strides = [1, 1]} : vector<2x96xf32> to vector<2x32xf32>
    %219 = arith.mulf %217, %174 : vector<2x32xf32>
    %220 = arith.mulf %216, %215 : vector<2x32xf32>
    %221 = arith.addf %219, %220 : vector<2x32xf32>
    %222 = math.tanh %221 : vector<2x32xf32>
    %223 = arith.mulf %218, %222 : vector<2x32xf32>
    %224 = vector.extract_strided_slice %27 {offsets = [0, 4, 0], sizes = [2, 1, 4], strides = [1, 1, 1]} : vector<2x8x4xf32> to vector<2x1x4xf32>
    %225 = vector.shape_cast %224 : vector<2x1x4xf32> to vector<2x4xf32>
    %cst_50 = arith.constant dense<0.000000e+00> : vector<2x8xf32>
    %226 = tpu.matmul %223, %6, %cst_50 {dimension_numbers = #tpu.dot_dimension_numbers<[1], [0], [0], [1], [0, 0, 1, 1], [], []>} : vector<2x32xf32>, vector<32x8xf32>, vector<2x8xf32> -> vector<2x8xf32>
    %cst_51 = arith.constant dense<0.000000e+00> : vector<2x8xf32>
    %227 = tpu.matmul %221, %7, %cst_51 {dimension_numbers = #tpu.dot_dimension_numbers<[1], [0], [0], [1], [0, 0, 1, 1], [], []>} : vector<2x32xf32>, vector<32x8xf32>, vector<2x8xf32> -> vector<2x8xf32>
    %228 = arith.addf %226, %227 : vector<2x8xf32>
    %229 = vector.broadcast %10 : vector<1x8xf32> to vector<2x8xf32>
    %230 = arith.addf %228, %229 : vector<2x8xf32>
    %231 = vector.shape_cast %230 : vector<2x8xf32> to vector<2x1x8xf32>
    %232 = vector.broadcast %231 : vector<2x1x8xf32> to vector<2x4x8xf32>
    %233 = arith.addf %232, %33 : vector<2x4x8xf32>
    %234 = math.tanh %233 : vector<2x4x8xf32>
    %235 = vector.shape_cast %11 : vector<1x8xf32> to vector<1x1x8xf32>
    %236 = vector.broadcast %235 : vector<1x1x8xf32> to vector<2x4x8xf32>
    %237 = arith.mulf %234, %236 : vector<2x4x8xf32>
    %cst_52 = arith.constant dense<0.000000e+00> : vector<2x4xf32>
    %238 = vector.multi_reduction <add>, %237, %cst_52 [2] : vector<2x4x8xf32> to vector<2x4xf32>
    %239 = vector.broadcast %24 : vector<1x1xf32> to vector<2x4xf32>
    %240 = arith.addf %238, %239 : vector<2x4xf32>
    %cst_53 = arith.constant dense<0xFF800000> : vector<2xf32>
    %241 = vector.multi_reduction <maximumf>, %240, %cst_53 [1] : vector<2x4xf32> to vector<2xf32>
    %242 = vector.shape_cast %241 : vector<2xf32> to vector<2x1xf32>
    %243 = vector.broadcast %242 : vector<2x1xf32> to vector<2x4xf32>
    %244 = arith.subf %240, %243 : vector<2x4xf32>
    %245 = math.exp %244 : vector<2x4xf32>
    %cst_54 = arith.constant dense<0.000000e+00> : vector<2xf32>
    %246 = vector.multi_reduction <add>, %245, %cst_54 [1] : vector<2x4xf32> to vector<2xf32>
    %247 = vector.shape_cast %246 : vector<2xf32> to vector<2x1xf32>
    %248 = vector.broadcast %247 : vector<2x1xf32> to vector<2x4xf32>
    %249 = arith.divf %245, %248 : vector<2x4xf32>
    %250 = arith.mulf %249, %225 : vector<2x4xf32>
    %251 = tpu.concatenate %250, %223 in 1 : vector<2x4xf32>, vector<2x32xf32> -> vector<2x36xf32>
    %cst_55 = arith.constant dense<0.000000e+00> : vector<2x128xf32>
    %252 = tpu.matmul %251, %4, %cst_55 {dimension_numbers = #tpu.dot_dimension_numbers<[1], [0], [0], [1], [0, 0, 1, 1], [], []>} : vector<2x36xf32>, vector<36x128xf32>, vector<2x128xf32> -> vector<2x128xf32>
    %253 = vector.broadcast %1 : vector<1x128xf32> to vector<2x128xf32>
    %254 = arith.addf %252, %253 : vector<2x128xf32>
    %255 = vector.extract_strided_slice %254 {offsets = [0, 0], sizes = [2, 96], strides = [1, 1]} : vector<2x128xf32> to vector<2x96xf32>
    %256 = arith.negf %255 : vector<2x96xf32>
    %257 = math.exp %256 : vector<2x96xf32>
    %cst_56 = arith.constant 1.000000e+00 : f32
    %258 = vector.broadcast %cst_56 : f32 to vector<2x96xf32>
    %259 = arith.addf %258, %257 : vector<2x96xf32>
    %260 = arith.divf %258, %259 : vector<2x96xf32>
    %261 = vector.extract_strided_slice %254 {offsets = [0, 96], sizes = [2, 32], strides = [1, 1]} : vector<2x128xf32> to vector<2x32xf32>
    %262 = math.tanh %261 : vector<2x32xf32>
    %263 = vector.extract_strided_slice %260 {offsets = [0, 0], sizes = [2, 32], strides = [1, 1]} : vector<2x96xf32> to vector<2x32xf32>
    %264 = vector.extract_strided_slice %260 {offsets = [0, 32], sizes = [2, 32], strides = [1, 1]} : vector<2x96xf32> to vector<2x32xf32>
    %265 = vector.extract_strided_slice %260 {offsets = [0, 64], sizes = [2, 32], strides = [1, 1]} : vector<2x96xf32> to vector<2x32xf32>
    %266 = arith.mulf %264, %221 : vector<2x32xf32>
    %267 = arith.mulf %263, %262 : vector<2x32xf32>
    %268 = arith.addf %266, %267 : vector<2x32xf32>
    %269 = math.tanh %268 : vector<2x32xf32>
    %270 = arith.mulf %265, %269 : vector<2x32xf32>
    %271 = vector.extract_strided_slice %27 {offsets = [0, 5, 0], sizes = [2, 1, 4], strides = [1, 1, 1]} : vector<2x8x4xf32> to vector<2x1x4xf32>
    %272 = vector.shape_cast %271 : vector<2x1x4xf32> to vector<2x4xf32>
    %cst_57 = arith.constant dense<0.000000e+00> : vector<2x8xf32>
    %273 = tpu.matmul %270, %6, %cst_57 {dimension_numbers = #tpu.dot_dimension_numbers<[1], [0], [0], [1], [0, 0, 1, 1], [], []>} : vector<2x32xf32>, vector<32x8xf32>, vector<2x8xf32> -> vector<2x8xf32>
    %cst_58 = arith.constant dense<0.000000e+00> : vector<2x8xf32>
    %274 = tpu.matmul %268, %7, %cst_58 {dimension_numbers = #tpu.dot_dimension_numbers<[1], [0], [0], [1], [0, 0, 1, 1], [], []>} : vector<2x32xf32>, vector<32x8xf32>, vector<2x8xf32> -> vector<2x8xf32>
    %275 = arith.addf %273, %274 : vector<2x8xf32>
    %276 = vector.broadcast %10 : vector<1x8xf32> to vector<2x8xf32>
    %277 = arith.addf %275, %276 : vector<2x8xf32>
    %278 = vector.shape_cast %277 : vector<2x8xf32> to vector<2x1x8xf32>
    %279 = vector.broadcast %278 : vector<2x1x8xf32> to vector<2x4x8xf32>
    %280 = arith.addf %279, %33 : vector<2x4x8xf32>
    %281 = math.tanh %280 : vector<2x4x8xf32>
    %282 = vector.shape_cast %11 : vector<1x8xf32> to vector<1x1x8xf32>
    %283 = vector.broadcast %282 : vector<1x1x8xf32> to vector<2x4x8xf32>
    %284 = arith.mulf %281, %283 : vector<2x4x8xf32>
    %cst_59 = arith.constant dense<0.000000e+00> : vector<2x4xf32>
    %285 = vector.multi_reduction <add>, %284, %cst_59 [2] : vector<2x4x8xf32> to vector<2x4xf32>
    %286 = vector.broadcast %24 : vector<1x1xf32> to vector<2x4xf32>
    %287 = arith.addf %285, %286 : vector<2x4xf32>
    %cst_60 = arith.constant dense<0xFF800000> : vector<2xf32>
    %288 = vector.multi_reduction <maximumf>, %287, %cst_60 [1] : vector<2x4xf32> to vector<2xf32>
    %289 = vector.shape_cast %288 : vector<2xf32> to vector<2x1xf32>
    %290 = vector.broadcast %289 : vector<2x1xf32> to vector<2x4xf32>
    %291 = arith.subf %287, %290 : vector<2x4xf32>
    %292 = math.exp %291 : vector<2x4xf32>
    %cst_61 = arith.constant dense<0.000000e+00> : vector<2xf32>
    %293 = vector.multi_reduction <add>, %292, %cst_61 [1] : vector<2x4xf32> to vector<2xf32>
    %294 = vector.shape_cast %293 : vector<2xf32> to vector<2x1xf32>
    %295 = vector.broadcast %294 : vector<2x1xf32> to vector<2x4xf32>
    %296 = arith.divf %292, %295 : vector<2x4xf32>
    %297 = arith.mulf %296, %272 : vector<2x4xf32>
    %298 = tpu.concatenate %297, %270 in 1 : vector<2x4xf32>, vector<2x32xf32> -> vector<2x36xf32>
    %cst_62 = arith.constant dense<0.000000e+00> : vector<2x128xf32>
    %299 = tpu.matmul %298, %4, %cst_62 {dimension_numbers = #tpu.dot_dimension_numbers<[1], [0], [0], [1], [0, 0, 1, 1], [], []>} : vector<2x36xf32>, vector<36x128xf32>, vector<2x128xf32> -> vector<2x128xf32>
    %300 = vector.broadcast %1 : vector<1x128xf32> to vector<2x128xf32>
    %301 = arith.addf %299, %300 : vector<2x128xf32>
    %302 = vector.extract_strided_slice %301 {offsets = [0, 0], sizes = [2, 96], strides = [1, 1]} : vector<2x128xf32> to vector<2x96xf32>
    %303 = arith.negf %302 : vector<2x96xf32>
    %304 = math.exp %303 : vector<2x96xf32>
    %cst_63 = arith.constant 1.000000e+00 : f32
    %305 = vector.broadcast %cst_63 : f32 to vector<2x96xf32>
    %306 = arith.addf %305, %304 : vector<2x96xf32>
    %307 = arith.divf %305, %306 : vector<2x96xf32>
    %308 = vector.extract_strided_slice %301 {offsets = [0, 96], sizes = [2, 32], strides = [1, 1]} : vector<2x128xf32> to vector<2x32xf32>
    %309 = math.tanh %308 : vector<2x32xf32>
    %310 = vector.extract_strided_slice %307 {offsets = [0, 0], sizes = [2, 32], strides = [1, 1]} : vector<2x96xf32> to vector<2x32xf32>
    %311 = vector.extract_strided_slice %307 {offsets = [0, 32], sizes = [2, 32], strides = [1, 1]} : vector<2x96xf32> to vector<2x32xf32>
    %312 = vector.extract_strided_slice %307 {offsets = [0, 64], sizes = [2, 32], strides = [1, 1]} : vector<2x96xf32> to vector<2x32xf32>
    %313 = arith.mulf %311, %268 : vector<2x32xf32>
    %314 = arith.mulf %310, %309 : vector<2x32xf32>
    %315 = arith.addf %313, %314 : vector<2x32xf32>
    %316 = math.tanh %315 : vector<2x32xf32>
    %317 = arith.mulf %312, %316 : vector<2x32xf32>
    %318 = vector.extract_strided_slice %27 {offsets = [0, 6, 0], sizes = [2, 1, 4], strides = [1, 1, 1]} : vector<2x8x4xf32> to vector<2x1x4xf32>
    %319 = vector.shape_cast %318 : vector<2x1x4xf32> to vector<2x4xf32>
    %cst_64 = arith.constant dense<0.000000e+00> : vector<2x8xf32>
    %320 = tpu.matmul %317, %6, %cst_64 {dimension_numbers = #tpu.dot_dimension_numbers<[1], [0], [0], [1], [0, 0, 1, 1], [], []>} : vector<2x32xf32>, vector<32x8xf32>, vector<2x8xf32> -> vector<2x8xf32>
    %cst_65 = arith.constant dense<0.000000e+00> : vector<2x8xf32>
    %321 = tpu.matmul %315, %7, %cst_65 {dimension_numbers = #tpu.dot_dimension_numbers<[1], [0], [0], [1], [0, 0, 1, 1], [], []>} : vector<2x32xf32>, vector<32x8xf32>, vector<2x8xf32> -> vector<2x8xf32>
    %322 = arith.addf %320, %321 : vector<2x8xf32>
    %323 = vector.broadcast %10 : vector<1x8xf32> to vector<2x8xf32>
    %324 = arith.addf %322, %323 : vector<2x8xf32>
    %325 = vector.shape_cast %324 : vector<2x8xf32> to vector<2x1x8xf32>
    %326 = vector.broadcast %325 : vector<2x1x8xf32> to vector<2x4x8xf32>
    %327 = arith.addf %326, %33 : vector<2x4x8xf32>
    %328 = math.tanh %327 : vector<2x4x8xf32>
    %329 = vector.shape_cast %11 : vector<1x8xf32> to vector<1x1x8xf32>
    %330 = vector.broadcast %329 : vector<1x1x8xf32> to vector<2x4x8xf32>
    %331 = arith.mulf %328, %330 : vector<2x4x8xf32>
    %cst_66 = arith.constant dense<0.000000e+00> : vector<2x4xf32>
    %332 = vector.multi_reduction <add>, %331, %cst_66 [2] : vector<2x4x8xf32> to vector<2x4xf32>
    %333 = vector.broadcast %24 : vector<1x1xf32> to vector<2x4xf32>
    %334 = arith.addf %332, %333 : vector<2x4xf32>
    %cst_67 = arith.constant dense<0xFF800000> : vector<2xf32>
    %335 = vector.multi_reduction <maximumf>, %334, %cst_67 [1] : vector<2x4xf32> to vector<2xf32>
    %336 = vector.shape_cast %335 : vector<2xf32> to vector<2x1xf32>
    %337 = vector.broadcast %336 : vector<2x1xf32> to vector<2x4xf32>
    %338 = arith.subf %334, %337 : vector<2x4xf32>
    %339 = math.exp %338 : vector<2x4xf32>
    %cst_68 = arith.constant dense<0.000000e+00> : vector<2xf32>
    %340 = vector.multi_reduction <add>, %339, %cst_68 [1] : vector<2x4xf32> to vector<2xf32>
    %341 = vector.shape_cast %340 : vector<2xf32> to vector<2x1xf32>
    %342 = vector.broadcast %341 : vector<2x1xf32> to vector<2x4xf32>
    %343 = arith.divf %339, %342 : vector<2x4xf32>
    %344 = arith.mulf %343, %319 : vector<2x4xf32>
    %345 = tpu.concatenate %344, %317 in 1 : vector<2x4xf32>, vector<2x32xf32> -> vector<2x36xf32>
    %cst_69 = arith.constant dense<0.000000e+00> : vector<2x128xf32>
    %346 = tpu.matmul %345, %4, %cst_69 {dimension_numbers = #tpu.dot_dimension_numbers<[1], [0], [0], [1], [0, 0, 1, 1], [], []>} : vector<2x36xf32>, vector<36x128xf32>, vector<2x128xf32> -> vector<2x128xf32>
    %347 = vector.broadcast %1 : vector<1x128xf32> to vector<2x128xf32>
    %348 = arith.addf %346, %347 : vector<2x128xf32>
    %349 = vector.extract_strided_slice %348 {offsets = [0, 0], sizes = [2, 96], strides = [1, 1]} : vector<2x128xf32> to vector<2x96xf32>
    %350 = arith.negf %349 : vector<2x96xf32>
    %351 = math.exp %350 : vector<2x96xf32>
    %cst_70 = arith.constant 1.000000e+00 : f32
    %352 = vector.broadcast %cst_70 : f32 to vector<2x96xf32>
    %353 = arith.addf %352, %351 : vector<2x96xf32>
    %354 = arith.divf %352, %353 : vector<2x96xf32>
    %355 = vector.extract_strided_slice %348 {offsets = [0, 96], sizes = [2, 32], strides = [1, 1]} : vector<2x128xf32> to vector<2x32xf32>
    %356 = math.tanh %355 : vector<2x32xf32>
    %357 = vector.extract_strided_slice %354 {offsets = [0, 0], sizes = [2, 32], strides = [1, 1]} : vector<2x96xf32> to vector<2x32xf32>
    %358 = vector.extract_strided_slice %354 {offsets = [0, 32], sizes = [2, 32], strides = [1, 1]} : vector<2x96xf32> to vector<2x32xf32>
    %359 = vector.extract_strided_slice %354 {offsets = [0, 64], sizes = [2, 32], strides = [1, 1]} : vector<2x96xf32> to vector<2x32xf32>
    %360 = arith.mulf %358, %315 : vector<2x32xf32>
    %361 = arith.mulf %357, %356 : vector<2x32xf32>
    %362 = arith.addf %360, %361 : vector<2x32xf32>
    %363 = math.tanh %362 : vector<2x32xf32>
    %364 = arith.mulf %359, %363 : vector<2x32xf32>
    %365 = vector.extract_strided_slice %27 {offsets = [0, 7, 0], sizes = [2, 1, 4], strides = [1, 1, 1]} : vector<2x8x4xf32> to vector<2x1x4xf32>
    %366 = vector.shape_cast %365 : vector<2x1x4xf32> to vector<2x4xf32>
    %cst_71 = arith.constant dense<0.000000e+00> : vector<2x8xf32>
    %367 = tpu.matmul %364, %6, %cst_71 {dimension_numbers = #tpu.dot_dimension_numbers<[1], [0], [0], [1], [0, 0, 1, 1], [], []>} : vector<2x32xf32>, vector<32x8xf32>, vector<2x8xf32> -> vector<2x8xf32>
    %cst_72 = arith.constant dense<0.000000e+00> : vector<2x8xf32>
    %368 = tpu.matmul %362, %7, %cst_72 {dimension_numbers = #tpu.dot_dimension_numbers<[1], [0], [0], [1], [0, 0, 1, 1], [], []>} : vector<2x32xf32>, vector<32x8xf32>, vector<2x8xf32> -> vector<2x8xf32>
    %369 = arith.addf %367, %368 : vector<2x8xf32>
    %370 = vector.broadcast %10 : vector<1x8xf32> to vector<2x8xf32>
    %371 = arith.addf %369, %370 : vector<2x8xf32>
    %372 = vector.shape_cast %371 : vector<2x8xf32> to vector<2x1x8xf32>
    %373 = vector.broadcast %372 : vector<2x1x8xf32> to vector<2x4x8xf32>
    %374 = arith.addf %373, %33 : vector<2x4x8xf32>
    %375 = math.tanh %374 : vector<2x4x8xf32>
    %376 = vector.shape_cast %11 : vector<1x8xf32> to vector<1x1x8xf32>
    %377 = vector.broadcast %376 : vector<1x1x8xf32> to vector<2x4x8xf32>
    %378 = arith.mulf %375, %377 : vector<2x4x8xf32>
    %cst_73 = arith.constant dense<0.000000e+00> : vector<2x4xf32>
    %379 = vector.multi_reduction <add>, %378, %cst_73 [2] : vector<2x4x8xf32> to vector<2x4xf32>
    %380 = vector.broadcast %24 : vector<1x1xf32> to vector<2x4xf32>
    %381 = arith.addf %379, %380 : vector<2x4xf32>
    %cst_74 = arith.constant dense<0xFF800000> : vector<2xf32>
    %382 = vector.multi_reduction <maximumf>, %381, %cst_74 [1] : vector<2x4xf32> to vector<2xf32>
    %383 = vector.shape_cast %382 : vector<2xf32> to vector<2x1xf32>
    %384 = vector.broadcast %383 : vector<2x1xf32> to vector<2x4xf32>
    %385 = arith.subf %381, %384 : vector<2x4xf32>
    %386 = math.exp %385 : vector<2x4xf32>
    %cst_75 = arith.constant dense<0.000000e+00> : vector<2xf32>
    %387 = vector.multi_reduction <add>, %386, %cst_75 [1] : vector<2x4xf32> to vector<2xf32>
    %388 = vector.shape_cast %387 : vector<2xf32> to vector<2x1xf32>
    %389 = vector.broadcast %388 : vector<2x1xf32> to vector<2x4xf32>
    %390 = arith.divf %386, %389 : vector<2x4xf32>
    %391 = arith.mulf %390, %366 : vector<2x4xf32>
    %392 = tpu.concatenate %391, %364 in 1 : vector<2x4xf32>, vector<2x32xf32> -> vector<2x36xf32>
    %cst_76 = arith.constant dense<0.000000e+00> : vector<2x128xf32>
    %393 = tpu.matmul %392, %4, %cst_76 {dimension_numbers = #tpu.dot_dimension_numbers<[1], [0], [0], [1], [0, 0, 1, 1], [], []>} : vector<2x36xf32>, vector<36x128xf32>, vector<2x128xf32> -> vector<2x128xf32>
    %394 = vector.broadcast %1 : vector<1x128xf32> to vector<2x128xf32>
    %395 = arith.addf %393, %394 : vector<2x128xf32>
    %396 = vector.extract_strided_slice %395 {offsets = [0, 0], sizes = [2, 96], strides = [1, 1]} : vector<2x128xf32> to vector<2x96xf32>
    %397 = arith.negf %396 : vector<2x96xf32>
    %398 = math.exp %397 : vector<2x96xf32>
    %cst_77 = arith.constant 1.000000e+00 : f32
    %399 = vector.broadcast %cst_77 : f32 to vector<2x96xf32>
    %400 = arith.addf %399, %398 : vector<2x96xf32>
    %401 = arith.divf %399, %400 : vector<2x96xf32>
    %402 = vector.extract_strided_slice %395 {offsets = [0, 96], sizes = [2, 32], strides = [1, 1]} : vector<2x128xf32> to vector<2x32xf32>
    %403 = math.tanh %402 : vector<2x32xf32>
    %404 = vector.extract_strided_slice %401 {offsets = [0, 0], sizes = [2, 32], strides = [1, 1]} : vector<2x96xf32> to vector<2x32xf32>
    %405 = vector.extract_strided_slice %401 {offsets = [0, 32], sizes = [2, 32], strides = [1, 1]} : vector<2x96xf32> to vector<2x32xf32>
    %406 = vector.extract_strided_slice %401 {offsets = [0, 64], sizes = [2, 32], strides = [1, 1]} : vector<2x96xf32> to vector<2x32xf32>
    %407 = arith.mulf %405, %362 : vector<2x32xf32>
    %408 = arith.mulf %404, %403 : vector<2x32xf32>
    %409 = arith.addf %407, %408 : vector<2x32xf32>
    %410 = math.tanh %409 : vector<2x32xf32>
    %411 = arith.mulf %406, %410 : vector<2x32xf32>
    %412 = vector.shape_cast %82 : vector<2x32xf32> to vector<2x1x32xf32>
    %413 = vector.shape_cast %129 : vector<2x32xf32> to vector<2x1x32xf32>
    %414 = vector.shape_cast %176 : vector<2x32xf32> to vector<2x1x32xf32>
    %415 = vector.shape_cast %223 : vector<2x32xf32> to vector<2x1x32xf32>
    %416 = vector.shape_cast %270 : vector<2x32xf32> to vector<2x1x32xf32>
    %417 = vector.shape_cast %317 : vector<2x32xf32> to vector<2x1x32xf32>
    %418 = vector.shape_cast %364 : vector<2x32xf32> to vector<2x1x32xf32>
    %419 = vector.shape_cast %411 : vector<2x32xf32> to vector<2x1x32xf32>
    %420 = tpu.concatenate %412, %413, %414, %415, %416, %417, %418, %419 in 1 : vector<2x1x32xf32>, vector<2x1x32xf32>, vector<2x1x32xf32>, vector<2x1x32xf32>, vector<2x1x32xf32>, vector<2x1x32xf32>, vector<2x1x32xf32>, vector<2x1x32xf32> -> vector<2x8x32xf32>
    %421 = vector.shape_cast %420 : vector<2x8x32xf32> to vector<16x32xf32>
    %cst_78 = arith.constant dense<0.000000e+00> : vector<16x32xf32>
    %422 = tpu.matmul %421, %12, %cst_78 {dimension_numbers = #tpu.dot_dimension_numbers<[1], [0], [0], [1], [0, 0, 1, 1], [], []>} : vector<16x32xf32>, vector<32x32xf32>, vector<16x32xf32> -> vector<16x32xf32>
    %423 = vector.broadcast %16 : vector<1x32xf32> to vector<16x32xf32>
    %424 = arith.addf %422, %423 : vector<16x32xf32>
    %425 = math.tanh %424 : vector<16x32xf32>
    %426 = vector.shape_cast %425 : vector<16x32xf32> to vector<2x8x32xf32>
    %427 = vector.shape_cast %17 : vector<1x32xf32> to vector<1x1x32xf32>
    %428 = vector.broadcast %427 : vector<1x1x32xf32> to vector<2x8x32xf32>
    %429 = arith.mulf %426, %428 : vector<2x8x32xf32>
    %cst_79 = arith.constant dense<0.000000e+00> : vector<2x8xf32>
    %430 = vector.multi_reduction <add>, %429, %cst_79 [2] : vector<2x8x32xf32> to vector<2x8xf32>
    %431 = vector.broadcast %25 : vector<1x1xf32> to vector<2x8xf32>
    %432 = arith.addf %430, %431 : vector<2x8xf32>
    %cst_80 = arith.constant dense<0xFF800000> : vector<2xf32>
    %433 = vector.multi_reduction <maximumf>, %432, %cst_80 [1] : vector<2x8xf32> to vector<2xf32>
    %434 = vector.shape_cast %433 : vector<2xf32> to vector<2x1xf32>
    %435 = vector.broadcast %434 : vector<2x1xf32> to vector<2x8xf32>
    %436 = arith.subf %432, %435 : vector<2x8xf32>
    %437 = math.exp %436 : vector<2x8xf32>
    %cst_81 = arith.constant dense<0.000000e+00> : vector<2xf32>
    %438 = vector.multi_reduction <add>, %437, %cst_81 [1] : vector<2x8xf32> to vector<2xf32>
    %439 = vector.shape_cast %438 : vector<2xf32> to vector<2x1xf32>
    %440 = vector.broadcast %439 : vector<2x1xf32> to vector<2x8xf32>
    %441 = arith.divf %437, %440 : vector<2x8xf32>
    %442 = vector.shape_cast %441 : vector<2x8xf32> to vector<2x8x1xf32>
    %443 = vector.broadcast %442 : vector<2x8x1xf32> to vector<2x8x32xf32>
    %444 = arith.mulf %443, %420 : vector<2x8x32xf32>
    %cst_82 = arith.constant dense<0.000000e+00> : vector<2x32xf32>
    %445 = vector.multi_reduction <add>, %444, %cst_82 [1] : vector<2x8x32xf32> to vector<2x32xf32>
    %446 = vector.broadcast %20 : vector<1x32xf32> to vector<2x32xf32>
    %447 = arith.mulf %445, %446 : vector<2x32xf32>
    %cst_83 = arith.constant dense<0.000000e+00> : vector<2xf32>
    %448 = vector.multi_reduction <add>, %447, %cst_83 [1] : vector<2x32xf32> to vector<2xf32>
    %449 = vector.shape_cast %448 : vector<2xf32> to vector<2x1xf32>
    %450 = vector.broadcast %22 : vector<1x1xf32> to vector<2x1xf32>
    %451 = arith.mulf %29, %450 : vector<2x1xf32>
    %452 = arith.addf %449, %451 : vector<2x1xf32>
    %453 = vector.broadcast %23 : vector<1x1xf32> to vector<2x1xf32>
    %454 = arith.addf %452, %453 : vector<2x1xf32>
    %455 = vector.broadcast %454 : vector<2x1xf32> to vector<2x128xf32>
    %456 = vector.broadcast %2 : vector<1x128xf32> to vector<2x128xf32>
    %457 = arith.mulf %455, %456 : vector<2x128xf32>
    %458 = vector.broadcast %3 : vector<1x128xf32> to vector<2x128xf32>
    %459 = arith.addf %457, %458 : vector<2x128xf32>
    %460 = vector.extract_strided_slice %459 {offsets = [0, 0], sizes = [2, 96], strides = [1, 1]} : vector<2x128xf32> to vector<2x96xf32>
    %461 = arith.negf %460 : vector<2x96xf32>
    %462 = math.exp %461 : vector<2x96xf32>
    %cst_84 = arith.constant 1.000000e+00 : f32
    %463 = vector.broadcast %cst_84 : f32 to vector<2x96xf32>
    %464 = arith.addf %463, %462 : vector<2x96xf32>
    %465 = arith.divf %463, %464 : vector<2x96xf32>
    %466 = vector.extract_strided_slice %459 {offsets = [0, 96], sizes = [2, 32], strides = [1, 1]} : vector<2x128xf32> to vector<2x32xf32>
    %467 = math.tanh %466 : vector<2x32xf32>
    %468 = vector.extract_strided_slice %465 {offsets = [0, 0], sizes = [2, 32], strides = [1, 1]} : vector<2x96xf32> to vector<2x32xf32>
    %469 = vector.extract_strided_slice %465 {offsets = [0, 64], sizes = [2, 32], strides = [1, 1]} : vector<2x96xf32> to vector<2x32xf32>
    %470 = arith.mulf %468, %467 : vector<2x32xf32>
    %471 = math.tanh %470 : vector<2x32xf32>
    %472 = arith.mulf %469, %471 : vector<2x32xf32>
    %cst_85 = arith.constant dense<0.000000e+00> : vector<2x32xf32>
    %473 = tpu.matmul %472, %13, %cst_85 {dimension_numbers = #tpu.dot_dimension_numbers<[1], [0], [0], [1], [0, 0, 1, 1], [], []>} : vector<2x32xf32>, vector<32x32xf32>, vector<2x32xf32> -> vector<2x32xf32>
    %cst_86 = arith.constant dense<0.000000e+00> : vector<2x32xf32>
    %474 = tpu.matmul %445, %14, %cst_86 {dimension_numbers = #tpu.dot_dimension_numbers<[1], [0], [0], [1], [0, 0, 1, 1], [], []>} : vector<2x32xf32>, vector<32x32xf32>, vector<2x32xf32> -> vector<2x32xf32>
    %475 = arith.addf %473, %474 : vector<2x32xf32>
    %476 = vector.broadcast %18 : vector<1x32xf32> to vector<2x32xf32>
    %477 = arith.addf %475, %476 : vector<2x32xf32>
    %478 = vector.broadcast %19 : vector<1x32xf32> to vector<2x32xf32>
    %479 = arith.mulf %477, %478 : vector<2x32xf32>
    %cst_87 = arith.constant dense<0.000000e+00> : vector<2xf32>
    %480 = vector.multi_reduction <add>, %479, %cst_87 [1] : vector<2x32xf32> to vector<2xf32>
    %481 = vector.shape_cast %480 : vector<2xf32> to vector<2x1xf32>
    %482 = vector.broadcast %26 : vector<1x1xf32> to vector<2x1xf32>
    %483 = arith.addf %481, %482 : vector<2x1xf32>
    %c0_88 = arith.constant 0 : index
    %c0_89 = arith.constant 0 : index
    %484 = vector.load %arg6[%c0_88, %c0_89] : memref<2x1xf32, #tpu.memory_space<vmem>>, vector<2x1xf32>
    tpu.vector_store %arg6[%c0_88, %c0_89], %483 {strides = array<i32>} : memref<2x1xf32, #tpu.memory_space<vmem>>, vector<2x1xf32>,
    %c0_90 = arith.constant 0 : index
    %c0_91 = arith.constant 0 : index
    %485 = vector.load %arg7[%c0_90, %c0_91] : memref<2x4xf32, #tpu.memory_space<vmem>>, vector<2x4xf32>
    tpu.vector_store %arg7[%c0_90, %c0_91], %390 {strides = array<i32>} : memref<2x4xf32, #tpu.memory_space<vmem>>, vector<2x4xf32>,
    return
  }
}

</mosaic_0001>

<llo_original>
// kernel: tpu_custom_call.1
$region0: #{tpu_custom_call.1}
  #allocation0 [shape = 'u32[]', space=smem, size = 0x4, offset = 0x4, fixed_abs, tag = 'smem constant byte address 0x4 - core index']
  #allocation1 [shape = 'u32[144,128]{1,0:T(1,128)}', space=vmem, size = 0x12000, scoped, tag = 'internal scratch']
  %s0 = inlined_call_operand.vmem [shape: f32[2,8,4], index: 0, kind: input, shape index: {}]
  %s1 = inlined_call_operand.vmem [shape: f32[8,8], index: 1, kind: input, shape index: {}]
  %s2 = inlined_call_operand.vmem [shape: f32[2,1], index: 2, kind: input, shape index: {}]
  %s3 = inlined_call_operand.vmem [shape: f32[44,128], index: 3, kind: input, shape index: {}]
  %s4 = inlined_call_operand.vmem [shape: f32[75,8], index: 4, kind: input, shape index: {}]
  %s5 = inlined_call_operand.vmem [shape: f32[102,32], index: 5, kind: input, shape index: {}]
  %s6 = inlined_call_operand.vmem [shape: f32[2,1], index: 6, kind: output, shape index: {0}]
  %s7 = inlined_call_operand.hbm [shape: f32[2,4], index: 7, kind: output, shape index: {1}]
  %8 = xla_tuple %s6, %s7
  %s9 = sld [smem:[#allocation0]]
  $region42: #{tpu_custom_call.1} parent=0
    _
  %s11 = ssub.s32 1, %s9
  %s12 = scalar_select 0, %s11, %s9
  $region1: #{tpu_custom_call.1} parent=0
    #allocation2 [shape = 'u8[1024]{0}', space=vmem, size = 0x400, scoped, tag = 'output window, operand 1, single buffered']
    #allocation3 [shape = 's32[1]{0}', space=sflag, size = 0x4, scoped, tag = 'scoped memory for tpu_custom_call.1']
    %13 = vsyncpa [#allocation3], 0
    // Predicated region
    $region2: #{tpu_custom_call.1} parent=1 // pred_check
      _
    $region3: #{tpu_custom_call.1} parent=1 // pred_check_branch
      %15 = sbr.rel (0) target = $region5
    $region4: #{tpu_custom_call.1} parent=1 // pred_region
      _
    $region5: #{tpu_custom_call.1} parent=1 // pred_fallthru
      _
    // Predicated region
    $region6: #{tpu_custom_call.1} parent=1 // pred_check
      _
    $region7: #{tpu_custom_call.1} parent=1 // pred_check_branch
      %17 = sbr.rel (0) target = $region9
    $region8: #{tpu_custom_call.1} parent=1 // pred_region
      _
    $region9: #{tpu_custom_call.1} parent=1 // pred_fallthru
      _
    // Predicated region
    $region10: #{tpu_custom_call.1} parent=1 // pred_check
      _
    $region11: #{tpu_custom_call.1} parent=1 // pred_check_branch
      %19 = sbr.rel (0) target = $region13
    $region12: #{tpu_custom_call.1} parent=1 // pred_region
      _
    $region13: #{tpu_custom_call.1} parent=1 // pred_fallthru
      _
    // Predicated region
    $region14: #{tpu_custom_call.1} parent=1 // pred_check
      _
    $region15: #{tpu_custom_call.1} parent=1 // pred_check_branch
      %21 = sbr.rel (0) target = $region17
    $region16: #{tpu_custom_call.1} parent=1 // pred_region
      _
    $region17: #{tpu_custom_call.1} parent=1 // pred_fallthru
      _
    // Predicated region
    $region18: #{tpu_custom_call.1} parent=1 // pred_check
      _
    $region19: #{tpu_custom_call.1} parent=1 // pred_check_branch
      %23 = sbr.rel (0) target = $region21
    $region20: #{tpu_custom_call.1} parent=1 // pred_region
      _
    $region21: #{tpu_custom_call.1} parent=1 // pred_fallthru
      _
    // Predicated region
    $region22: #{tpu_custom_call.1} parent=1 // pred_check
      _
    $region23: #{tpu_custom_call.1} parent=1 // pred_check_branch
      %25 = sbr.rel (0) target = $region25
    $region24: #{tpu_custom_call.1} parent=1 // pred_region
      _
    $region25: #{tpu_custom_call.1} parent=1 // pred_fallthru
      _
    %v26 = vld [vmem:[%s3] sm:$0x7]
    %v27 = vld [vmem:[%s3 + $0x8] sm:$0xff]
    %v28 = vld [vmem:[%s3 + $0x10] sm:$0xff]
    %v29 = vld [vmem:[%s3 + $0x18] sm:$0xff]
    %v30 = vld [vmem:[%s3 + $0x20] sm:$0xff]
    %v31 = vld [vmem:[%s3 + $0x28] sm:$0xf]
    %v32 = vld [vmem:[%s4] sm:$0xff]
    %v33 = vld [vmem:[%s4 + $0x8] sm:$0xff]
    %v34 = vld [vmem:[%s4 + $0x10] sm:$0xff]
    %v35 = vld [vmem:[%s4 + $0x18] sm:$0xff]
    %v36 = vld [vmem:[%s4 + $0x20] sm:$0xff]
    %v37 = vld [vmem:[%s4 + $0x28] sm:$0xff]
    %v38 = vld [vmem:[%s4 + $0x30] sm:$0xff]
    %v39 = vld [vmem:[%s4 + $0x38] sm:$0xff]
    %v40 = vld [vmem:[%s4 + $0x40] sm:$0xff]
    %v41 = vld [vmem:[%s4 + $0x48] sm:$0x7]
    %v42 = vld [vmem:[%s5] sm:$0xff]
    %v43 = vld [vmem:[%s5 + $0x8] sm:$0xff]
    %v44 = vld [vmem:[%s5 + $0x10] sm:$0xff]
    %v45 = vld [vmem:[%s5 + $0x18] sm:$0xff]
    %v46 = vld [vmem:[%s5 + $0x20] sm:$0xff]
    %v47 = vld [vmem:[%s5 + $0x28] sm:$0xff]
    %v48 = vld [vmem:[%s5 + $0x30] sm:$0xff]
    %v49 = vld [vmem:[%s5 + $0x38] sm:$0xff]
    %v50 = vld [vmem:[%s5 + $0x40] sm:$0xff]
    %v51 = vld [vmem:[%s5 + $0x48] sm:$0xff]
    %v52 = vld [vmem:[%s5 + $0x50] sm:$0xff]
    %v53 = vld [vmem:[%s5 + $0x58] sm:$0xff]
    %v54 = vld [vmem:[%s5 + $0x60] sm:$0x3f]
    %v55 = vld [vmem:[%s0] sm:$0xff]
    %v56 = vld [vmem:[%s0 + $0x8] sm:$0xff]
    %v57 = vld [vmem:[%s1] sm:$0xff]
    %v58 = vld [vmem:[%s2] sm:$0x3]
    %v59 = vlaneseq
    %v60 = vshrl.u32 %v59, 7
    %v61 = vsub.s32 0, %v60
    %v62 = vrot.slane %v41, %v61
    %vm63 = vcmask 64512
    %v65 = vsel %vm63, %v57, 0
    %67 = vmatprep.subr.mxu0 0.0
    %68 = vmatpush1.msra.mxu0 0.0
    %69 = vmatprep.subr.mxu0 0.0
    %70 = vmatpush1.msra.mxu0 0.0
    %71 = vmatprep.subr.mxu0 0.0
    %72 = vmatpush1.msra.mxu0 0.0
    %73 = vmatprep.subr.mxu0 0.0
    %74 = vmatpush1.msra.mxu0 0.0
    %75 = vmatprep.subr.mxu0 0.0
    %76 = vmatpush1.msra.mxu0 0.0
    %77 = vmatprep.subr.mxu0 0.0
    %78 = vmatpush1.msra.mxu0 0.0
    %79 = vmatprep.subr.mxu0 0.0
    %80 = vmatpush1.msra.mxu0 0.0
    %81 = vmatprep.subr.mxu0 0.0
    %82 = vmatpush1.msra.mxu0 0.0
    %83 = vmatprep.subr.mxu0 0.0
    %84 = vmatpush1.msra.mxu0 0.0
    %85 = vmatprep.subr.mxu0 0.0
    %86 = vmatpush1.msra.mxu0 0.0
    %87 = vmatprep.subr.mxu0 0.0
    %88 = vmatpush1.msra.mxu0 0.0
    %89 = vmatprep.subr.mxu0 0.0
    %90 = vmatpush1.msra.mxu0 0.0
    %91 = vmatprep.subr.mxu0 0.0
    %92 = vmatpush1.msra.mxu0 0.0
    %93 = vmatprep.subr.mxu0 0.0
    %94 = vmatpush1.msra.mxu0 0.0
    %95 = vmatprep.subr.mxu0 0.0
    %96 = vmatpush1.msra.mxu0 0.0
    %97 = vmatprep.subr.mxu0 0.0
    %98 = vmatpush1.msra.mxu0 %v32
    %99 = vmatprep.subr.mxu0 0.0
    %100 = vmatpush2.msra.mxu0 0.0
    %101 = vmatprep.subr.mxu0 0.0
    %102 = vmatpush2.msra.mxu0 0.0
    %103 = vmatprep.subr.mxu0 0.0
    %104 = vmatpush2.msra.mxu0 0.0
    %105 = vmatprep.subr.mxu0 0.0
    %106 = vmatpush2.msra.mxu0 0.0
    %107 = vmatprep.subr.mxu0 0.0
    %108 = vmatpush2.msra.mxu0 0.0
    %109 = vmatprep.subr.mxu0 0.0
    %110 = vmatpush2.msra.mxu0 0.0
    %111 = vmatprep.subr.mxu0 0.0
    %112 = vmatpush2.msra.mxu0 0.0
    %113 = vmatprep.subr.mxu0 0.0
    %114 = vmatpush2.msra.mxu0 0.0
    %115 = vmatprep.subr.mxu0 0.0
    %116 = vmatpush2.msra.mxu0 0.0
    %117 = vmatprep.subr.mxu0 0.0
    %118 = vmatpush2.msra.mxu0 0.0
    %119 = vmatprep.subr.mxu0 0.0
    %120 = vmatpush2.msra.mxu0 0.0
    %121 = vmatprep.subr.mxu0 0.0
    %122 = vmatpush2.msra.mxu0 0.0
    %123 = vmatprep.subr.mxu0 0.0
    %124 = vmatpush2.msra.mxu0 0.0
    %125 = vmatprep.subr.mxu0 0.0
    %126 = vmatpush2.msra.mxu0 0.0
    %127 = vmatprep.subr.mxu0 0.0
    %128 = vmatpush2.msra.mxu0 0.0
    %129 = vmatprep.subr.mxu0 0.0
    %130 = vmatpush2.msra.mxu0 0.0
    %131 = vmatprep.mubr.f32.mxu0 0.0
    %132 = vmatmul.mubr.f32.gmra.mxu0 %v65
    %v133 = vpop.f32.mrf.mxu0
    %v134 = vadd.f32 %v62, %v133
    %v135 = vpop.f32.mrf.mxu0
    %136 = vdwg.mxu0
    %v138 = vcombine.high %v134, %v134
    %vm140 = vcmask 261120
    %v142 = vsel %vm140, 0.0, 0
    %144 = vmatprep.subr.mxu0 0.0
    %145 = vmatpush1.msra.mxu0 0.0
    %146 = vmatprep.subr.mxu0 0.0
    %147 = vmatpush1.msra.mxu0 0.0
    %148 = vmatprep.subr.mxu0 0.0
    %149 = vmatpush1.msra.mxu0 0.0
    %150 = vmatprep.subr.mxu0 0.0
    %151 = vmatpush1.msra.mxu0 0.0
    %152 = vmatprep.subr.mxu0 0.0
    %153 = vmatpush1.msra.mxu0 0.0
    %154 = vmatprep.subr.mxu0 0.0
    %155 = vmatpush1.msra.mxu0 0.0
    %156 = vmatprep.subr.mxu0 0.0
    %157 = vmatpush1.msra.mxu0 0.0
    %158 = vmatprep.subr.mxu0 0.0
    %159 = vmatpush1.msra.mxu0 0.0
    %160 = vmatprep.subr.mxu0 0.0
    %161 = vmatpush1.msra.mxu0 0.0
    %162 = vmatprep.subr.mxu0 0.0
    %163 = vmatpush1.msra.mxu0 0.0
    %164 = vmatprep.subr.mxu0 0.0
    %165 = vmatpush1.msra.mxu0 0.0
    %166 = vmatprep.subr.mxu0 0.0
    %167 = vmatpush1.msra.mxu0 0.0
    %168 = vmatprep.subr.mxu0 0.0
    %169 = vmatpush1.msra.mxu0 %v40
    %170 = vmatprep.subr.mxu0 0.0
    %171 = vmatpush1.msra.mxu0 %v39
    %172 = vmatprep.subr.mxu0 0.0
    %173 = vmatpush1.msra.mxu0 %v38
    %174 = vmatprep.subr.mxu0 0.0
    %175 = vmatpush1.msra.mxu0 %v37
    %176 = vmatprep.subr.mxu0 0.0
    %177 = vmatpush2.msra.mxu0 0.0
    %178 = vmatprep.subr.mxu0 0.0
    %179 = vmatpush2.msra.mxu0 0.0
    %180 = vmatprep.subr.mxu0 0.0
    %181 = vmatpush2.msra.mxu0 0.0
    %182 = vmatprep.subr.mxu0 0.0
    %183 = vmatpush2.msra.mxu0 0.0
    %184 = vmatprep.subr.mxu0 0.0
    %185 = vmatpush2.msra.mxu0 0.0
    %186 = vmatprep.subr.mxu0 0.0
    %187 = vmatpush2.msra.mxu0 0.0
    %188 = vmatprep.subr.mxu0 0.0
    %189 = vmatpush2.msra.mxu0 0.0
    %190 = vmatprep.subr.mxu0 0.0
    %191 = vmatpush2.msra.mxu0 0.0
    %192 = vmatprep.subr.mxu0 0.0
    %193 = vmatpush2.msra.mxu0 0.0
    %194 = vmatprep.subr.mxu0 0.0
    %195 = vmatpush2.msra.mxu0 0.0
    %196 = vmatprep.subr.mxu0 0.0
    %197 = vmatpush2.msra.mxu0 0.0
    %198 = vmatprep.subr.mxu0 0.0
    %199 = vmatpush2.msra.mxu0 0.0
    %200 = vmatprep.subr.mxu0 0.0
    %201 = vmatpush2.msra.mxu0 0.0
    %202 = vmatprep.subr.mxu0 0.0
    %203 = vmatpush2.msra.mxu0 0.0
    %204 = vmatprep.subr.mxu0 0.0
    %205 = vmatpush2.msra.mxu0 0.0
    %206 = vmatprep.subr.mxu0 0.0
    %207 = vmatpush2.msra.mxu0 0.0
    %208 = vmatprep.mubr.f32.mxu0 0.0
    %209 = vmatmul.mubr.f32.gmra.mxu0 %v142
    %v210 = vpop.f32.mrf.mxu0
    %v211 = vadd.f32 0.0, %v210
    %v212 = vpop.f32.mrf.mxu0
    %213 = vdwg.mxu0
    %214 = vmatprep.subr.mxu0 0.0
    %215 = vmatpush1.msra.mxu0 0.0
    %216 = vmatprep.subr.mxu0 0.0
    %217 = vmatpush1.msra.mxu0 0.0
    %218 = vmatprep.subr.mxu0 0.0
    %219 = vmatpush1.msra.mxu0 0.0
    %220 = vmatprep.subr.mxu0 0.0
    %221 = vmatpush1.msra.mxu0 0.0
    %222 = vmatprep.subr.mxu0 0.0
    %223 = vmatpush1.msra.mxu0 0.0
    %224 = vmatprep.subr.mxu0 0.0
    %225 = vmatpush1.msra.mxu0 0.0
    %226 = vmatprep.subr.mxu0 0.0
    %227 = vmatpush1.msra.mxu0 0.0
    %228 = vmatprep.subr.mxu0 0.0
    %229 = vmatpush1.msra.mxu0 0.0
    %230 = vmatprep.subr.mxu0 0.0
    %231 = vmatpush1.msra.mxu0 0.0
    %232 = vmatprep.subr.mxu0 0.0
    %233 = vmatpush1.msra.mxu0 0.0
    %234 = vmatprep.subr.mxu0 0.0
    %235 = vmatpush1.msra.mxu0 0.0
    %236 = vmatprep.subr.mxu0 0.0
    %237 = vmatpush1.msra.mxu0 0.0
    %238 = vmatprep.subr.mxu0 0.0
    %239 = vmatpush1.msra.mxu0 %v36
    %240 = vmatprep.subr.mxu0 0.0
    %241 = vmatpush1.msra.mxu0 %v35
    %242 = vmatprep.subr.mxu0 0.0
    %243 = vmatpush1.msra.mxu0 %v34
    %244 = vmatprep.subr.mxu0 0.0
    %245 = vmatpush1.msra.mxu0 %v33
    %246 = vmatprep.subr.mxu0 0.0
    %247 = vmatpush2.msra.mxu0 0.0
    %248 = vmatprep.subr.mxu0 0.0
    %249 = vmatpush2.msra.mxu0 0.0
    %250 = vmatprep.subr.mxu0 0.0
    %251 = vmatpush2.msra.mxu0 0.0
    %252 = vmatprep.subr.mxu0 0.0
    %253 = vmatpush2.msra.mxu0 0.0
    %254 = vmatprep.subr.mxu0 0.0
    %255 = vmatpush2.msra.mxu0 0.0
    %256 = vmatprep.subr.mxu0 0.0
    %257 = vmatpush2.msra.mxu0 0.0
    %258 = vmatprep.subr.mxu0 0.0
    %259 = vmatpush2.msra.mxu0 0.0
    %260 = vmatprep.subr.mxu0 0.0
    %261 = vmatpush2.msra.mxu0 0.0
    %262 = vmatprep.subr.mxu0 0.0
    %263 = vmatpush2.msra.mxu0 0.0
    %264 = vmatprep.subr.mxu0 0.0
    %265 = vmatpush2.msra.mxu0 0.0
    %266 = vmatprep.subr.mxu0 0.0
    %267 = vmatpush2.msra.mxu0 0.0
    %268 = vmatprep.subr.mxu0 0.0
    %269 = vmatpush2.msra.mxu0 0.0
    %270 = vmatprep.subr.mxu0 0.0
    %271 = vmatpush2.msra.mxu0 0.0
    %272 = vmatprep.subr.mxu0 0.0
    %273 = vmatpush2.msra.mxu0 0.0
    %274 = vmatprep.subr.mxu0 0.0
    %275 = vmatpush2.msra.mxu0 0.0
    %276 = vmatprep.subr.mxu0 0.0
    %277 = vmatpush2.msra.mxu0 0.0
    %278 = vmatprep.mubr.f32.mxu0 0.0
    %279 = vmatmul.mubr.f32.gmra.mxu0 %v142
    %v280 = vpop.f32.mrf.mxu0
    %v281 = vadd.f32 %v211, %v280
    %v282 = vpop.f32.mrf.mxu0
    %283 = vdwg.mxu0
    %v284 = vlaneseq
    %v285 = vshrl.u32 %v284, 7
    %v286 = vsub.s32 1, %v285
    %v287 = vrot.slane %v41, %v286
    %v288 = vadd.f32 %v281, %v287
    %v291 = vunpack.c.l.s4 1966171168
    %v292 = vunpack.c.0.s8 %v291
    %v293 = vlaneseq
    %v294 = vshrl.u32 %v293, 7
    %v295 = vsub.s32 %v292, %v294
    %v296 = vrot.slane %v288, %v295
    %v297 = vcombine.high %v296, %v296
    %v299 = vunpack.c.l.s4 1966171168
    %v300 = vunpack.c.0.s8 %v299
    %v301 = vlaneseq
    %v302 = vshrl.u32 %v301, 7
    %v303 = vsub.s32 %v300, %v302
    %v304 = vrot.slane %v296, %v303
    %v306 = vunpack.c.l.s4 1966171168
    %v307 = vunpack.c.0.s8 %v306
    %v308 = vlaneseq
    %v309 = vshrl.u32 %v308, 7
    %v310 = vsub.s32 %v307, %v309
    %v311 = vrot.slane %v297, %v310
    %v312 = vlaneseq
    %v313 = vshrl.u32 %v312, 7
    %v314 = vsub.s32 0, %v313
    %v315 = vrot.slane %v304, %v314
    %v316 = vlaneseq
    %v317 = vshrl.u32 %v316, 7
    %v318 = vsub.s32 0, %v317
    %v319 = vrot.slane %v311, %v318
    %v322 = vadd.f32 %v315, %v134
    %v323 = vadd.f32 %v319, %v138
    %v324 = vtanh.pop %v322
    %v325 = vtanh.pop %v323
    %v326 = vlaneseq
    %v327 = vshrl.u32 %v326, 7
    %v328 = vsub.s32 2, %v327
    %v329 = vrot.slane %v41, %v328
    %v330 = vmul.f32 %v324, %v329
    %v331 = vmul.f32 %v325, %v329
    %vm332 = vcmask 60416
    %v333 = vsel %vm332, %v330, 0.0
    %334 = vadd.xlane.f32.xlu0 %v333
    %v335 = vpop.xlane.xlu0 %334
    %v336 = vsel %vm332, %v331, 0.0
    %337 = vadd.xlane.f32.xlu0 %v336
    %v338 = vpop.xlane.xlu0 %337
    %v340 = vrot.slane %v54, 5
    %341 = vrot.lane.b32.xlu0 %v340, 126
    %v342 = vpop.permute.xlu0 %341
    %s343 = vtos %v342
    %v344 = vstv %s343
    %v346 = vadd.f32 %v335, %v344
    %v347 = vadd.f32 %v338, %v344
    %v350 = vlaneseq
    %v351 = vand.u32 %v350, 127
    %v352 = vlaneseq
    %v353 = vshrl.u32 %v352, 7
    %v354 = vsub.s32 %v351, %v353
    %v355 = vrot.slane %v346, %v354
    %v356 = vlaneseq
    %v357 = vshrl.u32 %v356, 7
    %v358 = vsub.s32 %v351, %v357
    %v359 = vrot.slane %v347, %v358
    %vm360 = vcmask 1041409
    %v361 = vsel %vm360, %v359, %v355
    %vm363 = vcmask 25600
    %v364 = vsel %vm363, %v361, -inf
    %365 = vmax.xlane.f32.xlu0 %v364
    %v366 = vpop.xlane.xlu0 %365
    %v368 = vlaneseq
    %v369 = vshrl.u32 %v368, 7
    %v370 = vsub.s32 0, %v369
    %v371 = vrot.slane %v366, %v370
    %v372 = vlaneseq
    %v373 = vshrl.u32 %v372, 7
    %v374 = vsub.s32 1, %v373
    %v375 = vrot.slane %v366, %v374
    %v378 = vsub.f32 %v346, %v371
    %v379 = vsub.f32 %v347, %v375
    %v380 = vmul.f32 %v378, 1.442695
    %v381 = vpow.pop %v380
    %v382 = vmul.f32 %v379, 1.442695
    %v383 = vpow.pop %v382
    %386 = vset.pattern.permute.xlu0 0
    %387 = vperm.xlu0 %386, %v381
    %v388 = vpop.permute.xlu0 %387
    %389 = vset.pattern.permute.xlu0 0
    %390 = vperm.xlu0 %389, %v383
    %v391 = vpop.permute.xlu0 %390
    %v392 = vlaneseq
    %v393 = vshrl.u32 %v392, 7
    %v394 = vsub.s32 %v351, %v393
    %v395 = vrot.slane %v388, %v394
    %v396 = vlaneseq
    %v397 = vshrl.u32 %v396, 7
    %v398 = vsub.s32 %v351, %v397
    %v399 = vrot.slane %v391, %v398
    %v400 = vsel %vm360, %v399, %v395
    %v402 = vsel %vm363, %v400, 0.0
    %403 = vadd.xlane.f32.xlu0 %v402
    %v404 = vpop.xlane.xlu0 %403
    %v406 = vlaneseq
    %v407 = vshrl.u32 %v406, 7
    %v408 = vsub.s32 0, %v407
    %v409 = vrot.slane %v404, %v408
    %v410 = vlaneseq
    %v411 = vshrl.u32 %v410, 7
    %v412 = vsub.s32 1, %v411
    %v413 = vrot.slane %v404, %v412
    %v416 = vrcp.pop %v409
    %v417 = vmul.f32 %v381, %v416
    %v418 = vrcp.pop %v413
    %v419 = vmul.f32 %v383, %v418
    %v422 = vlaneseq
    %v423 = vshrl.u32 %v422, 7
    %v424 = vsub.s32 0, %v423
    %v425 = vrot.slane %v55, %v424
    %427 = vbcast.lane.b32.xlu0 %v425, 256
    %v428 = vpop.permute.xlu0 %427
    %v429 = vlaneseq
    %v430 = vshrl.u32 %v429, 7
    %v431 = vsub.s32 0, %v430
    %v432 = vrot.slane %v56, %v431
    %434 = vbcast.lane.b32.xlu0 %v432, 256
    %v435 = vpop.permute.xlu0 %434
    %v438 = vmul.f32 %v417, %v428
    %v439 = vmul.f32 %v419, %v435
    %442 = vset.pattern.permute.xlu0 0
    %443 = vperm.xlu0 %442, %v438
    %v444 = vpop.permute.xlu0 %443
    %445 = vset.pattern.permute.xlu0 0
    %446 = vperm.xlu0 %445, %v439
    %v447 = vpop.permute.xlu0 %446
    %v448 = vlaneseq
    %v449 = vshrl.u32 %v448, 7
    %v450 = vsub.s32 %v351, %v449
    %v451 = vrot.slane %v444, %v450
    %v452 = vlaneseq
    %v453 = vshrl.u32 %v452, 7
    %v454 = vsub.s32 %v351, %v453
    %v455 = vrot.slane %v447, %v454
    %v456 = vsel %vm360, %v455, %v451
    %vm458 = vcmask 31744
    %v459 = vsel %vm458, %v456, 0.0
    %v460 = vlaneseq
    %v461 = vshrl.u32 %v460, 7
    %v462 = vsub.s32 0, %v461
    %v463 = vrot.slane %v26, %v462
    %vm464 = vcmask 293888
    %v466 = vsel %vm464, %v459, 0
    %vm468 = vcmask 1043456
    %v470 = vsel %vm468, %v31, 0
    %472 = vmatprep.subr.mxu0 0.0
    %473 = vmatpush1.msra.mxu0 0.0
    %474 = vmatprep.subr.mxu0 0.0
    %475 = vmatpush1.msra.mxu0 0.0
    %476 = vmatprep.subr.mxu0 0.0
    %477 = vmatpush1.msra.mxu0 0.0
    %478 = vmatprep.subr.mxu0 0.0
    %479 = vmatpush1.msra.mxu0 0.0
    %480 = vmatprep.subr.mxu0 0.0
    %481 = vmatpush1.msra.mxu0 0.0
    %482 = vmatprep.subr.mxu0 0.0
    %483 = vmatpush1.msra.mxu0 0.0
    %484 = vmatprep.subr.mxu0 0.0
    %485 = vmatpush1.msra.mxu0 0.0
    %486 = vmatprep.subr.mxu0 0.0
    %487 = vmatpush1.msra.mxu0 0.0
    %488 = vmatprep.subr.mxu0 0.0
    %489 = vmatpush1.msra.mxu0 0.0
    %490 = vmatprep.subr.mxu0 0.0
    %491 = vmatpush1.msra.mxu0 0.0
    %492 = vmatprep.subr.mxu0 0.0
    %493 = vmatpush1.msra.mxu0 0.0
    %494 = vmatprep.subr.mxu0 0.0
    %495 = vmatpush1.msra.mxu0 %v470
    %496 = vmatprep.subr.mxu0 0.0
    %497 = vmatpush1.msra.mxu0 %v30
    %498 = vmatprep.subr.mxu0 0.0
    %499 = vmatpush1.msra.mxu0 %v29
    %500 = vmatprep.subr.mxu0 0.0
    %501 = vmatpush1.msra.mxu0 %v28
    %502 = vmatprep.subr.mxu0 0.0
    %503 = vmatpush1.msra.mxu0 %v27
    %504 = vmatprep.subr.mxu0 0.0
    %505 = vmatpush2.msra.mxu0 0.0
    %506 = vmatprep.subr.mxu0 0.0
    %507 = vmatpush2.msra.mxu0 0.0
    %508 = vmatprep.subr.mxu0 0.0
    %509 = vmatpush2.msra.mxu0 0.0
    %510 = vmatprep.subr.mxu0 0.0
    %511 = vmatpush2.msra.mxu0 0.0
    %512 = vmatprep.subr.mxu0 0.0
    %513 = vmatpush2.msra.mxu0 0.0
    %514 = vmatprep.subr.mxu0 0.0
    %515 = vmatpush2.msra.mxu0 0.0
    %516 = vmatprep.subr.mxu0 0.0
    %517 = vmatpush2.msra.mxu0 0.0
    %518 = vmatprep.subr.mxu0 0.0
    %519 = vmatpush2.msra.mxu0 0.0
    %520 = vmatprep.subr.mxu0 0.0
    %521 = vmatpush2.msra.mxu0 0.0
    %522 = vmatprep.subr.mxu0 0.0
    %523 = vmatpush2.msra.mxu0 0.0
    %524 = vmatprep.subr.mxu0 0.0
    %525 = vmatpush2.msra.mxu0 0.0
    %526 = vmatprep.subr.mxu0 0.0
    %527 = vmatpush2.msra.mxu0 0.0
    %528 = vmatprep.subr.mxu0 0.0
    %529 = vmatpush2.msra.mxu0 0.0
    %530 = vmatprep.subr.mxu0 0.0
    %531 = vmatpush2.msra.mxu0 0.0
    %532 = vmatprep.subr.mxu0 0.0
    %533 = vmatpush2.msra.mxu0 0.0
    %534 = vmatprep.subr.mxu0 0.0
    %535 = vmatpush2.msra.mxu0 0.0
    %536 = vmatprep.mubr.f32.mxu0 0.0
    %537 = vmatmul.mubr.f32.gmra.mxu0 %v466
    %v538 = vpop.f32.mrf.mxu0
    %v539 = vadd.f32 %v463, %v538
    %v540 = vpop.f32.mrf.mxu0
    %541 = vdwg.mxu0
    %v542 = vxor.u32 %v539, 2147483648
    %v543 = vmul.f32 %v542, 1.442695
    %v544 = vpow.pop %v543
    %v545 = vadd.f32 %v544, 1.0
    %v546 = vrcp.pop %v545
    %v547 = vmul.f32 1.0, %v546
    %v548 = vtanh.pop %v539
    %v549 = vmul.f32 %v547, 0.0
    %551 = vrot.lane.b32.xlu0 %v548, 32
    %v552 = vpop.permute.xlu0 %551
    %v554 = vmul.f32 %v547, %v552
    %556 = vrot.lane.b32.xlu0 %v554, 32
    %v557 = vpop.permute.xlu0 %556
    %v559 = vadd.f32 %v549, %v557
    %v560 = vtanh.pop %v559
    %562 = vrot.lane.b32.xlu0 %v560, 32
    %v563 = vpop.permute.xlu0 %562
    %v565 = vmul.f32 %v547, %v563
    %567 = vrot.lane.b32.xlu0 %v559, 96
    %v568 = vpop.permute.xlu0 %567
    %v569 = vsel %vm140, %v568, 0
    %571 = vmatprep.subr.mxu0 0.0
    %572 = vmatpush1.msra.mxu0 0.0
    %573 = vmatprep.subr.mxu0 0.0
    %574 = vmatpush1.msra.mxu0 0.0
    %575 = vmatprep.subr.mxu0 0.0
    %576 = vmatpush1.msra.mxu0 0.0
    %577 = vmatprep.subr.mxu0 0.0
    %578 = vmatpush1.msra.mxu0 0.0
    %579 = vmatprep.subr.mxu0 0.0
    %580 = vmatpush1.msra.mxu0 0.0
    %581 = vmatprep.subr.mxu0 0.0
    %582 = vmatpush1.msra.mxu0 0.0
    %583 = vmatprep.subr.mxu0 0.0
    %584 = vmatpush1.msra.mxu0 0.0
    %585 = vmatprep.subr.mxu0 0.0
    %586 = vmatpush1.msra.mxu0 0.0
    %587 = vmatprep.subr.mxu0 0.0
    %588 = vmatpush1.msra.mxu0 0.0
    %589 = vmatprep.subr.mxu0 0.0
    %590 = vmatpush1.msra.mxu0 0.0
    %591 = vmatprep.subr.mxu0 0.0
    %592 = vmatpush1.msra.mxu0 0.0
    %593 = vmatprep.subr.mxu0 0.0
    %594 = vmatpush1.msra.mxu0 0.0
    %595 = vmatprep.subr.mxu0 0.0
    %596 = vmatpush1.msra.mxu0 %v40
    %597 = vmatprep.subr.mxu0 0.0
    %598 = vmatpush1.msra.mxu0 %v39
    %599 = vmatprep.subr.mxu0 0.0
    %600 = vmatpush1.msra.mxu0 %v38
    %601 = vmatprep.subr.mxu0 0.0
    %602 = vmatpush1.msra.mxu0 %v37
    %603 = vmatprep.subr.mxu0 0.0
    %604 = vmatpush2.msra.mxu0 0.0
    %605 = vmatprep.subr.mxu0 0.0
    %606 = vmatpush2.msra.mxu0 0.0
    %607 = vmatprep.subr.mxu0 0.0
    %608 = vmatpush2.msra.mxu0 0.0
    %609 = vmatprep.subr.mxu0 0.0
    %610 = vmatpush2.msra.mxu0 0.0
    %611 = vmatprep.subr.mxu0 0.0
    %612 = vmatpush2.msra.mxu0 0.0
    %613 = vmatprep.subr.mxu0 0.0
    %614 = vmatpush2.msra.mxu0 0.0
    %615 = vmatprep.subr.mxu0 0.0
    %616 = vmatpush2.msra.mxu0 0.0
    %617 = vmatprep.subr.mxu0 0.0
    %618 = vmatpush2.msra.mxu0 0.0
    %619 = vmatprep.subr.mxu0 0.0
    %620 = vmatpush2.msra.mxu0 0.0
    %621 = vmatprep.subr.mxu0 0.0
    %622 = vmatpush2.msra.mxu0 0.0
    %623 = vmatprep.subr.mxu0 0.0
    %624 = vmatpush2.msra.mxu0 0.0
    %625 = vmatprep.subr.mxu0 0.0
    %626 = vmatpush2.msra.mxu0 0.0
    %627 = vmatprep.subr.mxu0 0.0
    %628 = vmatpush2.msra.mxu0 0.0
    %629 = vmatprep.subr.mxu0 0.0
    %630 = vmatpush2.msra.mxu0 0.0
    %631 = vmatprep.subr.mxu0 0.0
    %632 = vmatpush2.msra.mxu0 0.0
    %633 = vmatprep.subr.mxu0 0.0
    %634 = vmatpush2.msra.mxu0 0.0
    %635 = vmatprep.mubr.f32.mxu0 0.0
    %636 = vmatmul.mubr.f32.gmra.mxu0 %v569
    %v637 = vpop.f32.mrf.mxu0
    %v638 = vadd.f32 0.0, %v637
    %v639 = vpop.f32.mrf.mxu0
    %640 = vdwg.mxu0
    %642 = vrot.lane.b32.xlu0 %v565, 64
    %v643 = vpop.permute.xlu0 %642
    %v644 = vsel %vm140, %v643, 0
    %646 = vmatprep.subr.mxu0 0.0
    %647 = vmatpush1.msra.mxu0 0.0
    %648 = vmatprep.subr.mxu0 0.0
    %649 = vmatpush1.msra.mxu0 0.0
    %650 = vmatprep.subr.mxu0 0.0
    %651 = vmatpush1.msra.mxu0 0.0
    %652 = vmatprep.subr.mxu0 0.0
    %653 = vmatpush1.msra.mxu0 0.0
    %654 = vmatprep.subr.mxu0 0.0
    %655 = vmatpush1.msra.mxu0 0.0
    %656 = vmatprep.subr.mxu0 0.0
    %657 = vmatpush1.msra.mxu0 0.0
    %658 = vmatprep.subr.mxu0 0.0
    %659 = vmatpush1.msra.mxu0 0.0
    %660 = vmatprep.subr.mxu0 0.0
    %661 = vmatpush1.msra.mxu0 0.0
    %662 = vmatprep.subr.mxu0 0.0
    %663 = vmatpush1.msra.mxu0 0.0
    %664 = vmatprep.subr.mxu0 0.0
    %665 = vmatpush1.msra.mxu0 0.0
    %666 = vmatprep.subr.mxu0 0.0
    %667 = vmatpush1.msra.mxu0 0.0
    %668 = vmatprep.subr.mxu0 0.0
    %669 = vmatpush1.msra.mxu0 0.0
    %670 = vmatprep.subr.mxu0 0.0
    %671 = vmatpush1.msra.mxu0 %v36
    %672 = vmatprep.subr.mxu0 0.0
    %673 = vmatpush1.msra.mxu0 %v35
    %674 = vmatprep.subr.mxu0 0.0
    %675 = vmatpush1.msra.mxu0 %v34
    %676 = vmatprep.subr.mxu0 0.0
    %677 = vmatpush1.msra.mxu0 %v33
    %678 = vmatprep.subr.mxu0 0.0
    %679 = vmatpush2.msra.mxu0 0.0
    %680 = vmatprep.subr.mxu0 0.0
    %681 = vmatpush2.msra.mxu0 0.0
    %682 = vmatprep.subr.mxu0 0.0
    %683 = vmatpush2.msra.mxu0 0.0
    %684 = vmatprep.subr.mxu0 0.0
    %685 = vmatpush2.msra.mxu0 0.0
    %686 = vmatprep.subr.mxu0 0.0
    %687 = vmatpush2.msra.mxu0 0.0
    %688 = vmatprep.subr.mxu0 0.0
    %689 = vmatpush2.msra.mxu0 0.0
    %690 = vmatprep.subr.mxu0 0.0
    %691 = vmatpush2.msra.mxu0 0.0
    %692 = vmatprep.subr.mxu0 0.0
    %693 = vmatpush2.msra.mxu0 0.0
    %694 = vmatprep.subr.mxu0 0.0
    %695 = vmatpush2.msra.mxu0 0.0
    %696 = vmatprep.subr.mxu0 0.0
    %697 = vmatpush2.msra.mxu0 0.0
    %698 = vmatprep.subr.mxu0 0.0
    %699 = vmatpush2.msra.mxu0 0.0
    %700 = vmatprep.subr.mxu0 0.0
    %701 = vmatpush2.msra.mxu0 0.0
    %702 = vmatprep.subr.mxu0 0.0
    %703 = vmatpush2.msra.mxu0 0.0
    %704 = vmatprep.subr.mxu0 0.0
    %705 = vmatpush2.msra.mxu0 0.0
    %706 = vmatprep.subr.mxu0 0.0
    %707 = vmatpush2.msra.mxu0 0.0
    %708 = vmatprep.subr.mxu0 0.0
    %709 = vmatpush2.msra.mxu0 0.0
    %710 = vmatprep.mubr.f32.mxu0 0.0
    %711 = vmatmul.mubr.f32.gmra.mxu0 %v644
    %v712 = vpop.f32.mrf.mxu0
    %v713 = vadd.f32 %v638, %v712
    %v714 = vpop.f32.mrf.mxu0
    %715 = vdwg.mxu0
    %v716 = vadd.f32 %v713, %v287
    %v719 = vunpack.c.l.s4 1966171168
    %v720 = vunpack.c.0.s8 %v719
    %v721 = vlaneseq
    %v722 = vshrl.u32 %v721, 7
    %v723 = vsub.s32 %v720, %v722
    %v724 = vrot.slane %v716, %v723
    %v725 = vcombine.high %v724, %v724
    %v727 = vunpack.c.l.s4 1966171168
    %v728 = vunpack.c.0.s8 %v727
    %v729 = vlaneseq
    %v730 = vshrl.u32 %v729, 7
    %v731 = vsub.s32 %v728, %v730
    %v732 = vrot.slane %v724, %v731
    %v734 = vunpack.c.l.s4 1966171168
    %v735 = vunpack.c.0.s8 %v734
    %v736 = vlaneseq
    %v737 = vshrl.u32 %v736, 7
    %v738 = vsub.s32 %v735, %v737
    %v739 = vrot.slane %v725, %v738
    %v740 = vlaneseq
    %v741 = vshrl.u32 %v740, 7
    %v742 = vsub.s32 0, %v741
    %v743 = vrot.slane %v732, %v742
    %v744 = vlaneseq
    %v745 = vshrl.u32 %v744, 7
    %v746 = vsub.s32 0, %v745
    %v747 = vrot.slane %v739, %v746
    %v750 = vadd.f32 %v743, %v134
    %v751 = vadd.f32 %v747, %v138
    %v752 = vtanh.pop %v750
    %v753 = vtanh.pop %v751
    %v754 = vmul.f32 %v752, %v329
    %v755 = vmul.f32 %v753, %v329
    %v756 = vsel %vm332, %v754, 0.0
    %757 = vadd.xlane.f32.xlu0 %v756
    %v758 = vpop.xlane.xlu0 %757
    %v759 = vsel %vm332, %v755, 0.0
    %760 = vadd.xlane.f32.xlu0 %v759
    %v761 = vpop.xlane.xlu0 %760
    %v762 = vadd.f32 %v758, %v344
    %v763 = vadd.f32 %v761, %v344
    %v766 = vlaneseq
    %v767 = vshrl.u32 %v766, 7
    %v768 = vsub.s32 %v351, %v767
    %v769 = vrot.slane %v762, %v768
    %v770 = vlaneseq
    %v771 = vshrl.u32 %v770, 7
    %v772 = vsub.s32 %v351, %v771
    %v773 = vrot.slane %v763, %v772
    %v774 = vsel %vm360, %v773, %v769
    %v776 = vsel %vm363, %v774, -inf
    %777 = vmax.xlane.f32.xlu0 %v776
    %v778 = vpop.xlane.xlu0 %777
    %v780 = vlaneseq
    %v781 = vshrl.u32 %v780, 7
    %v782 = vsub.s32 0, %v781
    %v783 = vrot.slane %v778, %v782
    %v784 = vlaneseq
    %v785 = vshrl.u32 %v784, 7
    %v786 = vsub.s32 1, %v785
    %v787 = vrot.slane %v778, %v786
    %v790 = vsub.f32 %v762, %v783
    %v791 = vsub.f32 %v763, %v787
    %v792 = vmul.f32 %v790, 1.442695
    %v793 = vpow.pop %v792
    %v794 = vmul.f32 %v791, 1.442695
    %v795 = vpow.pop %v794
    %798 = vset.pattern.permute.xlu0 0
    %799 = vperm.xlu0 %798, %v793
    %v800 = vpop.permute.xlu0 %799
    %801 = vset.pattern.permute.xlu0 0
    %802 = vperm.xlu0 %801, %v795
    %v803 = vpop.permute.xlu0 %802
    %v804 = vlaneseq
    %v805 = vshrl.u32 %v804, 7
    %v806 = vsub.s32 %v351, %v805
    %v807 = vrot.slane %v800, %v806
    %v808 = vlaneseq
    %v809 = vshrl.u32 %v808, 7
    %v810 = vsub.s32 %v351, %v809
    %v811 = vrot.slane %v803, %v810
    %v812 = vsel %vm360, %v811, %v807
    %v814 = vsel %vm363, %v812, 0.0
    %815 = vadd.xlane.f32.xlu0 %v814
    %v816 = vpop.xlane.xlu0 %815
    %v818 = vlaneseq
    %v819 = vshrl.u32 %v818, 7
    %v820 = vsub.s32 0, %v819
    %v821 = vrot.slane %v816, %v820
    %v822 = vlaneseq
    %v823 = vshrl.u32 %v822, 7
    %v824 = vsub.s32 1, %v823
    %v825 = vrot.slane %v816, %v824
    %v828 = vrcp.pop %v821
    %v829 = vmul.f32 %v793, %v828
    %v830 = vrcp.pop %v825
    %v831 = vmul.f32 %v795, %v830
    %v832 = vlaneseq
    %v833 = vshrl.u32 %v832, 7
    %v834 = vsub.s32 1, %v833
    %v835 = vrot.slane %v55, %v834
    %837 = vbcast.lane.b32.xlu0 %v835, 256
    %v838 = vpop.permute.xlu0 %837
    %v839 = vlaneseq
    %v840 = vshrl.u32 %v839, 7
    %v841 = vsub.s32 1, %v840
    %v842 = vrot.slane %v56, %v841
    %844 = vbcast.lane.b32.xlu0 %v842, 256
    %v845 = vpop.permute.xlu0 %844
    %v848 = vmul.f32 %v829, %v838
    %v849 = vmul.f32 %v831, %v845
    %852 = vset.pattern.permute.xlu0 0
    %853 = vperm.xlu0 %852, %v848
    %v854 = vpop.permute.xlu0 %853
    %855 = vset.pattern.permute.xlu0 0
    %856 = vperm.xlu0 %855, %v849
    %v857 = vpop.permute.xlu0 %856
    %v858 = vlaneseq
    %v859 = vshrl.u32 %v858, 7
    %v860 = vsub.s32 %v351, %v859
    %v861 = vrot.slane %v854, %v860
    %v862 = vlaneseq
    %v863 = vshrl.u32 %v862, 7
    %v864 = vsub.s32 %v351, %v863
    %v865 = vrot.slane %v857, %v864
    %v866 = vsel %vm360, %v865, %v861
    %868 = vrot.lane.b32.xlu0 %v565, 68
    %v869 = vpop.permute.xlu0 %868
    %v871 = vsel %vm458, %v866, %v869
    %v873 = vsel %vm464, %v871, 0
    %875 = vmatprep.subr.mxu0 0.0
    %876 = vmatpush1.msra.mxu0 0.0
    %877 = vmatprep.subr.mxu0 0.0
    %878 = vmatpush1.msra.mxu0 0.0
    %879 = vmatprep.subr.mxu0 0.0
    %880 = vmatpush1.msra.mxu0 0.0
    %881 = vmatprep.subr.mxu0 0.0
    %882 = vmatpush1.msra.mxu0 0.0
    %883 = vmatprep.subr.mxu0 0.0
    %884 = vmatpush1.msra.mxu0 0.0
    %885 = vmatprep.subr.mxu0 0.0
    %886 = vmatpush1.msra.mxu0 0.0
    %887 = vmatprep.subr.mxu0 0.0
    %888 = vmatpush1.msra.mxu0 0.0
    %889 = vmatprep.subr.mxu0 0.0
    %890 = vmatpush1.msra.mxu0 0.0
    %891 = vmatprep.subr.mxu0 0.0
    %892 = vmatpush1.msra.mxu0 0.0
    %893 = vmatprep.subr.mxu0 0.0
    %894 = vmatpush1.msra.mxu0 0.0
    %895 = vmatprep.subr.mxu0 0.0
    %896 = vmatpush1.msra.mxu0 0.0
    %897 = vmatprep.subr.mxu0 0.0
    %898 = vmatpush1.msra.mxu0 %v470
    %899 = vmatprep.subr.mxu0 0.0
    %900 = vmatpush1.msra.mxu0 %v30
    %901 = vmatprep.subr.mxu0 0.0
    %902 = vmatpush1.msra.mxu0 %v29
    %903 = vmatprep.subr.mxu0 0.0
    %904 = vmatpush1.msra.mxu0 %v28
    %905 = vmatprep.subr.mxu0 0.0
    %906 = vmatpush1.msra.mxu0 %v27
    %907 = vmatprep.subr.mxu0 0.0
    %908 = vmatpush2.msra.mxu0 0.0
    %909 = vmatprep.subr.mxu0 0.0
    %910 = vmatpush2.msra.mxu0 0.0
    %911 = vmatprep.subr.mxu0 0.0
    %912 = vmatpush2.msra.mxu0 0.0
    %913 = vmatprep.subr.mxu0 0.0
    %914 = vmatpush2.msra.mxu0 0.0
    %915 = vmatprep.subr.mxu0 0.0
    %916 = vmatpush2.msra.mxu0 0.0
    %917 = vmatprep.subr.mxu0 0.0
    %918 = vmatpush2.msra.mxu0 0.0
    %919 = vmatprep.subr.mxu0 0.0
    %920 = vmatpush2.msra.mxu0 0.0
    %921 = vmatprep.subr.mxu0 0.0
    %922 = vmatpush2.msra.mxu0 0.0
    %923 = vmatprep.subr.mxu0 0.0
    %924 = vmatpush2.msra.mxu0 0.0
    %925 = vmatprep.subr.mxu0 0.0
    %926 = vmatpush2.msra.mxu0 0.0
    %927 = vmatprep.subr.mxu0 0.0
    %928 = vmatpush2.msra.mxu0 0.0
    %929 = vmatprep.subr.mxu0 0.0
    %930 = vmatpush2.msra.mxu0 0.0
    %931 = vmatprep.subr.mxu0 0.0
    %932 = vmatpush2.msra.mxu0 0.0
    %933 = vmatprep.subr.mxu0 0.0
    %934 = vmatpush2.msra.mxu0 0.0
    %935 = vmatprep.subr.mxu0 0.0
    %936 = vmatpush2.msra.mxu0 0.0
    %937 = vmatprep.subr.mxu0 0.0
    %938 = vmatpush2.msra.mxu0 0.0
    %939 = vmatprep.mubr.f32.mxu0 0.0
    %940 = vmatmul.mubr.f32.gmra.mxu0 %v873
    %v941 = vpop.f32.mrf.mxu0
    %v942 = vadd.f32 %v463, %v941
    %v943 = vpop.f32.mrf.mxu0
    %944 = vdwg.mxu0
    %v945 = vxor.u32 %v942, 2147483648
    %v946 = vmul.f32 %v945, 1.442695
    %v947 = vpow.pop %v946
    %v948 = vadd.f32 %v947, 1.0
    %v949 = vrcp.pop %v948
    %v950 = vmul.f32 1.0, %v949
    %v951 = vtanh.pop %v942
    %v952 = vmul.f32 %v950, %v559
    %954 = vrot.lane.b32.xlu0 %v951, 32
    %v955 = vpop.permute.xlu0 %954
    %v957 = vmul.f32 %v950, %v955
    %959 = vrot.lane.b32.xlu0 %v957, 32
    %v960 = vpop.permute.xlu0 %959
    %v962 = vadd.f32 %v952, %v960
    %v963 = vtanh.pop %v962
    %965 = vrot.lane.b32.xlu0 %v963, 32
    %v966 = vpop.permute.xlu0 %965
    %v968 = vmul.f32 %v950, %v966
    %970 = vrot.lane.b32.xlu0 %v962, 96
    %v971 = vpop.permute.xlu0 %970
    %v972 = vsel %vm140, %v971, 0
    %974 = vmatprep.subr.mxu0 0.0
    %975 = vmatpush1.msra.mxu0 0.0
    %976 = vmatprep.subr.mxu0 0.0
    %977 = vmatpush1.msra.mxu0 0.0
    %978 = vmatprep.subr.mxu0 0.0
    %979 = vmatpush1.msra.mxu0 0.0
    %980 = vmatprep.subr.mxu0 0.0
    %981 = vmatpush1.msra.mxu0 0.0
    %982 = vmatprep.subr.mxu0 0.0
    %983 = vmatpush1.msra.mxu0 0.0
    %984 = vmatprep.subr.mxu0 0.0
    %985 = vmatpush1.msra.mxu0 0.0
    %986 = vmatprep.subr.mxu0 0.0
    %987 = vmatpush1.msra.mxu0 0.0
    %988 = vmatprep.subr.mxu0 0.0
    %989 = vmatpush1.msra.mxu0 0.0
    %990 = vmatprep.subr.mxu0 0.0
    %991 = vmatpush1.msra.mxu0 0.0
    %992 = vmatprep.subr.mxu0 0.0
    %993 = vmatpush1.msra.mxu0 0.0
    %994 = vmatprep.subr.mxu0 0.0
    %995 = vmatpush1.msra.mxu0 0.0
    %996 = vmatprep.subr.mxu0 0.0
    %997 = vmatpush1.msra.mxu0 0.0
    %998 = vmatprep.subr.mxu0 0.0
    %999 = vmatpush1.msra.mxu0 %v40
    %1000 = vmatprep.subr.mxu0 0.0
    %1001 = vmatpush1.msra.mxu0 %v39
    %1002 = vmatprep.subr.mxu0 0.0
    %1003 = vmatpush1.msra.mxu0 %v38
    %1004 = vmatprep.subr.mxu0 0.0
    %1005 = vmatpush1.msra.mxu0 %v37
    %1006 = vmatprep.subr.mxu0 0.0
    %1007 = vmatpush2.msra.mxu0 0.0
    %1008 = vmatprep.subr.mxu0 0.0
    %1009 = vmatpush2.msra.mxu0 0.0
    %1010 = vmatprep.subr.mxu0 0.0
    %1011 = vmatpush2.msra.mxu0 0.0
    %1012 = vmatprep.subr.mxu0 0.0
    %1013 = vmatpush2.msra.mxu0 0.0
    %1014 = vmatprep.subr.mxu0 0.0
    %1015 = vmatpush2.msra.mxu0 0.0
    %1016 = vmatprep.subr.mxu0 0.0
    %1017 = vmatpush2.msra.mxu0 0.0
    %1018 = vmatprep.subr.mxu0 0.0
    %1019 = vmatpush2.msra.mxu0 0.0
    %1020 = vmatprep.subr.mxu0 0.0
    %1021 = vmatpush2.msra.mxu0 0.0
    %1022 = vmatprep.subr.mxu0 0.0
    %1023 = vmatpush2.msra.mxu0 0.0
    %1024 = vmatprep.subr.mxu0 0.0
    %1025 = vmatpush2.msra.mxu0 0.0
    %1026 = vmatprep.subr.mxu0 0.0
    %1027 = vmatpush2.msra.mxu0 0.0
    %1028 = vmatprep.subr.mxu0 0.0
    %1029 = vmatpush2.msra.mxu0 0.0
    %1030 = vmatprep.subr.mxu0 0.0
    %1031 = vmatpush2.msra.mxu0 0.0
    %1032 = vmatprep.subr.mxu0 0.0
    %1033 = vmatpush2.msra.mxu0 0.0
    %1034 = vmatprep.subr.mxu0 0.0
    %1035 = vmatpush2.msra.mxu0 0.0
    %1036 = vmatprep.subr.mxu0 0.0
    %1037 = vmatpush2.msra.mxu0 0.0
    %1038 = vmatprep.mubr.f32.mxu0 0.0
    %1039 = vmatmul.mubr.f32.gmra.mxu0 %v972
    %v1040 = vpop.f32.mrf.mxu0
    %v1041 = vadd.f32 0.0, %v1040
    %v1042 = vpop.f32.mrf.mxu0
    %1043 = vdwg.mxu0
    %1045 = vrot.lane.b32.xlu0 %v968, 64
    %v1046 = vpop.permute.xlu0 %1045
    %v1047 = vsel %vm140, %v1046, 0
    %1049 = vmatprep.subr.mxu0 0.0
    %1050 = vmatpush1.msra.mxu0 0.0
    %1051 = vmatprep.subr.mxu0 0.0
    %1052 = vmatpush1.msra.mxu0 0.0
    %1053 = vmatprep.subr.mxu0 0.0
    %1054 = vmatpush1.msra.mxu0 0.0
    %1055 = vmatprep.subr.mxu0 0.0
    %1056 = vmatpush1.msra.mxu0 0.0
    %1057 = vmatprep.subr.mxu0 0.0
    %1058 = vmatpush1.msra.mxu0 0.0
    %1059 = vmatprep.subr.mxu0 0.0
    %1060 = vmatpush1.msra.mxu0 0.0
    %1061 = vmatprep.subr.mxu0 0.0
    %1062 = vmatpush1.msra.mxu0 0.0
    %1063 = vmatprep.subr.mxu0 0.0
    %1064 = vmatpush1.msra.mxu0 0.0
    %1065 = vmatprep.subr.mxu0 0.0
    %1066 = vmatpush1.msra.mxu0 0.0
    %1067 = vmatprep.subr.mxu0 0.0
    %1068 = vmatpush1.msra.mxu0 0.0
    %1069 = vmatprep.subr.mxu0 0.0
    %1070 = vmatpush1.msra.mxu0 0.0
    %1071 = vmatprep.subr.mxu0 0.0
    %1072 = vmatpush1.msra.mxu0 0.0
    %1073 = vmatprep.subr.mxu0 0.0
    %1074 = vmatpush1.msra.mxu0 %v36
    %1075 = vmatprep.subr.mxu0 0.0
    %1076 = vmatpush1.msra.mxu0 %v35
    %1077 = vmatprep.subr.mxu0 0.0
    %1078 = vmatpush1.msra.mxu0 %v34
    %1079 = vmatprep.subr.mxu0 0.0
    %1080 = vmatpush1.msra.mxu0 %v33
    %1081 = vmatprep.subr.mxu0 0.0
    %1082 = vmatpush2.msra.mxu0 0.0
    %1083 = vmatprep.subr.mxu0 0.0
    %1084 = vmatpush2.msra.mxu0 0.0
    %1085 = vmatprep.subr.mxu0 0.0
    %1086 = vmatpush2.msra.mxu0 0.0
    %1087 = vmatprep.subr.mxu0 0.0
    %1088 = vmatpush2.msra.mxu0 0.0
    %1089 = vmatprep.subr.mxu0 0.0
    %1090 = vmatpush2.msra.mxu0 0.0
    %1091 = vmatprep.subr.mxu0 0.0
    %1092 = vmatpush2.msra.mxu0 0.0
    %1093 = vmatprep.subr.mxu0 0.0
    %1094 = vmatpush2.msra.mxu0 0.0
    %1095 = vmatprep.subr.mxu0 0.0
    %1096 = vmatpush2.msra.mxu0 0.0
    %1097 = vmatprep.subr.mxu0 0.0
    %1098 = vmatpush2.msra.mxu0 0.0
    %1099 = vmatprep.subr.mxu0 0.0
    %1100 = vmatpush2.msra.mxu0 0.0
    %1101 = vmatprep.subr.mxu0 0.0
    %1102 = vmatpush2.msra.mxu0 0.0
    %1103 = vmatprep.subr.mxu0 0.0
    %1104 = vmatpush2.msra.mxu0 0.0
    %1105 = vmatprep.subr.mxu0 0.0
    %1106 = vmatpush2.msra.mxu0 0.0
    %1107 = vmatprep.subr.mxu0 0.0
    %1108 = vmatpush2.msra.mxu0 0.0
    %1109 = vmatprep.subr.mxu0 0.0
    %1110 = vmatpush2.msra.mxu0 0.0
    %1111 = vmatprep.subr.mxu0 0.0
    %1112 = vmatpush2.msra.mxu0 0.0
    %1113 = vmatprep.mubr.f32.mxu0 0.0
    %1114 = vmatmul.mubr.f32.gmra.mxu0 %v1047
    %v1115 = vpop.f32.mrf.mxu0
    %v1116 = vadd.f32 %v1041, %v1115
    %v1117 = vpop.f32.mrf.mxu0
    %1118 = vdwg.mxu0
    %v1119 = vadd.f32 %v1116, %v287
    %v1122 = vunpack.c.l.s4 1966171168
    %v1123 = vunpack.c.0.s8 %v1122
    %v1124 = vlaneseq
    %v1125 = vshrl.u32 %v1124, 7
    %v1126 = vsub.s32 %v1123, %v1125
    %v1127 = vrot.slane %v1119, %v1126
    %v1128 = vcombine.high %v1127, %v1127
    %v1130 = vunpack.c.l.s4 1966171168
    %v1131 = vunpack.c.0.s8 %v1130
    %v1132 = vlaneseq
    %v1133 = vshrl.u32 %v1132, 7
    %v1134 = vsub.s32 %v1131, %v1133
    %v1135 = vrot.slane %v1127, %v1134
    %v1137 = vunpack.c.l.s4 1966171168
    %v1138 = vunpack.c.0.s8 %v1137
    %v1139 = vlaneseq
    %v1140 = vshrl.u32 %v1139, 7
    %v1141 = vsub.s32 %v1138, %v1140
    %v1142 = vrot.slane %v1128, %v1141
    %v1143 = vlaneseq
    %v1144 = vshrl.u32 %v1143, 7
    %v1145 = vsub.s32 0, %v1144
    %v1146 = vrot.slane %v1135, %v1145
    %v1147 = vlaneseq
    %v1148 = vshrl.u32 %v1147, 7
    %v1149 = vsub.s32 0, %v1148
    %v1150 = vrot.slane %v1142, %v1149
    %v1153 = vadd.f32 %v1146, %v134
    %v1154 = vadd.f32 %v1150, %v138
    %v1155 = vtanh.pop %v1153
    %v1156 = vtanh.pop %v1154
    %v1157 = vmul.f32 %v1155, %v329
    %v1158 = vmul.f32 %v1156, %v329
    %v1159 = vsel %vm332, %v1157, 0.0
    %1160 = vadd.xlane.f32.xlu0 %v1159
    %v1161 = vpop.xlane.xlu0 %1160
    %v1162 = vsel %vm332, %v1158, 0.0
    %1163 = vadd.xlane.f32.xlu0 %v1162
    %v1164 = vpop.xlane.xlu0 %1163
    %v1165 = vadd.f32 %v1161, %v344
    %v1166 = vadd.f32 %v1164, %v344
    %v1169 = vlaneseq
    %v1170 = vshrl.u32 %v1169, 7
    %v1171 = vsub.s32 %v351, %v1170
    %v1172 = vrot.slane %v1165, %v1171
    %v1173 = vlaneseq
    %v1174 = vshrl.u32 %v1173, 7
    %v1175 = vsub.s32 %v351, %v1174
    %v1176 = vrot.slane %v1166, %v1175
    %v1177 = vsel %vm360, %v1176, %v1172
    %v1179 = vsel %vm363, %v1177, -inf
    %1180 = vmax.xlane.f32.xlu0 %v1179
    %v1181 = vpop.xlane.xlu0 %1180
    %v1183 = vlaneseq
    %v1184 = vshrl.u32 %v1183, 7
    %v1185 = vsub.s32 0, %v1184
    %v1186 = vrot.slane %v1181, %v1185
    %v1187 = vlaneseq
    %v1188 = vshrl.u32 %v1187, 7
    %v1189 = vsub.s32 1, %v1188
    %v1190 = vrot.slane %v1181, %v1189
    %v1193 = vsub.f32 %v1165, %v1186
    %v1194 = vsub.f32 %v1166, %v1190
    %v1195 = vmul.f32 %v1193, 1.442695
    %v1196 = vpow.pop %v1195
    %v1197 = vmul.f32 %v1194, 1.442695
    %v1198 = vpow.pop %v1197
    %1201 = vset.pattern.permute.xlu0 0
    %1202 = vperm.xlu0 %1201, %v1196
    %v1203 = vpop.permute.xlu0 %1202
    %1204 = vset.pattern.permute.xlu0 0
    %1205 = vperm.xlu0 %1204, %v1198
    %v1206 = vpop.permute.xlu0 %1205
    %v1207 = vlaneseq
    %v1208 = vshrl.u32 %v1207, 7
    %v1209 = vsub.s32 %v351, %v1208
    %v1210 = vrot.slane %v1203, %v1209
    %v1211 = vlaneseq
    %v1212 = vshrl.u32 %v1211, 7
    %v1213 = vsub.s32 %v351, %v1212
    %v1214 = vrot.slane %v1206, %v1213
    %v1215 = vsel %vm360, %v1214, %v1210
    %v1217 = vsel %vm363, %v1215, 0.0
    %1218 = vadd.xlane.f32.xlu0 %v1217
    %v1219 = vpop.xlane.xlu0 %1218
    %v1221 = vlaneseq
    %v1222 = vshrl.u32 %v1221, 7
    %v1223 = vsub.s32 0, %v1222
    %v1224 = vrot.slane %v1219, %v1223
    %v1225 = vlaneseq
    %v1226 = vshrl.u32 %v1225, 7
    %v1227 = vsub.s32 1, %v1226
    %v1228 = vrot.slane %v1219, %v1227
    %v1231 = vrcp.pop %v1224
    %v1232 = vmul.f32 %v1196, %v1231
    %v1233 = vrcp.pop %v1228
    %v1234 = vmul.f32 %v1198, %v1233
    %v1235 = vlaneseq
    %v1236 = vshrl.u32 %v1235, 7
    %v1237 = vsub.s32 2, %v1236
    %v1238 = vrot.slane %v55, %v1237
    %1240 = vbcast.lane.b32.xlu0 %v1238, 256
    %v1241 = vpop.permute.xlu0 %1240
    %v1242 = vlaneseq
    %v1243 = vshrl.u32 %v1242, 7
    %v1244 = vsub.s32 2, %v1243
    %v1245 = vrot.slane %v56, %v1244
    %1247 = vbcast.lane.b32.xlu0 %v1245, 256
    %v1248 = vpop.permute.xlu0 %1247
    %v1251 = vmul.f32 %v1232, %v1241
    %v1252 = vmul.f32 %v1234, %v1248
    %1255 = vset.pattern.permute.xlu0 0
    %1256 = vperm.xlu0 %1255, %v1251
    %v1257 = vpop.permute.xlu0 %1256
    %1258 = vset.pattern.permute.xlu0 0
    %1259 = vperm.xlu0 %1258, %v1252
    %v1260 = vpop.permute.xlu0 %1259
    %v1261 = vlaneseq
    %v1262 = vshrl.u32 %v1261, 7
    %v1263 = vsub.s32 %v351, %v1262
    %v1264 = vrot.slane %v1257, %v1263
    %v1265 = vlaneseq
    %v1266 = vshrl.u32 %v1265, 7
    %v1267 = vsub.s32 %v351, %v1266
    %v1268 = vrot.slane %v1260, %v1267
    %v1269 = vsel %vm360, %v1268, %v1264
    %1271 = vrot.lane.b32.xlu0 %v968, 68
    %v1272 = vpop.permute.xlu0 %1271
    %v1274 = vsel %vm458, %v1269, %v1272
    %v1276 = vsel %vm464, %v1274, 0
    %1278 = vmatprep.subr.mxu0 0.0
    %1279 = vmatpush1.msra.mxu0 0.0
    %1280 = vmatprep.subr.mxu0 0.0
    %1281 = vmatpush1.msra.mxu0 0.0
    %1282 = vmatprep.subr.mxu0 0.0
    %1283 = vmatpush1.msra.mxu0 0.0
    %1284 = vmatprep.subr.mxu0 0.0
    %1285 = vmatpush1.msra.mxu0 0.0
    %1286 = vmatprep.subr.mxu0 0.0
    %1287 = vmatpush1.msra.mxu0 0.0
    %1288 = vmatprep.subr.mxu0 0.0
    %1289 = vmatpush1.msra.mxu0 0.0
    %1290 = vmatprep.subr.mxu0 0.0
    %1291 = vmatpush1.msra.mxu0 0.0
    %1292 = vmatprep.subr.mxu0 0.0
    %1293 = vmatpush1.msra.mxu0 0.0
    %1294 = vmatprep.subr.mxu0 0.0
    %1295 = vmatpush1.msra.mxu0 0.0
    %1296 = vmatprep.subr.mxu0 0.0
    %1297 = vmatpush1.msra.mxu0 0.0
    %1298 = vmatprep.subr.mxu0 0.0
    %1299 = vmatpush1.msra.mxu0 0.0
    %1300 = vmatprep.subr.mxu0 0.0
    %1301 = vmatpush1.msra.mxu0 %v470
    %1302 = vmatprep.subr.mxu0 0.0
    %1303 = vmatpush1.msra.mxu0 %v30
    %1304 = vmatprep.subr.mxu0 0.0
    %1305 = vmatpush1.msra.mxu0 %v29
    %1306 = vmatprep.subr.mxu0 0.0
    %1307 = vmatpush1.msra.mxu0 %v28
    %1308 = vmatprep.subr.mxu0 0.0
    %1309 = vmatpush1.msra.mxu0 %v27
    %1310 = vmatprep.subr.mxu0 0.0
    %1311 = vmatpush2.msra.mxu0 0.0
    %1312 = vmatprep.subr.mxu0 0.0
    %1313 = vmatpush2.msra.mxu0 0.0
    %1314 = vmatprep.subr.mxu0 0.0
    %1315 = vmatpush2.msra.mxu0 0.0
    %1316 = vmatprep.subr.mxu0 0.0
    %1317 = vmatpush2.msra.mxu0 0.0
    %1318 = vmatprep.subr.mxu0 0.0
    %1319 = vmatpush2.msra.mxu0 0.0
    %1320 = vmatprep.subr.mxu0 0.0
    %1321 = vmatpush2.msra.mxu0 0.0
    %1322 = vmatprep.subr.mxu0 0.0
    %1323 = vmatpush2.msra.mxu0 0.0
    %1324 = vmatprep.subr.mxu0 0.0
    %1325 = vmatpush2.msra.mxu0 0.0
    %1326 = vmatprep.subr.mxu0 0.0
    %1327 = vmatpush2.msra.mxu0 0.0
    %1328 = vmatprep.subr.mxu0 0.0
    %1329 = vmatpush2.msra.mxu0 0.0
    %1330 = vmatprep.subr.mxu0 0.0
    %1331 = vmatpush2.msra.mxu0 0.0
    %1332 = vmatprep.subr.mxu0 0.0
    %1333 = vmatpush2.msra.mxu0 0.0
    %1334 = vmatprep.subr.mxu0 0.0
    %1335 = vmatpush2.msra.mxu0 0.0
    %1336 = vmatprep.subr.mxu0 0.0
    %1337 = vmatpush2.msra.mxu0 0.0
    %1338 = vmatprep.subr.mxu0 0.0
    %1339 = vmatpush2.msra.mxu0 0.0
    %1340 = vmatprep.subr.mxu0 0.0
    %1341 = vmatpush2.msra.mxu0 0.0
    %1342 = vmatprep.mubr.f32.mxu0 0.0
    %1343 = vmatmul.mubr.f32.gmra.mxu0 %v1276
    %v1344 = vpop.f32.mrf.mxu0
    %v1345 = vadd.f32 %v463, %v1344
    %v1346 = vpop.f32.mrf.mxu0
    %1347 = vdwg.mxu0
    %v1348 = vxor.u32 %v1345, 2147483648
    %v1349 = vmul.f32 %v1348, 1.442695
    %v1350 = vpow.pop %v1349
    %v1351 = vadd.f32 %v1350, 1.0
    %v1352 = vrcp.pop %v1351
    %v1353 = vmul.f32 1.0, %v1352
    %v1354 = vtanh.pop %v1345
    %v1355 = vmul.f32 %v1353, %v962
    %1357 = vrot.lane.b32.xlu0 %v1354, 32
    %v1358 = vpop.permute.xlu0 %1357
    %v1360 = vmul.f32 %v1353, %v1358
    %1362 = vrot.lane.b32.xlu0 %v1360, 32
    %v1363 = vpop.permute.xlu0 %1362
    %v1365 = vadd.f32 %v1355, %v1363
    %v1366 = vtanh.pop %v1365
    %1368 = vrot.lane.b32.xlu0 %v1366, 32
    %v1369 = vpop.permute.xlu0 %1368
    %v1371 = vmul.f32 %v1353, %v1369
    %1373 = vrot.lane.b32.xlu0 %v1365, 96
    %v1374 = vpop.permute.xlu0 %1373
    %v1375 = vsel %vm140, %v1374, 0
    %1377 = vmatprep.subr.mxu0 0.0
    %1378 = vmatpush1.msra.mxu0 0.0
    %1379 = vmatprep.subr.mxu0 0.0
    %1380 = vmatpush1.msra.mxu0 0.0
    %1381 = vmatprep.subr.mxu0 0.0
    %1382 = vmatpush1.msra.mxu0 0.0
    %1383 = vmatprep.subr.mxu0 0.0
    %1384 = vmatpush1.msra.mxu0 0.0
    %1385 = vmatprep.subr.mxu0 0.0
    %1386 = vmatpush1.msra.mxu0 0.0
    %1387 = vmatprep.subr.mxu0 0.0
    %1388 = vmatpush1.msra.mxu0 0.0
    %1389 = vmatprep.subr.mxu0 0.0
    %1390 = vmatpush1.msra.mxu0 0.0
    %1391 = vmatprep.subr.mxu0 0.0
    %1392 = vmatpush1.msra.mxu0 0.0
    %1393 = vmatprep.subr.mxu0 0.0
    %1394 = vmatpush1.msra.mxu0 0.0
    %1395 = vmatprep.subr.mxu0 0.0
    %1396 = vmatpush1.msra.mxu0 0.0
    %1397 = vmatprep.subr.mxu0 0.0
    %1398 = vmatpush1.msra.mxu0 0.0
    %1399 = vmatprep.subr.mxu0 0.0
    %1400 = vmatpush1.msra.mxu0 0.0
    %1401 = vmatprep.subr.mxu0 0.0
    %1402 = vmatpush1.msra.mxu0 %v40
    %1403 = vmatprep.subr.mxu0 0.0
    %1404 = vmatpush1.msra.mxu0 %v39
    %1405 = vmatprep.subr.mxu0 0.0
    %1406 = vmatpush1.msra.mxu0 %v38
    %1407 = vmatprep.subr.mxu0 0.0
    %1408 = vmatpush1.msra.mxu0 %v37
    %1409 = vmatprep.subr.mxu0 0.0
    %1410 = vmatpush2.msra.mxu0 0.0
    %1411 = vmatprep.subr.mxu0 0.0
    %1412 = vmatpush2.msra.mxu0 0.0
    %1413 = vmatprep.subr.mxu0 0.0
    %1414 = vmatpush2.msra.mxu0 0.0
    %1415 = vmatprep.subr.mxu0 0.0
    %1416 = vmatpush2.msra.mxu0 0.0
    %1417 = vmatprep.subr.mxu0 0.0
    %1418 = vmatpush2.msra.mxu0 0.0
    %1419 = vmatprep.subr.mxu0 0.0
    %1420 = vmatpush2.msra.mxu0 0.0
    %1421 = vmatprep.subr.mxu0 0.0
    %1422 = vmatpush2.msra.mxu0 0.0
    %1423 = vmatprep.subr.mxu0 0.0
    %1424 = vmatpush2.msra.mxu0 0.0
    %1425 = vmatprep.subr.mxu0 0.0
    %1426 = vmatpush2.msra.mxu0 0.0
    %1427 = vmatprep.subr.mxu0 0.0
    %1428 = vmatpush2.msra.mxu0 0.0
    %1429 = vmatprep.subr.mxu0 0.0
    %1430 = vmatpush2.msra.mxu0 0.0
    %1431 = vmatprep.subr.mxu0 0.0
    %1432 = vmatpush2.msra.mxu0 0.0
    %1433 = vmatprep.subr.mxu0 0.0
    %1434 = vmatpush2.msra.mxu0 0.0
    %1435 = vmatprep.subr.mxu0 0.0
    %1436 = vmatpush2.msra.mxu0 0.0
    %1437 = vmatprep.subr.mxu0 0.0
    %1438 = vmatpush2.msra.mxu0 0.0
    %1439 = vmatprep.subr.mxu0 0.0
    %1440 = vmatpush2.msra.mxu0 0.0
    %1441 = vmatprep.mubr.f32.mxu0 0.0
    %1442 = vmatmul.mubr.f32.gmra.mxu0 %v1375
    %v1443 = vpop.f32.mrf.mxu0
    %v1444 = vadd.f32 0.0, %v1443
    %v1445 = vpop.f32.mrf.mxu0
    %1446 = vdwg.mxu0
    %1448 = vrot.lane.b32.xlu0 %v1371, 64
    %v1449 = vpop.permute.xlu0 %1448
    %v1450 = vsel %vm140, %v1449, 0
    %1452 = vmatprep.subr.mxu0 0.0
    %1453 = vmatpush1.msra.mxu0 0.0
    %1454 = vmatprep.subr.mxu0 0.0
    %1455 = vmatpush1.msra.mxu0 0.0
    %1456 = vmatprep.subr.mxu0 0.0
    %1457 = vmatpush1.msra.mxu0 0.0
    %1458 = vmatprep.subr.mxu0 0.0
    %1459 = vmatpush1.msra.mxu0 0.0
    %1460 = vmatprep.subr.mxu0 0.0
    %1461 = vmatpush1.msra.mxu0 0.0
    %1462 = vmatprep.subr.mxu0 0.0
    %1463 = vmatpush1.msra.mxu0 0.0
    %1464 = vmatprep.subr.mxu0 0.0
    %1465 = vmatpush1.msra.mxu0 0.0
    %1466 = vmatprep.subr.mxu0 0.0
    %1467 = vmatpush1.msra.mxu0 0.0
    %1468 = vmatprep.subr.mxu0 0.0
    %1469 = vmatpush1.msra.mxu0 0.0
    %1470 = vmatprep.subr.mxu0 0.0
    %1471 = vmatpush1.msra.mxu0 0.0
    %1472 = vmatprep.subr.mxu0 0.0
    %1473 = vmatpush1.msra.mxu0 0.0
    %1474 = vmatprep.subr.mxu0 0.0
    %1475 = vmatpush1.msra.mxu0 0.0
    %1476 = vmatprep.subr.mxu0 0.0
    %1477 = vmatpush1.msra.mxu0 %v36
    %1478 = vmatprep.subr.mxu0 0.0
    %1479 = vmatpush1.msra.mxu0 %v35
    %1480 = vmatprep.subr.mxu0 0.0
    %1481 = vmatpush1.msra.mxu0 %v34
    %1482 = vmatprep.subr.mxu0 0.0
    %1483 = vmatpush1.msra.mxu0 %v33
    %1484 = vmatprep.subr.mxu0 0.0
    %1485 = vmatpush2.msra.mxu0 0.0
    %1486 = vmatprep.subr.mxu0 0.0
    %1487 = vmatpush2.msra.mxu0 0.0
    %1488 = vmatprep.subr.mxu0 0.0
    %1489 = vmatpush2.msra.mxu0 0.0
    %1490 = vmatprep.subr.mxu0 0.0
    %1491 = vmatpush2.msra.mxu0 0.0
    %1492 = vmatprep.subr.mxu0 0.0
    %1493 = vmatpush2.msra.mxu0 0.0
    %1494 = vmatprep.subr.mxu0 0.0
    %1495 = vmatpush2.msra.mxu0 0.0
    %1496 = vmatprep.subr.mxu0 0.0
    %1497 = vmatpush2.msra.mxu0 0.0
    %1498 = vmatprep.subr.mxu0 0.0
    %1499 = vmatpush2.msra.mxu0 0.0
    %1500 = vmatprep.subr.mxu0 0.0
    %1501 = vmatpush2.msra.mxu0 0.0
    %1502 = vmatprep.subr.mxu0 0.0
    %1503 = vmatpush2.msra.mxu0 0.0
    %1504 = vmatprep.subr.mxu0 0.0
    %1505 = vmatpush2.msra.mxu0 0.0
    %1506 = vmatprep.subr.mxu0 0.0
    %1507 = vmatpush2.msra.mxu0 0.0
    %1508 = vmatprep.subr.mxu0 0.0
    %1509 = vmatpush2.msra.mxu0 0.0
    %1510 = vmatprep.subr.mxu0 0.0
    %1511 = vmatpush2.msra.mxu0 0.0
    %1512 = vmatprep.subr.mxu0 0.0
    %1513 = vmatpush2.msra.mxu0 0.0
    %1514 = vmatprep.subr.mxu0 0.0
    %1515 = vmatpush2.msra.mxu0 0.0
    %1516 = vmatprep.mubr.f32.mxu0 0.0
    %1517 = vmatmul.mubr.f32.gmra.mxu0 %v1450
    %v1518 = vpop.f32.mrf.mxu0
    %v1519 = vadd.f32 %v1444, %v1518
    %v1520 = vpop.f32.mrf.mxu0
    %1521 = vdwg.mxu0
    %v1522 = vadd.f32 %v1519, %v287
    %v1525 = vunpack.c.l.s4 1966171168
    %v1526 = vunpack.c.0.s8 %v1525
    %v1527 = vlaneseq
    %v1528 = vshrl.u32 %v1527, 7
    %v1529 = vsub.s32 %v1526, %v1528
    %v1530 = vrot.slane %v1522, %v1529
    %v1531 = vcombine.high %v1530, %v1530
    %v1533 = vunpack.c.l.s4 1966171168
    %v1534 = vunpack.c.0.s8 %v1533
    %v1535 = vlaneseq
    %v1536 = vshrl.u32 %v1535, 7
    %v1537 = vsub.s32 %v1534, %v1536
    %v1538 = vrot.slane %v1530, %v1537
    %v1540 = vunpack.c.l.s4 1966171168
    %v1541 = vunpack.c.0.s8 %v1540
    %v1542 = vlaneseq
    %v1543 = vshrl.u32 %v1542, 7
    %v1544 = vsub.s32 %v1541, %v1543
    %v1545 = vrot.slane %v1531, %v1544
    %v1546 = vlaneseq
    %v1547 = vshrl.u32 %v1546, 7
    %v1548 = vsub.s32 0, %v1547
    %v1549 = vrot.slane %v1538, %v1548
    %v1550 = vlaneseq
    %v1551 = vshrl.u32 %v1550, 7
    %v1552 = vsub.s32 0, %v1551
    %v1553 = vrot.slane %v1545, %v1552
    %v1556 = vadd.f32 %v1549, %v134
    %v1557 = vadd.f32 %v1553, %v138
    %v1558 = vtanh.pop %v1556
    %v1559 = vtanh.pop %v1557
    %v1560 = vmul.f32 %v1558, %v329
    %v1561 = vmul.f32 %v1559, %v329
    %v1562 = vsel %vm332, %v1560, 0.0
    %1563 = vadd.xlane.f32.xlu0 %v1562
    %v1564 = vpop.xlane.xlu0 %1563
    %v1565 = vsel %vm332, %v1561, 0.0
    %1566 = vadd.xlane.f32.xlu0 %v1565
    %v1567 = vpop.xlane.xlu0 %1566
    %v1568 = vadd.f32 %v1564, %v344
    %v1569 = vadd.f32 %v1567, %v344
    %v1572 = vlaneseq
    %v1573 = vshrl.u32 %v1572, 7
    %v1574 = vsub.s32 %v351, %v1573
    %v1575 = vrot.slane %v1568, %v1574
    %v1576 = vlaneseq
    %v1577 = vshrl.u32 %v1576, 7
    %v1578 = vsub.s32 %v351, %v1577
    %v1579 = vrot.slane %v1569, %v1578
    %v1580 = vsel %vm360, %v1579, %v1575
    %v1582 = vsel %vm363, %v1580, -inf
    %1583 = vmax.xlane.f32.xlu0 %v1582
    %v1584 = vpop.xlane.xlu0 %1583
    %v1586 = vlaneseq
    %v1587 = vshrl.u32 %v1586, 7
    %v1588 = vsub.s32 0, %v1587
    %v1589 = vrot.slane %v1584, %v1588
    %v1590 = vlaneseq
    %v1591 = vshrl.u32 %v1590, 7
    %v1592 = vsub.s32 1, %v1591
    %v1593 = vrot.slane %v1584, %v1592
    %v1596 = vsub.f32 %v1568, %v1589
    %v1597 = vsub.f32 %v1569, %v1593
    %v1598 = vmul.f32 %v1596, 1.442695
    %v1599 = vpow.pop %v1598
    %v1600 = vmul.f32 %v1597, 1.442695
    %v1601 = vpow.pop %v1600
    %1604 = vset.pattern.permute.xlu0 0
    %1605 = vperm.xlu0 %1604, %v1599
    %v1606 = vpop.permute.xlu0 %1605
    %1607 = vset.pattern.permute.xlu0 0
    %1608 = vperm.xlu0 %1607, %v1601
    %v1609 = vpop.permute.xlu0 %1608
    %v1610 = vlaneseq
    %v1611 = vshrl.u32 %v1610, 7
    %v1612 = vsub.s32 %v351, %v1611
    %v1613 = vrot.slane %v1606, %v1612
    %v1614 = vlaneseq
    %v1615 = vshrl.u32 %v1614, 7
    %v1616 = vsub.s32 %v351, %v1615
    %v1617 = vrot.slane %v1609, %v1616
    %v1618 = vsel %vm360, %v1617, %v1613
    %v1620 = vsel %vm363, %v1618, 0.0
    %1621 = vadd.xlane.f32.xlu0 %v1620
    %v1622 = vpop.xlane.xlu0 %1621
    %v1624 = vlaneseq
    %v1625 = vshrl.u32 %v1624, 7
    %v1626 = vsub.s32 0, %v1625
    %v1627 = vrot.slane %v1622, %v1626
    %v1628 = vlaneseq
    %v1629 = vshrl.u32 %v1628, 7
    %v1630 = vsub.s32 1, %v1629
    %v1631 = vrot.slane %v1622, %v1630
    %v1634 = vrcp.pop %v1627
    %v1635 = vmul.f32 %v1599, %v1634
    %v1636 = vrcp.pop %v1631
    %v1637 = vmul.f32 %v1601, %v1636
    %v1638 = vlaneseq
    %v1639 = vshrl.u32 %v1638, 7
    %v1640 = vsub.s32 3, %v1639
    %v1641 = vrot.slane %v55, %v1640
    %1643 = vbcast.lane.b32.xlu0 %v1641, 256
    %v1644 = vpop.permute.xlu0 %1643
    %v1645 = vlaneseq
    %v1646 = vshrl.u32 %v1645, 7
    %v1647 = vsub.s32 3, %v1646
    %v1648 = vrot.slane %v56, %v1647
    %1650 = vbcast.lane.b32.xlu0 %v1648, 256
    %v1651 = vpop.permute.xlu0 %1650
    %v1654 = vmul.f32 %v1635, %v1644
    %v1655 = vmul.f32 %v1637, %v1651
    %1658 = vset.pattern.permute.xlu0 0
    %1659 = vperm.xlu0 %1658, %v1654
    %v1660 = vpop.permute.xlu0 %1659
    %1661 = vset.pattern.permute.xlu0 0
    %1662 = vperm.xlu0 %1661, %v1655
    %v1663 = vpop.permute.xlu0 %1662
    %v1664 = vlaneseq
    %v1665 = vshrl.u32 %v1664, 7
    %v1666 = vsub.s32 %v351, %v1665
    %v1667 = vrot.slane %v1660, %v1666
    %v1668 = vlaneseq
    %v1669 = vshrl.u32 %v1668, 7
    %v1670 = vsub.s32 %v351, %v1669
    %v1671 = vrot.slane %v1663, %v1670
    %v1672 = vsel %vm360, %v1671, %v1667
    %1674 = vrot.lane.b32.xlu0 %v1371, 68
    %v1675 = vpop.permute.xlu0 %1674
    %v1677 = vsel %vm458, %v1672, %v1675
    %v1679 = vsel %vm464, %v1677, 0
    %1681 = vmatprep.subr.mxu0 0.0
    %1682 = vmatpush1.msra.mxu0 0.0
    %1683 = vmatprep.subr.mxu0 0.0
    %1684 = vmatpush1.msra.mxu0 0.0
    %1685 = vmatprep.subr.mxu0 0.0
    %1686 = vmatpush1.msra.mxu0 0.0
    %1687 = vmatprep.subr.mxu0 0.0
    %1688 = vmatpush1.msra.mxu0 0.0
    %1689 = vmatprep.subr.mxu0 0.0
    %1690 = vmatpush1.msra.mxu0 0.0
    %1691 = vmatprep.subr.mxu0 0.0
    %1692 = vmatpush1.msra.mxu0 0.0
    %1693 = vmatprep.subr.mxu0 0.0
    %1694 = vmatpush1.msra.mxu0 0.0
    %1695 = vmatprep.subr.mxu0 0.0
    %1696 = vmatpush1.msra.mxu0 0.0
    %1697 = vmatprep.subr.mxu0 0.0
    %1698 = vmatpush1.msra.mxu0 0.0
    %1699 = vmatprep.subr.mxu0 0.0
    %1700 = vmatpush1.msra.mxu0 0.0
    %1701 = vmatprep.subr.mxu0 0.0
    %1702 = vmatpush1.msra.mxu0 0.0
    %1703 = vmatprep.subr.mxu0 0.0
    %1704 = vmatpush1.msra.mxu0 %v470
    %1705 = vmatprep.subr.mxu0 0.0
    %1706 = vmatpush1.msra.mxu0 %v30
    %1707 = vmatprep.subr.mxu0 0.0
    %1708 = vmatpush1.msra.mxu0 %v29
    %1709 = vmatprep.subr.mxu0 0.0
    %1710 = vmatpush1.msra.mxu0 %v28
    %1711 = vmatprep.subr.mxu0 0.0
    %1712 = vmatpush1.msra.mxu0 %v27
    %1713 = vmatprep.subr.mxu0 0.0
    %1714 = vmatpush2.msra.mxu0 0.0
    %1715 = vmatprep.subr.mxu0 0.0
    %1716 = vmatpush2.msra.mxu0 0.0
    %1717 = vmatprep.subr.mxu0 0.0
    %1718 = vmatpush2.msra.mxu0 0.0
    %1719 = vmatprep.subr.mxu0 0.0
    %1720 = vmatpush2.msra.mxu0 0.0
    %1721 = vmatprep.subr.mxu0 0.0
    %1722 = vmatpush2.msra.mxu0 0.0
    %1723 = vmatprep.subr.mxu0 0.0
    %1724 = vmatpush2.msra.mxu0 0.0
    %1725 = vmatprep.subr.mxu0 0.0
    %1726 = vmatpush2.msra.mxu0 0.0
    %1727 = vmatprep.subr.mxu0 0.0
    %1728 = vmatpush2.msra.mxu0 0.0
    %1729 = vmatprep.subr.mxu0 0.0
    %1730 = vmatpush2.msra.mxu0 0.0
    %1731 = vmatprep.subr.mxu0 0.0
    %1732 = vmatpush2.msra.mxu0 0.0
    %1733 = vmatprep.subr.mxu0 0.0
    %1734 = vmatpush2.msra.mxu0 0.0
    %1735 = vmatprep.subr.mxu0 0.0
    %1736 = vmatpush2.msra.mxu0 0.0
    %1737 = vmatprep.subr.mxu0 0.0
    %1738 = vmatpush2.msra.mxu0 0.0
    %1739 = vmatprep.subr.mxu0 0.0
    %1740 = vmatpush2.msra.mxu0 0.0
    %1741 = vmatprep.subr.mxu0 0.0
    %1742 = vmatpush2.msra.mxu0 0.0
    %1743 = vmatprep.subr.mxu0 0.0
    %1744 = vmatpush2.msra.mxu0 0.0
    %1745 = vmatprep.mubr.f32.mxu0 0.0
    %1746 = vmatmul.mubr.f32.gmra.mxu0 %v1679
    %v1747 = vpop.f32.mrf.mxu0
    %v1748 = vadd.f32 %v463, %v1747
    %v1749 = vpop.f32.mrf.mxu0
    %1750 = vdwg.mxu0
    %v1751 = vxor.u32 %v1748, 2147483648
    %v1752 = vmul.f32 %v1751, 1.442695
    %v1753 = vpow.pop %v1752
    %v1754 = vadd.f32 %v1753, 1.0
    %v1755 = vrcp.pop %v1754
    %v1756 = vmul.f32 1.0, %v1755
    %v1757 = vtanh.pop %v1748
    %v1758 = vmul.f32 %v1756, %v1365
    %1760 = vrot.lane.b32.xlu0 %v1757, 32
    %v1761 = vpop.permute.xlu0 %1760
    %v1763 = vmul.f32 %v1756, %v1761
    %1765 = vrot.lane.b32.xlu0 %v1763, 32
    %v1766 = vpop.permute.xlu0 %1765
    %v1768 = vadd.f32 %v1758, %v1766
    %v1769 = vtanh.pop %v1768
    %1771 = vrot.lane.b32.xlu0 %v1769, 32
    %v1772 = vpop.permute.xlu0 %1771
    %v1774 = vmul.f32 %v1756, %v1772
    %1776 = vrot.lane.b32.xlu0 %v1768, 96
    %v1777 = vpop.permute.xlu0 %1776
    %v1778 = vsel %vm140, %v1777, 0
    %1780 = vmatprep.subr.mxu0 0.0
    %1781 = vmatpush1.msra.mxu0 0.0
    %1782 = vmatprep.subr.mxu0 0.0
    %1783 = vmatpush1.msra.mxu0 0.0
    %1784 = vmatprep.subr.mxu0 0.0
    %1785 = vmatpush1.msra.mxu0 0.0
    %1786 = vmatprep.subr.mxu0 0.0
    %1787 = vmatpush1.msra.mxu0 0.0
    %1788 = vmatprep.subr.mxu0 0.0
    %1789 = vmatpush1.msra.mxu0 0.0
    %1790 = vmatprep.subr.mxu0 0.0
    %1791 = vmatpush1.msra.mxu0 0.0
    %1792 = vmatprep.subr.mxu0 0.0
    %1793 = vmatpush1.msra.mxu0 0.0
    %1794 = vmatprep.subr.mxu0 0.0
    %1795 = vmatpush1.msra.mxu0 0.0
    %1796 = vmatprep.subr.mxu0 0.0
    %1797 = vmatpush1.msra.mxu0 0.0
    %1798 = vmatprep.subr.mxu0 0.0
    %1799 = vmatpush1.msra.mxu0 0.0
    %1800 = vmatprep.subr.mxu0 0.0
    %1801 = vmatpush1.msra.mxu0 0.0
    %1802 = vmatprep.subr.mxu0 0.0
    %1803 = vmatpush1.msra.mxu0 0.0
    %1804 = vmatprep.subr.mxu0 0.0
    %1805 = vmatpush1.msra.mxu0 %v40
    %1806 = vmatprep.subr.mxu0 0.0
    %1807 = vmatpush1.msra.mxu0 %v39
    %1808 = vmatprep.subr.mxu0 0.0
    %1809 = vmatpush1.msra.mxu0 %v38
    %1810 = vmatprep.subr.mxu0 0.0
    %1811 = vmatpush1.msra.mxu0 %v37
    %1812 = vmatprep.subr.mxu0 0.0
    %1813 = vmatpush2.msra.mxu0 0.0
    %1814 = vmatprep.subr.mxu0 0.0
    %1815 = vmatpush2.msra.mxu0 0.0
    %1816 = vmatprep.subr.mxu0 0.0
    %1817 = vmatpush2.msra.mxu0 0.0
    %1818 = vmatprep.subr.mxu0 0.0
    %1819 = vmatpush2.msra.mxu0 0.0
    %1820 = vmatprep.subr.mxu0 0.0
    %1821 = vmatpush2.msra.mxu0 0.0
    %1822 = vmatprep.subr.mxu0 0.0
    %1823 = vmatpush2.msra.mxu0 0.0
    %1824 = vmatprep.subr.mxu0 0.0
    %1825 = vmatpush2.msra.mxu0 0.0
    %1826 = vmatprep.subr.mxu0 0.0
    %1827 = vmatpush2.msra.mxu0 0.0
    %1828 = vmatprep.subr.mxu0 0.0
    %1829 = vmatpush2.msra.mxu0 0.0
    %1830 = vmatprep.subr.mxu0 0.0
    %1831 = vmatpush2.msra.mxu0 0.0
    %1832 = vmatprep.subr.mxu0 0.0
    %1833 = vmatpush2.msra.mxu0 0.0
    %1834 = vmatprep.subr.mxu0 0.0
    %1835 = vmatpush2.msra.mxu0 0.0
    %1836 = vmatprep.subr.mxu0 0.0
    %1837 = vmatpush2.msra.mxu0 0.0
    %1838 = vmatprep.subr.mxu0 0.0
    %1839 = vmatpush2.msra.mxu0 0.0
    %1840 = vmatprep.subr.mxu0 0.0
    %1841 = vmatpush2.msra.mxu0 0.0
    %1842 = vmatprep.subr.mxu0 0.0
    %1843 = vmatpush2.msra.mxu0 0.0
    %1844 = vmatprep.mubr.f32.mxu0 0.0
    %1845 = vmatmul.mubr.f32.gmra.mxu0 %v1778
    %v1846 = vpop.f32.mrf.mxu0
    %v1847 = vadd.f32 0.0, %v1846
    %v1848 = vpop.f32.mrf.mxu0
    %1849 = vdwg.mxu0
    %1851 = vrot.lane.b32.xlu0 %v1774, 64
    %v1852 = vpop.permute.xlu0 %1851
    %v1853 = vsel %vm140, %v1852, 0
    %1855 = vmatprep.subr.mxu0 0.0
    %1856 = vmatpush1.msra.mxu0 0.0
    %1857 = vmatprep.subr.mxu0 0.0
    %1858 = vmatpush1.msra.mxu0 0.0
    %1859 = vmatprep.subr.mxu0 0.0
    %1860 = vmatpush1.msra.mxu0 0.0
    %1861 = vmatprep.subr.mxu0 0.0
    %1862 = vmatpush1.msra.mxu0 0.0
    %1863 = vmatprep.subr.mxu0 0.0
    %1864 = vmatpush1.msra.mxu0 0.0
    %1865 = vmatprep.subr.mxu0 0.0
    %1866 = vmatpush1.msra.mxu0 0.0
    %1867 = vmatprep.subr.mxu0 0.0
    %1868 = vmatpush1.msra.mxu0 0.0
    %1869 = vmatprep.subr.mxu0 0.0
    %1870 = vmatpush1.msra.mxu0 0.0
    %1871 = vmatprep.subr.mxu0 0.0
    %1872 = vmatpush1.msra.mxu0 0.0
    %1873 = vmatprep.subr.mxu0 0.0
    %1874 = vmatpush1.msra.mxu0 0.0
    %1875 = vmatprep.subr.mxu0 0.0
    %1876 = vmatpush1.msra.mxu0 0.0
    %1877 = vmatprep.subr.mxu0 0.0
    %1878 = vmatpush1.msra.mxu0 0.0
    %1879 = vmatprep.subr.mxu0 0.0
    %1880 = vmatpush1.msra.mxu0 %v36
    %1881 = vmatprep.subr.mxu0 0.0
    %1882 = vmatpush1.msra.mxu0 %v35
    %1883 = vmatprep.subr.mxu0 0.0
    %1884 = vmatpush1.msra.mxu0 %v34
    %1885 = vmatprep.subr.mxu0 0.0
    %1886 = vmatpush1.msra.mxu0 %v33
    %1887 = vmatprep.subr.mxu0 0.0
    %1888 = vmatpush2.msra.mxu0 0.0
    %1889 = vmatprep.subr.mxu0 0.0
    %1890 = vmatpush2.msra.mxu0 0.0
    %1891 = vmatprep.subr.mxu0 0.0
    %1892 = vmatpush2.msra.mxu0 0.0
    %1893 = vmatprep.subr.mxu0 0.0
    %1894 = vmatpush2.msra.mxu0 0.0
    %1895 = vmatprep.subr.mxu0 0.0
    %1896 = vmatpush2.msra.mxu0 0.0
    %1897 = vmatprep.subr.mxu0 0.0
    %1898 = vmatpush2.msra.mxu0 0.0
    %1899 = vmatprep.subr.mxu0 0.0
    %1900 = vmatpush2.msra.mxu0 0.0
    %1901 = vmatprep.subr.mxu0 0.0
    %1902 = vmatpush2.msra.mxu0 0.0
    %1903 = vmatprep.subr.mxu0 0.0
    %1904 = vmatpush2.msra.mxu0 0.0
    %1905 = vmatprep.subr.mxu0 0.0
    %1906 = vmatpush2.msra.mxu0 0.0
    %1907 = vmatprep.subr.mxu0 0.0
    %1908 = vmatpush2.msra.mxu0 0.0
    %1909 = vmatprep.subr.mxu0 0.0
    %1910 = vmatpush2.msra.mxu0 0.0
    %1911 = vmatprep.subr.mxu0 0.0
    %1912 = vmatpush2.msra.mxu0 0.0
    %1913 = vmatprep.subr.mxu0 0.0
    %1914 = vmatpush2.msra.mxu0 0.0
    %1915 = vmatprep.subr.mxu0 0.0
    %1916 = vmatpush2.msra.mxu0 0.0
    %1917 = vmatprep.subr.mxu0 0.0
    %1918 = vmatpush2.msra.mxu0 0.0
    %1919 = vmatprep.mubr.f32.mxu0 0.0
    %1920 = vmatmul.mubr.f32.gmra.mxu0 %v1853
    %v1921 = vpop.f32.mrf.mxu0
    %v1922 = vadd.f32 %v1847, %v1921
    %v1923 = vpop.f32.mrf.mxu0
    %1924 = vdwg.mxu0
    %v1925 = vadd.f32 %v1922, %v287
    %v1928 = vunpack.c.l.s4 1966171168
    %v1929 = vunpack.c.0.s8 %v1928
    %v1930 = vlaneseq
    %v1931 = vshrl.u32 %v1930, 7
    %v1932 = vsub.s32 %v1929, %v1931
    %v1933 = vrot.slane %v1925, %v1932
    %v1934 = vcombine.high %v1933, %v1933
    %v1936 = vunpack.c.l.s4 1966171168
    %v1937 = vunpack.c.0.s8 %v1936
    %v1938 = vlaneseq
    %v1939 = vshrl.u32 %v1938, 7
    %v1940 = vsub.s32 %v1937, %v1939
    %v1941 = vrot.slane %v1933, %v1940
    %v1943 = vunpack.c.l.s4 1966171168
    %v1944 = vunpack.c.0.s8 %v1943
    %v1945 = vlaneseq
    %v1946 = vshrl.u32 %v1945, 7
    %v1947 = vsub.s32 %v1944, %v1946
    %v1948 = vrot.slane %v1934, %v1947
    %v1949 = vlaneseq
    %v1950 = vshrl.u32 %v1949, 7
    %v1951 = vsub.s32 0, %v1950
    %v1952 = vrot.slane %v1941, %v1951
    %v1953 = vlaneseq
    %v1954 = vshrl.u32 %v1953, 7
    %v1955 = vsub.s32 0, %v1954
    %v1956 = vrot.slane %v1948, %v1955
    %v1959 = vadd.f32 %v1952, %v134
    %v1960 = vadd.f32 %v1956, %v138
    %v1961 = vtanh.pop %v1959
    %v1962 = vtanh.pop %v1960
    %v1963 = vmul.f32 %v1961, %v329
    %v1964 = vmul.f32 %v1962, %v329
    %v1965 = vsel %vm332, %v1963, 0.0
    %1966 = vadd.xlane.f32.xlu0 %v1965
    %v1967 = vpop.xlane.xlu0 %1966
    %v1968 = vsel %vm332, %v1964, 0.0
    %1969 = vadd.xlane.f32.xlu0 %v1968
    %v1970 = vpop.xlane.xlu0 %1969
    %v1971 = vadd.f32 %v1967, %v344
    %v1972 = vadd.f32 %v1970, %v344
    %v1975 = vlaneseq
    %v1976 = vshrl.u32 %v1975, 7
    %v1977 = vsub.s32 %v351, %v1976
    %v1978 = vrot.slane %v1971, %v1977
    %v1979 = vlaneseq
    %v1980 = vshrl.u32 %v1979, 7
    %v1981 = vsub.s32 %v351, %v1980
    %v1982 = vrot.slane %v1972, %v1981
    %v1983 = vsel %vm360, %v1982, %v1978
    %v1985 = vsel %vm363, %v1983, -inf
    %1986 = vmax.xlane.f32.xlu0 %v1985
    %v1987 = vpop.xlane.xlu0 %1986
    %v1989 = vlaneseq
    %v1990 = vshrl.u32 %v1989, 7
    %v1991 = vsub.s32 0, %v1990
    %v1992 = vrot.slane %v1987, %v1991
    %v1993 = vlaneseq
    %v1994 = vshrl.u32 %v1993, 7
    %v1995 = vsub.s32 1, %v1994
    %v1996 = vrot.slane %v1987, %v1995
    %v1999 = vsub.f32 %v1971, %v1992
    %v2000 = vsub.f32 %v1972, %v1996
    %v2001 = vmul.f32 %v1999, 1.442695
    %v2002 = vpow.pop %v2001
    %v2003 = vmul.f32 %v2000, 1.442695
    %v2004 = vpow.pop %v2003
    %2007 = vset.pattern.permute.xlu0 0
    %2008 = vperm.xlu0 %2007, %v2002
    %v2009 = vpop.permute.xlu0 %2008
    %2010 = vset.pattern.permute.xlu0 0
    %2011 = vperm.xlu0 %2010, %v2004
    %v2012 = vpop.permute.xlu0 %2011
    %v2013 = vlaneseq
    %v2014 = vshrl.u32 %v2013, 7
    %v2015 = vsub.s32 %v351, %v2014
    %v2016 = vrot.slane %v2009, %v2015
    %v2017 = vlaneseq
    %v2018 = vshrl.u32 %v2017, 7
    %v2019 = vsub.s32 %v351, %v2018
    %v2020 = vrot.slane %v2012, %v2019
    %v2021 = vsel %vm360, %v2020, %v2016
    %v2023 = vsel %vm363, %v2021, 0.0
    %2024 = vadd.xlane.f32.xlu0 %v2023
    %v2025 = vpop.xlane.xlu0 %2024
    %v2027 = vlaneseq
    %v2028 = vshrl.u32 %v2027, 7
    %v2029 = vsub.s32 0, %v2028
    %v2030 = vrot.slane %v2025, %v2029
    %v2031 = vlaneseq
    %v2032 = vshrl.u32 %v2031, 7
    %v2033 = vsub.s32 1, %v2032
    %v2034 = vrot.slane %v2025, %v2033
    %v2037 = vrcp.pop %v2030
    %v2038 = vmul.f32 %v2002, %v2037
    %v2039 = vrcp.pop %v2034
    %v2040 = vmul.f32 %v2004, %v2039
    %v2041 = vlaneseq
    %v2042 = vshrl.u32 %v2041, 7
    %v2043 = vsub.s32 4, %v2042
    %v2044 = vrot.slane %v55, %v2043
    %2046 = vbcast.lane.b32.xlu0 %v2044, 256
    %v2047 = vpop.permute.xlu0 %2046
    %v2048 = vlaneseq
    %v2049 = vshrl.u32 %v2048, 7
    %v2050 = vsub.s32 4, %v2049
    %v2051 = vrot.slane %v56, %v2050
    %2053 = vbcast.lane.b32.xlu0 %v2051, 256
    %v2054 = vpop.permute.xlu0 %2053
    %v2057 = vmul.f32 %v2038, %v2047
    %v2058 = vmul.f32 %v2040, %v2054
    %2061 = vset.pattern.permute.xlu0 0
    %2062 = vperm.xlu0 %2061, %v2057
    %v2063 = vpop.permute.xlu0 %2062
    %2064 = vset.pattern.permute.xlu0 0
    %2065 = vperm.xlu0 %2064, %v2058
    %v2066 = vpop.permute.xlu0 %2065
    %v2067 = vlaneseq
    %v2068 = vshrl.u32 %v2067, 7
    %v2069 = vsub.s32 %v351, %v2068
    %v2070 = vrot.slane %v2063, %v2069
    %v2071 = vlaneseq
    %v2072 = vshrl.u32 %v2071, 7
    %v2073 = vsub.s32 %v351, %v2072
    %v2074 = vrot.slane %v2066, %v2073
    %v2075 = vsel %vm360, %v2074, %v2070
    %2077 = vrot.lane.b32.xlu0 %v1774, 68
    %v2078 = vpop.permute.xlu0 %2077
    %v2080 = vsel %vm458, %v2075, %v2078
    %v2082 = vsel %vm464, %v2080, 0
    %2084 = vmatprep.subr.mxu0 0.0
    %2085 = vmatpush1.msra.mxu0 0.0
    %2086 = vmatprep.subr.mxu0 0.0
    %2087 = vmatpush1.msra.mxu0 0.0
    %2088 = vmatprep.subr.mxu0 0.0
    %2089 = vmatpush1.msra.mxu0 0.0
    %2090 = vmatprep.subr.mxu0 0.0
    %2091 = vmatpush1.msra.mxu0 0.0
    %2092 = vmatprep.subr.mxu0 0.0
    %2093 = vmatpush1.msra.mxu0 0.0
    %2094 = vmatprep.subr.mxu0 0.0
    %2095 = vmatpush1.msra.mxu0 0.0
    %2096 = vmatprep.subr.mxu0 0.0
    %2097 = vmatpush1.msra.mxu0 0.0
    %2098 = vmatprep.subr.mxu0 0.0
    %2099 = vmatpush1.msra.mxu0 0.0
    %2100 = vmatprep.subr.mxu0 0.0
    %2101 = vmatpush1.msra.mxu0 0.0
    %2102 = vmatprep.subr.mxu0 0.0
    %2103 = vmatpush1.msra.mxu0 0.0
    %2104 = vmatprep.subr.mxu0 0.0
    %2105 = vmatpush1.msra.mxu0 0.0
    %2106 = vmatprep.subr.mxu0 0.0
    %2107 = vmatpush1.msra.mxu0 %v470
    %2108 = vmatprep.subr.mxu0 0.0
    %2109 = vmatpush1.msra.mxu0 %v30
    %2110 = vmatprep.subr.mxu0 0.0
    %2111 = vmatpush1.msra.mxu0 %v29
    %2112 = vmatprep.subr.mxu0 0.0
    %2113 = vmatpush1.msra.mxu0 %v28
    %2114 = vmatprep.subr.mxu0 0.0
    %2115 = vmatpush1.msra.mxu0 %v27
    %2116 = vmatprep.subr.mxu0 0.0
    %2117 = vmatpush2.msra.mxu0 0.0
    %2118 = vmatprep.subr.mxu0 0.0
    %2119 = vmatpush2.msra.mxu0 0.0
    %2120 = vmatprep.subr.mxu0 0.0
    %2121 = vmatpush2.msra.mxu0 0.0
    %2122 = vmatprep.subr.mxu0 0.0
    %2123 = vmatpush2.msra.mxu0 0.0
    %2124 = vmatprep.subr.mxu0 0.0
    %2125 = vmatpush2.msra.mxu0 0.0
    %2126 = vmatprep.subr.mxu0 0.0
    %2127 = vmatpush2.msra.mxu0 0.0
    %2128 = vmatprep.subr.mxu0 0.0
    %2129 = vmatpush2.msra.mxu0 0.0
    %2130 = vmatprep.subr.mxu0 0.0
    %2131 = vmatpush2.msra.mxu0 0.0
    %2132 = vmatprep.subr.mxu0 0.0
    %2133 = vmatpush2.msra.mxu0 0.0
    %2134 = vmatprep.subr.mxu0 0.0
    %2135 = vmatpush2.msra.mxu0 0.0
    %2136 = vmatprep.subr.mxu0 0.0
    %2137 = vmatpush2.msra.mxu0 0.0
    %2138 = vmatprep.subr.mxu0 0.0
    %2139 = vmatpush2.msra.mxu0 0.0
    %2140 = vmatprep.subr.mxu0 0.0
    %2141 = vmatpush2.msra.mxu0 0.0
    %2142 = vmatprep.subr.mxu0 0.0
    %2143 = vmatpush2.msra.mxu0 0.0
    %2144 = vmatprep.subr.mxu0 0.0
    %2145 = vmatpush2.msra.mxu0 0.0
    %2146 = vmatprep.subr.mxu0 0.0
    %2147 = vmatpush2.msra.mxu0 0.0
    %2148 = vmatprep.mubr.f32.mxu0 0.0
    %2149 = vmatmul.mubr.f32.gmra.mxu0 %v2082
    %v2150 = vpop.f32.mrf.mxu0
    %v2151 = vadd.f32 %v463, %v2150
    %v2152 = vpop.f32.mrf.mxu0
    %2153 = vdwg.mxu0
    %v2154 = vxor.u32 %v2151, 2147483648
    %v2155 = vmul.f32 %v2154, 1.442695
    %v2156 = vpow.pop %v2155
    %v2157 = vadd.f32 %v2156, 1.0
    %v2158 = vrcp.pop %v2157
    %v2159 = vmul.f32 1.0, %v2158
    %v2160 = vtanh.pop %v2151
    %v2161 = vmul.f32 %v2159, %v1768
    %2163 = vrot.lane.b32.xlu0 %v2160, 32
    %v2164 = vpop.permute.xlu0 %2163
    %v2166 = vmul.f32 %v2159, %v2164
    %2168 = vrot.lane.b32.xlu0 %v2166, 32
    %v2169 = vpop.permute.xlu0 %2168
    %v2171 = vadd.f32 %v2161, %v2169
    %v2172 = vtanh.pop %v2171
    %2174 = vrot.lane.b32.xlu0 %v2172, 32
    %v2175 = vpop.permute.xlu0 %2174
    %v2177 = vmul.f32 %v2159, %v2175
    %2179 = vrot.lane.b32.xlu0 %v2171, 96
    %v2180 = vpop.permute.xlu0 %2179
    %v2181 = vsel %vm140, %v2180, 0
    %2183 = vmatprep.subr.mxu0 0.0
    %2184 = vmatpush1.msra.mxu0 0.0
    %2185 = vmatprep.subr.mxu0 0.0
    %2186 = vmatpush1.msra.mxu0 0.0
    %2187 = vmatprep.subr.mxu0 0.0
    %2188 = vmatpush1.msra.mxu0 0.0
    %2189 = vmatprep.subr.mxu0 0.0
    %2190 = vmatpush1.msra.mxu0 0.0
    %2191 = vmatprep.subr.mxu0 0.0
    %2192 = vmatpush1.msra.mxu0 0.0
    %2193 = vmatprep.subr.mxu0 0.0
    %2194 = vmatpush1.msra.mxu0 0.0
    %2195 = vmatprep.subr.mxu0 0.0
    %2196 = vmatpush1.msra.mxu0 0.0
    %2197 = vmatprep.subr.mxu0 0.0
    %2198 = vmatpush1.msra.mxu0 0.0
    %2199 = vmatprep.subr.mxu0 0.0
    %2200 = vmatpush1.msra.mxu0 0.0
    %2201 = vmatprep.subr.mxu0 0.0
    %2202 = vmatpush1.msra.mxu0 0.0
    %2203 = vmatprep.subr.mxu0 0.0
    %2204 = vmatpush1.msra.mxu0 0.0
    %2205 = vmatprep.subr.mxu0 0.0
    %2206 = vmatpush1.msra.mxu0 0.0
    %2207 = vmatprep.subr.mxu0 0.0
    %2208 = vmatpush1.msra.mxu0 %v40
    %2209 = vmatprep.subr.mxu0 0.0
    %2210 = vmatpush1.msra.mxu0 %v39
    %2211 = vmatprep.subr.mxu0 0.0
    %2212 = vmatpush1.msra.mxu0 %v38
    %2213 = vmatprep.subr.mxu0 0.0
    %2214 = vmatpush1.msra.mxu0 %v37
    %2215 = vmatprep.subr.mxu0 0.0
    %2216 = vmatpush2.msra.mxu0 0.0
    %2217 = vmatprep.subr.mxu0 0.0
    %2218 = vmatpush2.msra.mxu0 0.0
    %2219 = vmatprep.subr.mxu0 0.0
    %2220 = vmatpush2.msra.mxu0 0.0
    %2221 = vmatprep.subr.mxu0 0.0
    %2222 = vmatpush2.msra.mxu0 0.0
    %2223 = vmatprep.subr.mxu0 0.0
    %2224 = vmatpush2.msra.mxu0 0.0
    %2225 = vmatprep.subr.mxu0 0.0
    %2226 = vmatpush2.msra.mxu0 0.0
    %2227 = vmatprep.subr.mxu0 0.0
    %2228 = vmatpush2.msra.mxu0 0.0
    %2229 = vmatprep.subr.mxu0 0.0
    %2230 = vmatpush2.msra.mxu0 0.0
    %2231 = vmatprep.subr.mxu0 0.0
    %2232 = vmatpush2.msra.mxu0 0.0
    %2233 = vmatprep.subr.mxu0 0.0
    %2234 = vmatpush2.msra.mxu0 0.0
    %2235 = vmatprep.subr.mxu0 0.0
    %2236 = vmatpush2.msra.mxu0 0.0
    %2237 = vmatprep.subr.mxu0 0.0
    %2238 = vmatpush2.msra.mxu0 0.0
    %2239 = vmatprep.subr.mxu0 0.0
    %2240 = vmatpush2.msra.mxu0 0.0
    %2241 = vmatprep.subr.mxu0 0.0
    %2242 = vmatpush2.msra.mxu0 0.0
    %2243 = vmatprep.subr.mxu0 0.0
    %2244 = vmatpush2.msra.mxu0 0.0
    %2245 = vmatprep.subr.mxu0 0.0
    %2246 = vmatpush2.msra.mxu0 0.0
    %2247 = vmatprep.mubr.f32.mxu0 0.0
    %2248 = vmatmul.mubr.f32.gmra.mxu0 %v2181
    %v2249 = vpop.f32.mrf.mxu0
    %v2250 = vadd.f32 0.0, %v2249
    %v2251 = vpop.f32.mrf.mxu0
    %2252 = vdwg.mxu0
    %2254 = vrot.lane.b32.xlu0 %v2177, 64
    %v2255 = vpop.permute.xlu0 %2254
    %v2256 = vsel %vm140, %v2255, 0
    %2258 = vmatprep.subr.mxu0 0.0
    %2259 = vmatpush1.msra.mxu0 0.0
    %2260 = vmatprep.subr.mxu0 0.0
    %2261 = vmatpush1.msra.mxu0 0.0
    %2262 = vmatprep.subr.mxu0 0.0
    %2263 = vmatpush1.msra.mxu0 0.0
    %2264 = vmatprep.subr.mxu0 0.0
    %2265 = vmatpush1.msra.mxu0 0.0
    %2266 = vmatprep.subr.mxu0 0.0
    %2267 = vmatpush1.msra.mxu0 0.0
    %2268 = vmatprep.subr.mxu0 0.0
    %2269 = vmatpush1.msra.mxu0 0.0
    %2270 = vmatprep.subr.mxu0 0.0
    %2271 = vmatpush1.msra.mxu0 0.0
    %2272 = vmatprep.subr.mxu0 0.0
    %2273 = vmatpush1.msra.mxu0 0.0
    %2274 = vmatprep.subr.mxu0 0.0
    %2275 = vmatpush1.msra.mxu0 0.0
    %2276 = vmatprep.subr.mxu0 0.0
    %2277 = vmatpush1.msra.mxu0 0.0
    %2278 = vmatprep.subr.mxu0 0.0
    %2279 = vmatpush1.msra.mxu0 0.0
    %2280 = vmatprep.subr.mxu0 0.0
    %2281 = vmatpush1.msra.mxu0 0.0
    %2282 = vmatprep.subr.mxu0 0.0
    %2283 = vmatpush1.msra.mxu0 %v36
    %2284 = vmatprep.subr.mxu0 0.0
    %2285 = vmatpush1.msra.mxu0 %v35
    %2286 = vmatprep.subr.mxu0 0.0
    %2287 = vmatpush1.msra.mxu0 %v34
    %2288 = vmatprep.subr.mxu0 0.0
    %2289 = vmatpush1.msra.mxu0 %v33
    %2290 = vmatprep.subr.mxu0 0.0
    %2291 = vmatpush2.msra.mxu0 0.0
    %2292 = vmatprep.subr.mxu0 0.0
    %2293 = vmatpush2.msra.mxu0 0.0
    %2294 = vmatprep.subr.mxu0 0.0
    %2295 = vmatpush2.msra.mxu0 0.0
    %2296 = vmatprep.subr.mxu0 0.0
    %2297 = vmatpush2.msra.mxu0 0.0
    %2298 = vmatprep.subr.mxu0 0.0
    %2299 = vmatpush2.msra.mxu0 0.0
    %2300 = vmatprep.subr.mxu0 0.0
    %2301 = vmatpush2.msra.mxu0 0.0
    %2302 = vmatprep.subr.mxu0 0.0
    %2303 = vmatpush2.msra.mxu0 0.0
    %2304 = vmatprep.subr.mxu0 0.0
    %2305 = vmatpush2.msra.mxu0 0.0
    %2306 = vmatprep.subr.mxu0 0.0
    %2307 = vmatpush2.msra.mxu0 0.0
    %2308 = vmatprep.subr.mxu0 0.0
    %2309 = vmatpush2.msra.mxu0 0.0
    %2310 = vmatprep.subr.mxu0 0.0
    %2311 = vmatpush2.msra.mxu0 0.0
    %2312 = vmatprep.subr.mxu0 0.0
    %2313 = vmatpush2.msra.mxu0 0.0
    %2314 = vmatprep.subr.mxu0 0.0
    %2315 = vmatpush2.msra.mxu0 0.0
    %2316 = vmatprep.subr.mxu0 0.0
    %2317 = vmatpush2.msra.mxu0 0.0
    %2318 = vmatprep.subr.mxu0 0.0
    %2319 = vmatpush2.msra.mxu0 0.0
    %2320 = vmatprep.subr.mxu0 0.0
    %2321 = vmatpush2.msra.mxu0 0.0
    %2322 = vmatprep.mubr.f32.mxu0 0.0
    %2323 = vmatmul.mubr.f32.gmra.mxu0 %v2256
    %v2324 = vpop.f32.mrf.mxu0
    %v2325 = vadd.f32 %v2250, %v2324
    %v2326 = vpop.f32.mrf.mxu0
    %2327 = vdwg.mxu0
    %v2328 = vadd.f32 %v2325, %v287
    %v2331 = vunpack.c.l.s4 1966171168
    %v2332 = vunpack.c.0.s8 %v2331
    %v2333 = vlaneseq
    %v2334 = vshrl.u32 %v2333, 7
    %v2335 = vsub.s32 %v2332, %v2334
    %v2336 = vrot.slane %v2328, %v2335
    %v2337 = vcombine.high %v2336, %v2336
    %v2339 = vunpack.c.l.s4 1966171168
    %v2340 = vunpack.c.0.s8 %v2339
    %v2341 = vlaneseq
    %v2342 = vshrl.u32 %v2341, 7
    %v2343 = vsub.s32 %v2340, %v2342
    %v2344 = vrot.slane %v2336, %v2343
    %v2346 = vunpack.c.l.s4 1966171168
    %v2347 = vunpack.c.0.s8 %v2346
    %v2348 = vlaneseq
    %v2349 = vshrl.u32 %v2348, 7
    %v2350 = vsub.s32 %v2347, %v2349
    %v2351 = vrot.slane %v2337, %v2350
    %v2352 = vlaneseq
    %v2353 = vshrl.u32 %v2352, 7
    %v2354 = vsub.s32 0, %v2353
    %v2355 = vrot.slane %v2344, %v2354
    %v2356 = vlaneseq
    %v2357 = vshrl.u32 %v2356, 7
    %v2358 = vsub.s32 0, %v2357
    %v2359 = vrot.slane %v2351, %v2358
    %v2362 = vadd.f32 %v2355, %v134
    %v2363 = vadd.f32 %v2359, %v138
    %v2364 = vtanh.pop %v2362
    %v2365 = vtanh.pop %v2363
    %v2366 = vmul.f32 %v2364, %v329
    %v2367 = vmul.f32 %v2365, %v329
    %v2368 = vsel %vm332, %v2366, 0.0
    %2369 = vadd.xlane.f32.xlu0 %v2368
    %v2370 = vpop.xlane.xlu0 %2369
    %v2371 = vsel %vm332, %v2367, 0.0
    %2372 = vadd.xlane.f32.xlu0 %v2371
    %v2373 = vpop.xlane.xlu0 %2372
    %v2374 = vadd.f32 %v2370, %v344
    %v2375 = vadd.f32 %v2373, %v344
    %v2378 = vlaneseq
    %v2379 = vshrl.u32 %v2378, 7
    %v2380 = vsub.s32 %v351, %v2379
    %v2381 = vrot.slane %v2374, %v2380
    %v2382 = vlaneseq
    %v2383 = vshrl.u32 %v2382, 7
    %v2384 = vsub.s32 %v351, %v2383
    %v2385 = vrot.slane %v2375, %v2384
    %v2386 = vsel %vm360, %v2385, %v2381
    %v2388 = vsel %vm363, %v2386, -inf
    %2389 = vmax.xlane.f32.xlu0 %v2388
    %v2390 = vpop.xlane.xlu0 %2389
    %v2392 = vlaneseq
    %v2393 = vshrl.u32 %v2392, 7
    %v2394 = vsub.s32 0, %v2393
    %v2395 = vrot.slane %v2390, %v2394
    %v2396 = vlaneseq
    %v2397 = vshrl.u32 %v2396, 7
    %v2398 = vsub.s32 1, %v2397
    %v2399 = vrot.slane %v2390, %v2398
    %v2402 = vsub.f32 %v2374, %v2395
    %v2403 = vsub.f32 %v2375, %v2399
    %v2404 = vmul.f32 %v2402, 1.442695
    %v2405 = vpow.pop %v2404
    %v2406 = vmul.f32 %v2403, 1.442695
    %v2407 = vpow.pop %v2406
    %2410 = vset.pattern.permute.xlu0 0
    %2411 = vperm.xlu0 %2410, %v2405
    %v2412 = vpop.permute.xlu0 %2411
    %2413 = vset.pattern.permute.xlu0 0
    %2414 = vperm.xlu0 %2413, %v2407
    %v2415 = vpop.permute.xlu0 %2414
    %v2416 = vlaneseq
    %v2417 = vshrl.u32 %v2416, 7
    %v2418 = vsub.s32 %v351, %v2417
    %v2419 = vrot.slane %v2412, %v2418
    %v2420 = vlaneseq
    %v2421 = vshrl.u32 %v2420, 7
    %v2422 = vsub.s32 %v351, %v2421
    %v2423 = vrot.slane %v2415, %v2422
    %v2424 = vsel %vm360, %v2423, %v2419
    %v2426 = vsel %vm363, %v2424, 0.0
    %2427 = vadd.xlane.f32.xlu0 %v2426
    %v2428 = vpop.xlane.xlu0 %2427
    %v2430 = vlaneseq
    %v2431 = vshrl.u32 %v2430, 7
    %v2432 = vsub.s32 0, %v2431
    %v2433 = vrot.slane %v2428, %v2432
    %v2434 = vlaneseq
    %v2435 = vshrl.u32 %v2434, 7
    %v2436 = vsub.s32 1, %v2435
    %v2437 = vrot.slane %v2428, %v2436
    %v2440 = vrcp.pop %v2433
    %v2441 = vmul.f32 %v2405, %v2440
    %v2442 = vrcp.pop %v2437
    %v2443 = vmul.f32 %v2407, %v2442
    %v2444 = vlaneseq
    %v2445 = vshrl.u32 %v2444, 7
    %v2446 = vsub.s32 5, %v2445
    %v2447 = vrot.slane %v55, %v2446
    %2449 = vbcast.lane.b32.xlu0 %v2447, 256
    %v2450 = vpop.permute.xlu0 %2449
    %v2451 = vlaneseq
    %v2452 = vshrl.u32 %v2451, 7
    %v2453 = vsub.s32 5, %v2452
    %v2454 = vrot.slane %v56, %v2453
    %2456 = vbcast.lane.b32.xlu0 %v2454, 256
    %v2457 = vpop.permute.xlu0 %2456
    %v2460 = vmul.f32 %v2441, %v2450
    %v2461 = vmul.f32 %v2443, %v2457
    %2464 = vset.pattern.permute.xlu0 0
    %2465 = vperm.xlu0 %2464, %v2460
    %v2466 = vpop.permute.xlu0 %2465
    %2467 = vset.pattern.permute.xlu0 0
    %2468 = vperm.xlu0 %2467, %v2461
    %v2469 = vpop.permute.xlu0 %2468
    %v2470 = vlaneseq
    %v2471 = vshrl.u32 %v2470, 7
    %v2472 = vsub.s32 %v351, %v2471
    %v2473 = vrot.slane %v2466, %v2472
    %v2474 = vlaneseq
    %v2475 = vshrl.u32 %v2474, 7
    %v2476 = vsub.s32 %v351, %v2475
    %v2477 = vrot.slane %v2469, %v2476
    %v2478 = vsel %vm360, %v2477, %v2473
    %2480 = vrot.lane.b32.xlu0 %v2177, 68
    %v2481 = vpop.permute.xlu0 %2480
    %v2483 = vsel %vm458, %v2478, %v2481
    %v2485 = vsel %vm464, %v2483, 0
    %2487 = vmatprep.subr.mxu0 0.0
    %2488 = vmatpush1.msra.mxu0 0.0
    %2489 = vmatprep.subr.mxu0 0.0
    %2490 = vmatpush1.msra.mxu0 0.0
    %2491 = vmatprep.subr.mxu0 0.0
    %2492 = vmatpush1.msra.mxu0 0.0
    %2493 = vmatprep.subr.mxu0 0.0
    %2494 = vmatpush1.msra.mxu0 0.0
    %2495 = vmatprep.subr.mxu0 0.0
    %2496 = vmatpush1.msra.mxu0 0.0
    %2497 = vmatprep.subr.mxu0 0.0
    %2498 = vmatpush1.msra.mxu0 0.0
    %2499 = vmatprep.subr.mxu0 0.0
    %2500 = vmatpush1.msra.mxu0 0.0
    %2501 = vmatprep.subr.mxu0 0.0
    %2502 = vmatpush1.msra.mxu0 0.0
    %2503 = vmatprep.subr.mxu0 0.0
    %2504 = vmatpush1.msra.mxu0 0.0
    %2505 = vmatprep.subr.mxu0 0.0
    %2506 = vmatpush1.msra.mxu0 0.0
    %2507 = vmatprep.subr.mxu0 0.0
    %2508 = vmatpush1.msra.mxu0 0.0
    %2509 = vmatprep.subr.mxu0 0.0
    %2510 = vmatpush1.msra.mxu0 %v470
    %2511 = vmatprep.subr.mxu0 0.0
    %2512 = vmatpush1.msra.mxu0 %v30
    %2513 = vmatprep.subr.mxu0 0.0
    %2514 = vmatpush1.msra.mxu0 %v29
    %2515 = vmatprep.subr.mxu0 0.0
    %2516 = vmatpush1.msra.mxu0 %v28
    %2517 = vmatprep.subr.mxu0 0.0
    %2518 = vmatpush1.msra.mxu0 %v27
    %2519 = vmatprep.subr.mxu0 0.0
    %2520 = vmatpush2.msra.mxu0 0.0
    %2521 = vmatprep.subr.mxu0 0.0
    %2522 = vmatpush2.msra.mxu0 0.0
    %2523 = vmatprep.subr.mxu0 0.0
    %2524 = vmatpush2.msra.mxu0 0.0
    %2525 = vmatprep.subr.mxu0 0.0
    %2526 = vmatpush2.msra.mxu0 0.0
    %2527 = vmatprep.subr.mxu0 0.0
    %2528 = vmatpush2.msra.mxu0 0.0
    %2529 = vmatprep.subr.mxu0 0.0
    %2530 = vmatpush2.msra.mxu0 0.0
    %2531 = vmatprep.subr.mxu0 0.0
    %2532 = vmatpush2.msra.mxu0 0.0
    %2533 = vmatprep.subr.mxu0 0.0
    %2534 = vmatpush2.msra.mxu0 0.0
    %2535 = vmatprep.subr.mxu0 0.0
    %2536 = vmatpush2.msra.mxu0 0.0
    %2537 = vmatprep.subr.mxu0 0.0
    %2538 = vmatpush2.msra.mxu0 0.0
    %2539 = vmatprep.subr.mxu0 0.0
    %2540 = vmatpush2.msra.mxu0 0.0
    %2541 = vmatprep.subr.mxu0 0.0
    %2542 = vmatpush2.msra.mxu0 0.0
    %2543 = vmatprep.subr.mxu0 0.0
    %2544 = vmatpush2.msra.mxu0 0.0
    %2545 = vmatprep.subr.mxu0 0.0
    %2546 = vmatpush2.msra.mxu0 0.0
    %2547 = vmatprep.subr.mxu0 0.0
    %2548 = vmatpush2.msra.mxu0 0.0
    %2549 = vmatprep.subr.mxu0 0.0
    %2550 = vmatpush2.msra.mxu0 0.0
    %2551 = vmatprep.mubr.f32.mxu0 0.0
    %2552 = vmatmul.mubr.f32.gmra.mxu0 %v2485
    %v2553 = vpop.f32.mrf.mxu0
    %v2554 = vadd.f32 %v463, %v2553
    %v2555 = vpop.f32.mrf.mxu0
    %2556 = vdwg.mxu0
    %v2557 = vxor.u32 %v2554, 2147483648
    %v2558 = vmul.f32 %v2557, 1.442695
    %v2559 = vpow.pop %v2558
    %v2560 = vadd.f32 %v2559, 1.0
    %v2561 = vrcp.pop %v2560
    %v2562 = vmul.f32 1.0, %v2561
    %v2563 = vtanh.pop %v2554
    %v2564 = vmul.f32 %v2562, %v2171
    %2566 = vrot.lane.b32.xlu0 %v2563, 32
    %v2567 = vpop.permute.xlu0 %2566
    %v2569 = vmul.f32 %v2562, %v2567
    %2571 = vrot.lane.b32.xlu0 %v2569, 32
    %v2572 = vpop.permute.xlu0 %2571
    %v2574 = vadd.f32 %v2564, %v2572
    %v2575 = vtanh.pop %v2574
    %2577 = vrot.lane.b32.xlu0 %v2575, 32
    %v2578 = vpop.permute.xlu0 %2577
    %v2580 = vmul.f32 %v2562, %v2578
    %2582 = vrot.lane.b32.xlu0 %v2574, 96
    %v2583 = vpop.permute.xlu0 %2582
    %v2584 = vsel %vm140, %v2583, 0
    %2586 = vmatprep.subr.mxu0 0.0
    %2587 = vmatpush1.msra.mxu0 0.0
    %2588 = vmatprep.subr.mxu0 0.0
    %2589 = vmatpush1.msra.mxu0 0.0
    %2590 = vmatprep.subr.mxu0 0.0
    %2591 = vmatpush1.msra.mxu0 0.0
    %2592 = vmatprep.subr.mxu0 0.0
    %2593 = vmatpush1.msra.mxu0 0.0
    %2594 = vmatprep.subr.mxu0 0.0
    %2595 = vmatpush1.msra.mxu0 0.0
    %2596 = vmatprep.subr.mxu0 0.0
    %2597 = vmatpush1.msra.mxu0 0.0
    %2598 = vmatprep.subr.mxu0 0.0
    %2599 = vmatpush1.msra.mxu0 0.0
    %2600 = vmatprep.subr.mxu0 0.0
    %2601 = vmatpush1.msra.mxu0 0.0
    %2602 = vmatprep.subr.mxu0 0.0
    %2603 = vmatpush1.msra.mxu0 0.0
    %2604 = vmatprep.subr.mxu0 0.0
    %2605 = vmatpush1.msra.mxu0 0.0
    %2606 = vmatprep.subr.mxu0 0.0
    %2607 = vmatpush1.msra.mxu0 0.0
    %2608 = vmatprep.subr.mxu0 0.0
    %2609 = vmatpush1.msra.mxu0 0.0
    %2610 = vmatprep.subr.mxu0 0.0
    %2611 = vmatpush1.msra.mxu0 %v40
    %2612 = vmatprep.subr.mxu0 0.0
    %2613 = vmatpush1.msra.mxu0 %v39
    %2614 = vmatprep.subr.mxu0 0.0
    %2615 = vmatpush1.msra.mxu0 %v38
    %2616 = vmatprep.subr.mxu0 0.0
    %2617 = vmatpush1.msra.mxu0 %v37
    %2618 = vmatprep.subr.mxu0 0.0
    %2619 = vmatpush2.msra.mxu0 0.0
    %2620 = vmatprep.subr.mxu0 0.0
    %2621 = vmatpush2.msra.mxu0 0.0
    %2622 = vmatprep.subr.mxu0 0.0
    %2623 = vmatpush2.msra.mxu0 0.0
    %2624 = vmatprep.subr.mxu0 0.0
    %2625 = vmatpush2.msra.mxu0 0.0
    %2626 = vmatprep.subr.mxu0 0.0
    %2627 = vmatpush2.msra.mxu0 0.0
    %2628 = vmatprep.subr.mxu0 0.0
    %2629 = vmatpush2.msra.mxu0 0.0
    %2630 = vmatprep.subr.mxu0 0.0
    %2631 = vmatpush2.msra.mxu0 0.0
    %2632 = vmatprep.subr.mxu0 0.0
    %2633 = vmatpush2.msra.mxu0 0.0
    %2634 = vmatprep.subr.mxu0 0.0
    %2635 = vmatpush2.msra.mxu0 0.0
    %2636 = vmatprep.subr.mxu0 0.0
    %2637 = vmatpush2.msra.mxu0 0.0
    %2638 = vmatprep.subr.mxu0 0.0
    %2639 = vmatpush2.msra.mxu0 0.0
    %2640 = vmatprep.subr.mxu0 0.0
    %2641 = vmatpush2.msra.mxu0 0.0
    %2642 = vmatprep.subr.mxu0 0.0
    %2643 = vmatpush2.msra.mxu0 0.0
    %2644 = vmatprep.subr.mxu0 0.0
    %2645 = vmatpush2.msra.mxu0 0.0
    %2646 = vmatprep.subr.mxu0 0.0
    %2647 = vmatpush2.msra.mxu0 0.0
    %2648 = vmatprep.subr.mxu0 0.0
    %2649 = vmatpush2.msra.mxu0 0.0
    %2650 = vmatprep.mubr.f32.mxu0 0.0
    %2651 = vmatmul.mubr.f32.gmra.mxu0 %v2584
    %v2652 = vpop.f32.mrf.mxu0
    %v2653 = vadd.f32 0.0, %v2652
    %v2654 = vpop.f32.mrf.mxu0
    %2655 = vdwg.mxu0
    %2657 = vrot.lane.b32.xlu0 %v2580, 64
    %v2658 = vpop.permute.xlu0 %2657
    %v2659 = vsel %vm140, %v2658, 0
    %2661 = vmatprep.subr.mxu0 0.0
    %2662 = vmatpush1.msra.mxu0 0.0
    %2663 = vmatprep.subr.mxu0 0.0
    %2664 = vmatpush1.msra.mxu0 0.0
    %2665 = vmatprep.subr.mxu0 0.0
    %2666 = vmatpush1.msra.mxu0 0.0
    %2667 = vmatprep.subr.mxu0 0.0
    %2668 = vmatpush1.msra.mxu0 0.0
    %2669 = vmatprep.subr.mxu0 0.0
    %2670 = vmatpush1.msra.mxu0 0.0
    %2671 = vmatprep.subr.mxu0 0.0
    %2672 = vmatpush1.msra.mxu0 0.0
    %2673 = vmatprep.subr.mxu0 0.0
    %2674 = vmatpush1.msra.mxu0 0.0
    %2675 = vmatprep.subr.mxu0 0.0
    %2676 = vmatpush1.msra.mxu0 0.0
    %2677 = vmatprep.subr.mxu0 0.0
    %2678 = vmatpush1.msra.mxu0 0.0
    %2679 = vmatprep.subr.mxu0 0.0
    %2680 = vmatpush1.msra.mxu0 0.0
    %2681 = vmatprep.subr.mxu0 0.0
    %2682 = vmatpush1.msra.mxu0 0.0
    %2683 = vmatprep.subr.mxu0 0.0
    %2684 = vmatpush1.msra.mxu0 0.0
    %2685 = vmatprep.subr.mxu0 0.0
    %2686 = vmatpush1.msra.mxu0 %v36
    %2687 = vmatprep.subr.mxu0 0.0
    %2688 = vmatpush1.msra.mxu0 %v35
    %2689 = vmatprep.subr.mxu0 0.0
    %2690 = vmatpush1.msra.mxu0 %v34
    %2691 = vmatprep.subr.mxu0 0.0
    %2692 = vmatpush1.msra.mxu0 %v33
    %2693 = vmatprep.subr.mxu0 0.0
    %2694 = vmatpush2.msra.mxu0 0.0
    %2695 = vmatprep.subr.mxu0 0.0
    %2696 = vmatpush2.msra.mxu0 0.0
    %2697 = vmatprep.subr.mxu0 0.0
    %2698 = vmatpush2.msra.mxu0 0.0
    %2699 = vmatprep.subr.mxu0 0.0
    %2700 = vmatpush2.msra.mxu0 0.0
    %2701 = vmatprep.subr.mxu0 0.0
    %2702 = vmatpush2.msra.mxu0 0.0
    %2703 = vmatprep.subr.mxu0 0.0
    %2704 = vmatpush2.msra.mxu0 0.0
    %2705 = vmatprep.subr.mxu0 0.0
    %2706 = vmatpush2.msra.mxu0 0.0
    %2707 = vmatprep.subr.mxu0 0.0
    %2708 = vmatpush2.msra.mxu0 0.0
    %2709 = vmatprep.subr.mxu0 0.0
    %2710 = vmatpush2.msra.mxu0 0.0
    %2711 = vmatprep.subr.mxu0 0.0
    %2712 = vmatpush2.msra.mxu0 0.0
    %2713 = vmatprep.subr.mxu0 0.0
    %2714 = vmatpush2.msra.mxu0 0.0
    %2715 = vmatprep.subr.mxu0 0.0
    %2716 = vmatpush2.msra.mxu0 0.0
    %2717 = vmatprep.subr.mxu0 0.0
    %2718 = vmatpush2.msra.mxu0 0.0
    %2719 = vmatprep.subr.mxu0 0.0
    %2720 = vmatpush2.msra.mxu0 0.0
    %2721 = vmatprep.subr.mxu0 0.0
    %2722 = vmatpush2.msra.mxu0 0.0
    %2723 = vmatprep.subr.mxu0 0.0
    %2724 = vmatpush2.msra.mxu0 0.0
    %2725 = vmatprep.mubr.f32.mxu0 0.0
    %2726 = vmatmul.mubr.f32.gmra.mxu0 %v2659
    %v2727 = vpop.f32.mrf.mxu0
    %v2728 = vadd.f32 %v2653, %v2727
    %v2729 = vpop.f32.mrf.mxu0
    %2730 = vdwg.mxu0
    %v2731 = vadd.f32 %v2728, %v287
    %v2734 = vunpack.c.l.s4 1966171168
    %v2735 = vunpack.c.0.s8 %v2734
    %v2736 = vlaneseq
    %v2737 = vshrl.u32 %v2736, 7
    %v2738 = vsub.s32 %v2735, %v2737
    %v2739 = vrot.slane %v2731, %v2738
    %v2740 = vcombine.high %v2739, %v2739
    %v2742 = vunpack.c.l.s4 1966171168
    %v2743 = vunpack.c.0.s8 %v2742
    %v2744 = vlaneseq
    %v2745 = vshrl.u32 %v2744, 7
    %v2746 = vsub.s32 %v2743, %v2745
    %v2747 = vrot.slane %v2739, %v2746
    %v2749 = vunpack.c.l.s4 1966171168
    %v2750 = vunpack.c.0.s8 %v2749
    %v2751 = vlaneseq
    %v2752 = vshrl.u32 %v2751, 7
    %v2753 = vsub.s32 %v2750, %v2752
    %v2754 = vrot.slane %v2740, %v2753
    %v2755 = vlaneseq
    %v2756 = vshrl.u32 %v2755, 7
    %v2757 = vsub.s32 0, %v2756
    %v2758 = vrot.slane %v2747, %v2757
    %v2759 = vlaneseq
    %v2760 = vshrl.u32 %v2759, 7
    %v2761 = vsub.s32 0, %v2760
    %v2762 = vrot.slane %v2754, %v2761
    %v2765 = vadd.f32 %v2758, %v134
    %v2766 = vadd.f32 %v2762, %v138
    %v2767 = vtanh.pop %v2765
    %v2768 = vtanh.pop %v2766
    %v2769 = vmul.f32 %v2767, %v329
    %v2770 = vmul.f32 %v2768, %v329
    %v2771 = vsel %vm332, %v2769, 0.0
    %2772 = vadd.xlane.f32.xlu0 %v2771
    %v2773 = vpop.xlane.xlu0 %2772
    %v2774 = vsel %vm332, %v2770, 0.0
    %2775 = vadd.xlane.f32.xlu0 %v2774
    %v2776 = vpop.xlane.xlu0 %2775
    %v2777 = vadd.f32 %v2773, %v344
    %v2778 = vadd.f32 %v2776, %v344
    %v2781 = vlaneseq
    %v2782 = vshrl.u32 %v2781, 7
    %v2783 = vsub.s32 %v351, %v2782
    %v2784 = vrot.slane %v2777, %v2783
    %v2785 = vlaneseq
    %v2786 = vshrl.u32 %v2785, 7
    %v2787 = vsub.s32 %v351, %v2786
    %v2788 = vrot.slane %v2778, %v2787
    %v2789 = vsel %vm360, %v2788, %v2784
    %v2791 = vsel %vm363, %v2789, -inf
    %2792 = vmax.xlane.f32.xlu0 %v2791
    %v2793 = vpop.xlane.xlu0 %2792
    %v2795 = vlaneseq
    %v2796 = vshrl.u32 %v2795, 7
    %v2797 = vsub.s32 0, %v2796
    %v2798 = vrot.slane %v2793, %v2797
    %v2799 = vlaneseq
    %v2800 = vshrl.u32 %v2799, 7
    %v2801 = vsub.s32 1, %v2800
    %v2802 = vrot.slane %v2793, %v2801
    %v2805 = vsub.f32 %v2777, %v2798
    %v2806 = vsub.f32 %v2778, %v2802
    %v2807 = vmul.f32 %v2805, 1.442695
    %v2808 = vpow.pop %v2807
    %v2809 = vmul.f32 %v2806, 1.442695
    %v2810 = vpow.pop %v2809
    %2813 = vset.pattern.permute.xlu0 0
    %2814 = vperm.xlu0 %2813, %v2808
    %v2815 = vpop.permute.xlu0 %2814
    %2816 = vset.pattern.permute.xlu0 0
    %2817 = vperm.xlu0 %2816, %v2810
    %v2818 = vpop.permute.xlu0 %2817
    %v2819 = vlaneseq
    %v2820 = vshrl.u32 %v2819, 7
    %v2821 = vsub.s32 %v351, %v2820
    %v2822 = vrot.slane %v2815, %v2821
    %v2823 = vlaneseq
    %v2824 = vshrl.u32 %v2823, 7
    %v2825 = vsub.s32 %v351, %v2824
    %v2826 = vrot.slane %v2818, %v2825
    %v2827 = vsel %vm360, %v2826, %v2822
    %v2829 = vsel %vm363, %v2827, 0.0
    %2830 = vadd.xlane.f32.xlu0 %v2829
    %v2831 = vpop.xlane.xlu0 %2830
    %v2833 = vlaneseq
    %v2834 = vshrl.u32 %v2833, 7
    %v2835 = vsub.s32 0, %v2834
    %v2836 = vrot.slane %v2831, %v2835
    %v2837 = vlaneseq
    %v2838 = vshrl.u32 %v2837, 7
    %v2839 = vsub.s32 1, %v2838
    %v2840 = vrot.slane %v2831, %v2839
    %v2843 = vrcp.pop %v2836
    %v2844 = vmul.f32 %v2808, %v2843
    %v2845 = vrcp.pop %v2840
    %v2846 = vmul.f32 %v2810, %v2845
    %v2847 = vlaneseq
    %v2848 = vshrl.u32 %v2847, 7
    %v2849 = vsub.s32 6, %v2848
    %v2850 = vrot.slane %v55, %v2849
    %2852 = vbcast.lane.b32.xlu0 %v2850, 256
    %v2853 = vpop.permute.xlu0 %2852
    %v2854 = vlaneseq
    %v2855 = vshrl.u32 %v2854, 7
    %v2856 = vsub.s32 6, %v2855
    %v2857 = vrot.slane %v56, %v2856
    %2859 = vbcast.lane.b32.xlu0 %v2857, 256
    %v2860 = vpop.permute.xlu0 %2859
    %v2863 = vmul.f32 %v2844, %v2853
    %v2864 = vmul.f32 %v2846, %v2860
    %2867 = vset.pattern.permute.xlu0 0
    %2868 = vperm.xlu0 %2867, %v2863
    %v2869 = vpop.permute.xlu0 %2868
    %2870 = vset.pattern.permute.xlu0 0
    %2871 = vperm.xlu0 %2870, %v2864
    %v2872 = vpop.permute.xlu0 %2871
    %v2873 = vlaneseq
    %v2874 = vshrl.u32 %v2873, 7
    %v2875 = vsub.s32 %v351, %v2874
    %v2876 = vrot.slane %v2869, %v2875
    %v2877 = vlaneseq
    %v2878 = vshrl.u32 %v2877, 7
    %v2879 = vsub.s32 %v351, %v2878
    %v2880 = vrot.slane %v2872, %v2879
    %v2881 = vsel %vm360, %v2880, %v2876
    %2883 = vrot.lane.b32.xlu0 %v2580, 68
    %v2884 = vpop.permute.xlu0 %2883
    %v2886 = vsel %vm458, %v2881, %v2884
    %v2888 = vsel %vm464, %v2886, 0
    %2890 = vmatprep.subr.mxu0 0.0
    %2891 = vmatpush1.msra.mxu0 0.0
    %2892 = vmatprep.subr.mxu0 0.0
    %2893 = vmatpush1.msra.mxu0 0.0
    %2894 = vmatprep.subr.mxu0 0.0
    %2895 = vmatpush1.msra.mxu0 0.0
    %2896 = vmatprep.subr.mxu0 0.0
    %2897 = vmatpush1.msra.mxu0 0.0
    %2898 = vmatprep.subr.mxu0 0.0
    %2899 = vmatpush1.msra.mxu0 0.0
    %2900 = vmatprep.subr.mxu0 0.0
    %2901 = vmatpush1.msra.mxu0 0.0
    %2902 = vmatprep.subr.mxu0 0.0
    %2903 = vmatpush1.msra.mxu0 0.0
    %2904 = vmatprep.subr.mxu0 0.0
    %2905 = vmatpush1.msra.mxu0 0.0
    %2906 = vmatprep.subr.mxu0 0.0
    %2907 = vmatpush1.msra.mxu0 0.0
    %2908 = vmatprep.subr.mxu0 0.0
    %2909 = vmatpush1.msra.mxu0 0.0
    %2910 = vmatprep.subr.mxu0 0.0
    %2911 = vmatpush1.msra.mxu0 0.0
    %2912 = vmatprep.subr.mxu0 0.0
    %2913 = vmatpush1.msra.mxu0 %v470
    %2914 = vmatprep.subr.mxu0 0.0
    %2915 = vmatpush1.msra.mxu0 %v30
    %2916 = vmatprep.subr.mxu0 0.0
    %2917 = vmatpush1.msra.mxu0 %v29
    %2918 = vmatprep.subr.mxu0 0.0
    %2919 = vmatpush1.msra.mxu0 %v28
    %2920 = vmatprep.subr.mxu0 0.0
    %2921 = vmatpush1.msra.mxu0 %v27
    %2922 = vmatprep.subr.mxu0 0.0
    %2923 = vmatpush2.msra.mxu0 0.0
    %2924 = vmatprep.subr.mxu0 0.0
    %2925 = vmatpush2.msra.mxu0 0.0
    %2926 = vmatprep.subr.mxu0 0.0
    %2927 = vmatpush2.msra.mxu0 0.0
    %2928 = vmatprep.subr.mxu0 0.0
    %2929 = vmatpush2.msra.mxu0 0.0
    %2930 = vmatprep.subr.mxu0 0.0
    %2931 = vmatpush2.msra.mxu0 0.0
    %2932 = vmatprep.subr.mxu0 0.0
    %2933 = vmatpush2.msra.mxu0 0.0
    %2934 = vmatprep.subr.mxu0 0.0
    %2935 = vmatpush2.msra.mxu0 0.0
    %2936 = vmatprep.subr.mxu0 0.0
    %2937 = vmatpush2.msra.mxu0 0.0
    %2938 = vmatprep.subr.mxu0 0.0
    %2939 = vmatpush2.msra.mxu0 0.0
    %2940 = vmatprep.subr.mxu0 0.0
    %2941 = vmatpush2.msra.mxu0 0.0
    %2942 = vmatprep.subr.mxu0 0.0
    %2943 = vmatpush2.msra.mxu0 0.0
    %2944 = vmatprep.subr.mxu0 0.0
    %2945 = vmatpush2.msra.mxu0 0.0
    %2946 = vmatprep.subr.mxu0 0.0
    %2947 = vmatpush2.msra.mxu0 0.0
    %2948 = vmatprep.subr.mxu0 0.0
    %2949 = vmatpush2.msra.mxu0 0.0
    %2950 = vmatprep.subr.mxu0 0.0
    %2951 = vmatpush2.msra.mxu0 0.0
    %2952 = vmatprep.subr.mxu0 0.0
    %2953 = vmatpush2.msra.mxu0 0.0
    %2954 = vmatprep.mubr.f32.mxu0 0.0
    %2955 = vmatmul.mubr.f32.gmra.mxu0 %v2888
    %v2956 = vpop.f32.mrf.mxu0
    %v2957 = vadd.f32 %v463, %v2956
    %v2958 = vpop.f32.mrf.mxu0
    %2959 = vdwg.mxu0
    %v2960 = vxor.u32 %v2957, 2147483648
    %v2961 = vmul.f32 %v2960, 1.442695
    %v2962 = vpow.pop %v2961
    %v2963 = vadd.f32 %v2962, 1.0
    %v2964 = vrcp.pop %v2963
    %v2965 = vmul.f32 1.0, %v2964
    %v2966 = vtanh.pop %v2957
    %v2967 = vmul.f32 %v2965, %v2574
    %2969 = vrot.lane.b32.xlu0 %v2966, 32
    %v2970 = vpop.permute.xlu0 %2969
    %v2972 = vmul.f32 %v2965, %v2970
    %2974 = vrot.lane.b32.xlu0 %v2972, 32
    %v2975 = vpop.permute.xlu0 %2974
    %v2977 = vadd.f32 %v2967, %v2975
    %v2978 = vtanh.pop %v2977
    %2980 = vrot.lane.b32.xlu0 %v2978, 32
    %v2981 = vpop.permute.xlu0 %2980
    %v2983 = vmul.f32 %v2965, %v2981
    %2985 = vrot.lane.b32.xlu0 %v2977, 96
    %v2986 = vpop.permute.xlu0 %2985
    %v2987 = vsel %vm140, %v2986, 0
    %2989 = vmatprep.subr.mxu0 0.0
    %2990 = vmatpush1.msra.mxu0 0.0
    %2991 = vmatprep.subr.mxu0 0.0
    %2992 = vmatpush1.msra.mxu0 0.0
    %2993 = vmatprep.subr.mxu0 0.0
    %2994 = vmatpush1.msra.mxu0 0.0
    %2995 = vmatprep.subr.mxu0 0.0
    %2996 = vmatpush1.msra.mxu0 0.0
    %2997 = vmatprep.subr.mxu0 0.0
    %2998 = vmatpush1.msra.mxu0 0.0
    %2999 = vmatprep.subr.mxu0 0.0
    %3000 = vmatpush1.msra.mxu0 0.0
    %3001 = vmatprep.subr.mxu0 0.0
    %3002 = vmatpush1.msra.mxu0 0.0
    %3003 = vmatprep.subr.mxu0 0.0
    %3004 = vmatpush1.msra.mxu0 0.0
    %3005 = vmatprep.subr.mxu0 0.0
    %3006 = vmatpush1.msra.mxu0 0.0
    %3007 = vmatprep.subr.mxu0 0.0
    %3008 = vmatpush1.msra.mxu0 0.0
    %3009 = vmatprep.subr.mxu0 0.0
    %3010 = vmatpush1.msra.mxu0 0.0
    %3011 = vmatprep.subr.mxu0 0.0
    %3012 = vmatpush1.msra.mxu0 0.0
    %3013 = vmatprep.subr.mxu0 0.0
    %3014 = vmatpush1.msra.mxu0 %v40
    %3015 = vmatprep.subr.mxu0 0.0
    %3016 = vmatpush1.msra.mxu0 %v39
    %3017 = vmatprep.subr.mxu0 0.0
    %3018 = vmatpush1.msra.mxu0 %v38
    %3019 = vmatprep.subr.mxu0 0.0
    %3020 = vmatpush1.msra.mxu0 %v37
    %3021 = vmatprep.subr.mxu0 0.0
    %3022 = vmatpush2.msra.mxu0 0.0
    %3023 = vmatprep.subr.mxu0 0.0
    %3024 = vmatpush2.msra.mxu0 0.0
    %3025 = vmatprep.subr.mxu0 0.0
    %3026 = vmatpush2.msra.mxu0 0.0
    %3027 = vmatprep.subr.mxu0 0.0
    %3028 = vmatpush2.msra.mxu0 0.0
    %3029 = vmatprep.subr.mxu0 0.0
    %3030 = vmatpush2.msra.mxu0 0.0
    %3031 = vmatprep.subr.mxu0 0.0
    %3032 = vmatpush2.msra.mxu0 0.0
    %3033 = vmatprep.subr.mxu0 0.0
    %3034 = vmatpush2.msra.mxu0 0.0
    %3035 = vmatprep.subr.mxu0 0.0
    %3036 = vmatpush2.msra.mxu0 0.0
    %3037 = vmatprep.subr.mxu0 0.0
    %3038 = vmatpush2.msra.mxu0 0.0
    %3039 = vmatprep.subr.mxu0 0.0
    %3040 = vmatpush2.msra.mxu0 0.0
    %3041 = vmatprep.subr.mxu0 0.0
    %3042 = vmatpush2.msra.mxu0 0.0
    %3043 = vmatprep.subr.mxu0 0.0
    %3044 = vmatpush2.msra.mxu0 0.0
    %3045 = vmatprep.subr.mxu0 0.0
    %3046 = vmatpush2.msra.mxu0 0.0
    %3047 = vmatprep.subr.mxu0 0.0
    %3048 = vmatpush2.msra.mxu0 0.0
    %3049 = vmatprep.subr.mxu0 0.0
    %3050 = vmatpush2.msra.mxu0 0.0
    %3051 = vmatprep.subr.mxu0 0.0
    %3052 = vmatpush2.msra.mxu0 0.0
    %3053 = vmatprep.mubr.f32.mxu0 0.0
    %3054 = vmatmul.mubr.f32.gmra.mxu0 %v2987
    %v3055 = vpop.f32.mrf.mxu0
    %v3056 = vadd.f32 0.0, %v3055
    %v3057 = vpop.f32.mrf.mxu0
    %3058 = vdwg.mxu0
    %3060 = vrot.lane.b32.xlu0 %v2983, 64
    %v3061 = vpop.permute.xlu0 %3060
    %v3062 = vsel %vm140, %v3061, 0
    %3064 = vmatprep.subr.mxu0 0.0
    %3065 = vmatpush1.msra.mxu0 0.0
    %3066 = vmatprep.subr.mxu0 0.0
    %3067 = vmatpush1.msra.mxu0 0.0
    %3068 = vmatprep.subr.mxu0 0.0
    %3069 = vmatpush1.msra.mxu0 0.0
    %3070 = vmatprep.subr.mxu0 0.0
    %3071 = vmatpush1.msra.mxu0 0.0
    %3072 = vmatprep.subr.mxu0 0.0
    %3073 = vmatpush1.msra.mxu0 0.0
    %3074 = vmatprep.subr.mxu0 0.0
    %3075 = vmatpush1.msra.mxu0 0.0
    %3076 = vmatprep.subr.mxu0 0.0
    %3077 = vmatpush1.msra.mxu0 0.0
    %3078 = vmatprep.subr.mxu0 0.0
    %3079 = vmatpush1.msra.mxu0 0.0
    %3080 = vmatprep.subr.mxu0 0.0
    %3081 = vmatpush1.msra.mxu0 0.0
    %3082 = vmatprep.subr.mxu0 0.0
    %3083 = vmatpush1.msra.mxu0 0.0
    %3084 = vmatprep.subr.mxu0 0.0
    %3085 = vmatpush1.msra.mxu0 0.0
    %3086 = vmatprep.subr.mxu0 0.0
    %3087 = vmatpush1.msra.mxu0 0.0
    %3088 = vmatprep.subr.mxu0 0.0
    %3089 = vmatpush1.msra.mxu0 %v36
    %3090 = vmatprep.subr.mxu0 0.0
    %3091 = vmatpush1.msra.mxu0 %v35
    %3092 = vmatprep.subr.mxu0 0.0
    %3093 = vmatpush1.msra.mxu0 %v34
    %3094 = vmatprep.subr.mxu0 0.0
    %3095 = vmatpush1.msra.mxu0 %v33
    %3096 = vmatprep.subr.mxu0 0.0
    %3097 = vmatpush2.msra.mxu0 0.0
    %3098 = vmatprep.subr.mxu0 0.0
    %3099 = vmatpush2.msra.mxu0 0.0
    %3100 = vmatprep.subr.mxu0 0.0
    %3101 = vmatpush2.msra.mxu0 0.0
    %3102 = vmatprep.subr.mxu0 0.0
    %3103 = vmatpush2.msra.mxu0 0.0
    %3104 = vmatprep.subr.mxu0 0.0
    %3105 = vmatpush2.msra.mxu0 0.0
    %3106 = vmatprep.subr.mxu0 0.0
    %3107 = vmatpush2.msra.mxu0 0.0
    %3108 = vmatprep.subr.mxu0 0.0
    %3109 = vmatpush2.msra.mxu0 0.0
    %3110 = vmatprep.subr.mxu0 0.0
    %3111 = vmatpush2.msra.mxu0 0.0
    %3112 = vmatprep.subr.mxu0 0.0
    %3113 = vmatpush2.msra.mxu0 0.0
    %3114 = vmatprep.subr.mxu0 0.0
    %3115 = vmatpush2.msra.mxu0 0.0
    %3116 = vmatprep.subr.mxu0 0.0
    %3117 = vmatpush2.msra.mxu0 0.0
    %3118 = vmatprep.subr.mxu0 0.0
    %3119 = vmatpush2.msra.mxu0 0.0
    %3120 = vmatprep.subr.mxu0 0.0
    %3121 = vmatpush2.msra.mxu0 0.0
    %3122 = vmatprep.subr.mxu0 0.0
    %3123 = vmatpush2.msra.mxu0 0.0
    %3124 = vmatprep.subr.mxu0 0.0
    %3125 = vmatpush2.msra.mxu0 0.0
    %3126 = vmatprep.subr.mxu0 0.0
    %3127 = vmatpush2.msra.mxu0 0.0
    %3128 = vmatprep.mubr.f32.mxu0 0.0
    %3129 = vmatmul.mubr.f32.gmra.mxu0 %v3062
    %v3130 = vpop.f32.mrf.mxu0
    %v3131 = vadd.f32 %v3056, %v3130
    %v3132 = vpop.f32.mrf.mxu0
    %3133 = vdwg.mxu0
    %v3134 = vadd.f32 %v3131, %v287
    %v3137 = vunpack.c.l.s4 1966171168
    %v3138 = vunpack.c.0.s8 %v3137
    %v3139 = vlaneseq
    %v3140 = vshrl.u32 %v3139, 7
    %v3141 = vsub.s32 %v3138, %v3140
    %v3142 = vrot.slane %v3134, %v3141
    %v3143 = vcombine.high %v3142, %v3142
    %v3145 = vunpack.c.l.s4 1966171168
    %v3146 = vunpack.c.0.s8 %v3145
    %v3147 = vlaneseq
    %v3148 = vshrl.u32 %v3147, 7
    %v3149 = vsub.s32 %v3146, %v3148
    %v3150 = vrot.slane %v3142, %v3149
    %v3152 = vunpack.c.l.s4 1966171168
    %v3153 = vunpack.c.0.s8 %v3152
    %v3154 = vlaneseq
    %v3155 = vshrl.u32 %v3154, 7
    %v3156 = vsub.s32 %v3153, %v3155
    %v3157 = vrot.slane %v3143, %v3156
    %v3158 = vlaneseq
    %v3159 = vshrl.u32 %v3158, 7
    %v3160 = vsub.s32 0, %v3159
    %v3161 = vrot.slane %v3150, %v3160
    %v3162 = vlaneseq
    %v3163 = vshrl.u32 %v3162, 7
    %v3164 = vsub.s32 0, %v3163
    %v3165 = vrot.slane %v3157, %v3164
    %v3168 = vadd.f32 %v3161, %v134
    %v3169 = vadd.f32 %v3165, %v138
    %v3170 = vtanh.pop %v3168
    %v3171 = vtanh.pop %v3169
    %v3172 = vmul.f32 %v3170, %v329
    %v3173 = vmul.f32 %v3171, %v329
    %v3174 = vsel %vm332, %v3172, 0.0
    %3175 = vadd.xlane.f32.xlu0 %v3174
    %v3176 = vpop.xlane.xlu0 %3175
    %v3177 = vsel %vm332, %v3173, 0.0
    %3178 = vadd.xlane.f32.xlu0 %v3177
    %v3179 = vpop.xlane.xlu0 %3178
    %v3180 = vadd.f32 %v3176, %v344
    %v3181 = vadd.f32 %v3179, %v344
    %v3184 = vlaneseq
    %v3185 = vshrl.u32 %v3184, 7
    %v3186 = vsub.s32 %v351, %v3185
    %v3187 = vrot.slane %v3180, %v3186
    %v3188 = vlaneseq
    %v3189 = vshrl.u32 %v3188, 7
    %v3190 = vsub.s32 %v351, %v3189
    %v3191 = vrot.slane %v3181, %v3190
    %v3192 = vsel %vm360, %v3191, %v3187
    %v3194 = vsel %vm363, %v3192, -inf
    %3195 = vmax.xlane.f32.xlu0 %v3194
    %v3196 = vpop.xlane.xlu0 %3195
    %v3198 = vlaneseq
    %v3199 = vshrl.u32 %v3198, 7
    %v3200 = vsub.s32 0, %v3199
    %v3201 = vrot.slane %v3196, %v3200
    %v3202 = vlaneseq
    %v3203 = vshrl.u32 %v3202, 7
    %v3204 = vsub.s32 1, %v3203
    %v3205 = vrot.slane %v3196, %v3204
    %v3208 = vsub.f32 %v3180, %v3201
    %v3209 = vsub.f32 %v3181, %v3205
    %v3210 = vmul.f32 %v3208, 1.442695
    %v3211 = vpow.pop %v3210
    %v3212 = vmul.f32 %v3209, 1.442695
    %v3213 = vpow.pop %v3212
    %3216 = vset.pattern.permute.xlu0 0
    %3217 = vperm.xlu0 %3216, %v3211
    %v3218 = vpop.permute.xlu0 %3217
    %3219 = vset.pattern.permute.xlu0 0
    %3220 = vperm.xlu0 %3219, %v3213
    %v3221 = vpop.permute.xlu0 %3220
    %v3222 = vlaneseq
    %v3223 = vshrl.u32 %v3222, 7
    %v3224 = vsub.s32 %v351, %v3223
    %v3225 = vrot.slane %v3218, %v3224
    %v3226 = vlaneseq
    %v3227 = vshrl.u32 %v3226, 7
    %v3228 = vsub.s32 %v351, %v3227
    %v3229 = vrot.slane %v3221, %v3228
    %v3230 = vsel %vm360, %v3229, %v3225
    %v3232 = vsel %vm363, %v3230, 0.0
    %3233 = vadd.xlane.f32.xlu0 %v3232
    %v3234 = vpop.xlane.xlu0 %3233
    %v3236 = vlaneseq
    %v3237 = vshrl.u32 %v3236, 7
    %v3238 = vsub.s32 0, %v3237
    %v3239 = vrot.slane %v3234, %v3238
    %v3240 = vlaneseq
    %v3241 = vshrl.u32 %v3240, 7
    %v3242 = vsub.s32 1, %v3241
    %v3243 = vrot.slane %v3234, %v3242
    %v3246 = vrcp.pop %v3239
    %v3247 = vmul.f32 %v3211, %v3246
    %v3248 = vrcp.pop %v3243
    %v3249 = vmul.f32 %v3213, %v3248
    %v3250 = vlaneseq
    %v3251 = vshrl.u32 %v3250, 7
    %v3252 = vsub.s32 7, %v3251
    %v3253 = vrot.slane %v55, %v3252
    %3255 = vbcast.lane.b32.xlu0 %v3253, 256
    %v3256 = vpop.permute.xlu0 %3255
    %v3257 = vlaneseq
    %v3258 = vshrl.u32 %v3257, 7
    %v3259 = vsub.s32 7, %v3258
    %v3260 = vrot.slane %v56, %v3259
    %3262 = vbcast.lane.b32.xlu0 %v3260, 256
    %v3263 = vpop.permute.xlu0 %3262
    %v3266 = vmul.f32 %v3247, %v3256
    %v3267 = vmul.f32 %v3249, %v3263
    %3270 = vset.pattern.permute.xlu0 0
    %3271 = vperm.xlu0 %3270, %v3266
    %v3272 = vpop.permute.xlu0 %3271
    %3273 = vset.pattern.permute.xlu0 0
    %3274 = vperm.xlu0 %3273, %v3267
    %v3275 = vpop.permute.xlu0 %3274
    %v3276 = vlaneseq
    %v3277 = vshrl.u32 %v3276, 7
    %v3278 = vsub.s32 %v351, %v3277
    %v3279 = vrot.slane %v3272, %v3278
    %v3280 = vlaneseq
    %v3281 = vshrl.u32 %v3280, 7
    %v3282 = vsub.s32 %v351, %v3281
    %v3283 = vrot.slane %v3275, %v3282
    %v3284 = vsel %vm360, %v3283, %v3279
    %3286 = vrot.lane.b32.xlu0 %v2983, 68
    %v3287 = vpop.permute.xlu0 %3286
    %v3289 = vsel %vm458, %v3284, %v3287
    %v3291 = vsel %vm464, %v3289, 0
    %3293 = vmatprep.subr.mxu0 0.0
    %3294 = vmatpush1.msra.mxu0 0.0
    %3295 = vmatprep.subr.mxu0 0.0
    %3296 = vmatpush1.msra.mxu0 0.0
    %3297 = vmatprep.subr.mxu0 0.0
    %3298 = vmatpush1.msra.mxu0 0.0
    %3299 = vmatprep.subr.mxu0 0.0
    %3300 = vmatpush1.msra.mxu0 0.0
    %3301 = vmatprep.subr.mxu0 0.0
    %3302 = vmatpush1.msra.mxu0 0.0
    %3303 = vmatprep.subr.mxu0 0.0
    %3304 = vmatpush1.msra.mxu0 0.0
    %3305 = vmatprep.subr.mxu0 0.0
    %3306 = vmatpush1.msra.mxu0 0.0
    %3307 = vmatprep.subr.mxu0 0.0
    %3308 = vmatpush1.msra.mxu0 0.0
    %3309 = vmatprep.subr.mxu0 0.0
    %3310 = vmatpush1.msra.mxu0 0.0
    %3311 = vmatprep.subr.mxu0 0.0
    %3312 = vmatpush1.msra.mxu0 0.0
    %3313 = vmatprep.subr.mxu0 0.0
    %3314 = vmatpush1.msra.mxu0 0.0
    %3315 = vmatprep.subr.mxu0 0.0
    %3316 = vmatpush1.msra.mxu0 %v470
    %3317 = vmatprep.subr.mxu0 0.0
    %3318 = vmatpush1.msra.mxu0 %v30
    %3319 = vmatprep.subr.mxu0 0.0
    %3320 = vmatpush1.msra.mxu0 %v29
    %3321 = vmatprep.subr.mxu0 0.0
    %3322 = vmatpush1.msra.mxu0 %v28
    %3323 = vmatprep.subr.mxu0 0.0
    %3324 = vmatpush1.msra.mxu0 %v27
    %3325 = vmatprep.subr.mxu0 0.0
    %3326 = vmatpush2.msra.mxu0 0.0
    %3327 = vmatprep.subr.mxu0 0.0
    %3328 = vmatpush2.msra.mxu0 0.0
    %3329 = vmatprep.subr.mxu0 0.0
    %3330 = vmatpush2.msra.mxu0 0.0
    %3331 = vmatprep.subr.mxu0 0.0
    %3332 = vmatpush2.msra.mxu0 0.0
    %3333 = vmatprep.subr.mxu0 0.0
    %3334 = vmatpush2.msra.mxu0 0.0
    %3335 = vmatprep.subr.mxu0 0.0
    %3336 = vmatpush2.msra.mxu0 0.0
    %3337 = vmatprep.subr.mxu0 0.0
    %3338 = vmatpush2.msra.mxu0 0.0
    %3339 = vmatprep.subr.mxu0 0.0
    %3340 = vmatpush2.msra.mxu0 0.0
    %3341 = vmatprep.subr.mxu0 0.0
    %3342 = vmatpush2.msra.mxu0 0.0
    %3343 = vmatprep.subr.mxu0 0.0
    %3344 = vmatpush2.msra.mxu0 0.0
    %3345 = vmatprep.subr.mxu0 0.0
    %3346 = vmatpush2.msra.mxu0 0.0
    %3347 = vmatprep.subr.mxu0 0.0
    %3348 = vmatpush2.msra.mxu0 0.0
    %3349 = vmatprep.subr.mxu0 0.0
    %3350 = vmatpush2.msra.mxu0 0.0
    %3351 = vmatprep.subr.mxu0 0.0
    %3352 = vmatpush2.msra.mxu0 0.0
    %3353 = vmatprep.subr.mxu0 0.0
    %3354 = vmatpush2.msra.mxu0 0.0
    %3355 = vmatprep.subr.mxu0 0.0
    %3356 = vmatpush2.msra.mxu0 0.0
    %3357 = vmatprep.mubr.f32.mxu0 0.0
    %3358 = vmatmul.mubr.f32.gmra.mxu0 %v3291
    %v3359 = vpop.f32.mrf.mxu0
    %v3360 = vadd.f32 %v463, %v3359
    %v3361 = vpop.f32.mrf.mxu0
    %3362 = vdwg.mxu0
    %v3363 = vxor.u32 %v3360, 2147483648
    %v3364 = vmul.f32 %v3363, 1.442695
    %v3365 = vpow.pop %v3364
    %v3366 = vadd.f32 %v3365, 1.0
    %v3367 = vrcp.pop %v3366
    %v3368 = vmul.f32 1.0, %v3367
    %v3369 = vtanh.pop %v3360
    %v3370 = vmul.f32 %v3368, %v2977
    %3372 = vrot.lane.b32.xlu0 %v3369, 32
    %v3373 = vpop.permute.xlu0 %3372
    %v3375 = vmul.f32 %v3368, %v3373
    %3377 = vrot.lane.b32.xlu0 %v3375, 32
    %v3378 = vpop.permute.xlu0 %3377
    %v3380 = vadd.f32 %v3370, %v3378
    %v3381 = vtanh.pop %v3380
    %3383 = vrot.lane.b32.xlu0 %v3381, 32
    %v3384 = vpop.permute.xlu0 %3383
    %v3386 = vmul.f32 %v3368, %v3384
    %v3388 = vunpack.c.l.s4 1966171168
    %v3389 = vunpack.c.0.s8 %v3388
    %v3390 = vlaneseq
    %v3391 = vshrl.u32 %v3390, 7
    %v3392 = vsub.s32 %v3389, %v3391
    %v3393 = vrot.slane %v565, %v3392
    %v3394 = vcombine.high %v3393, %v3393
    %v3396 = vunpack.c.l.s4 1966171168
    %v3397 = vunpack.c.0.s8 %v3396
    %v3398 = vlaneseq
    %v3399 = vshrl.u32 %v3398, 7
    %v3400 = vsub.s32 %v3397, %v3399
    %v3401 = vrot.slane %v3393, %v3400
    %v3403 = vunpack.c.l.s4 1966171168
    %v3404 = vunpack.c.0.s8 %v3403
    %v3405 = vlaneseq
    %v3406 = vshrl.u32 %v3405, 7
    %v3407 = vsub.s32 %v3404, %v3406
    %v3408 = vrot.slane %v3394, %v3407
    %v3412 = vunpack.c.l.s4 1966171168
    %v3413 = vunpack.c.0.s8 %v3412
    %v3414 = vlaneseq
    %v3415 = vshrl.u32 %v3414, 7
    %v3416 = vsub.s32 %v3413, %v3415
    %v3417 = vrot.slane %v968, %v3416
    %v3418 = vcombine.high %v3417, %v3417
    %v3420 = vunpack.c.l.s4 1966171168
    %v3421 = vunpack.c.0.s8 %v3420
    %v3422 = vlaneseq
    %v3423 = vshrl.u32 %v3422, 7
    %v3424 = vsub.s32 %v3421, %v3423
    %v3425 = vrot.slane %v3417, %v3424
    %v3427 = vunpack.c.l.s4 1966171168
    %v3428 = vunpack.c.0.s8 %v3427
    %v3429 = vlaneseq
    %v3430 = vshrl.u32 %v3429, 7
    %v3431 = vsub.s32 %v3428, %v3430
    %v3432 = vrot.slane %v3418, %v3431
    %v3434 = vunpack.c.l.s4 1966171168
    %v3435 = vunpack.c.0.s8 %v3434
    %v3436 = vlaneseq
    %v3437 = vshrl.u32 %v3436, 7
    %v3438 = vsub.s32 %v3435, %v3437
    %v3439 = vrot.slane %v1371, %v3438
    %v3440 = vcombine.high %v3439, %v3439
    %v3442 = vunpack.c.l.s4 1966171168
    %v3443 = vunpack.c.0.s8 %v3442
    %v3444 = vlaneseq
    %v3445 = vshrl.u32 %v3444, 7
    %v3446 = vsub.s32 %v3443, %v3445
    %v3447 = vrot.slane %v3439, %v3446
    %v3449 = vunpack.c.l.s4 1966171168
    %v3450 = vunpack.c.0.s8 %v3449
    %v3451 = vlaneseq
    %v3452 = vshrl.u32 %v3451, 7
    %v3453 = vsub.s32 %v3450, %v3452
    %v3454 = vrot.slane %v3440, %v3453
    %v3456 = vunpack.c.l.s4 1966171168
    %v3457 = vunpack.c.0.s8 %v3456
    %v3458 = vlaneseq
    %v3459 = vshrl.u32 %v3458, 7
    %v3460 = vsub.s32 %v3457, %v3459
    %v3461 = vrot.slane %v1774, %v3460
    %v3462 = vcombine.high %v3461, %v3461
    %v3464 = vunpack.c.l.s4 1966171168
    %v3465 = vunpack.c.0.s8 %v3464
    %v3466 = vlaneseq
    %v3467 = vshrl.u32 %v3466, 7
    %v3468 = vsub.s32 %v3465, %v3467
    %v3469 = vrot.slane %v3461, %v3468
    %v3471 = vunpack.c.l.s4 1966171168
    %v3472 = vunpack.c.0.s8 %v3471
    %v3473 = vlaneseq
    %v3474 = vshrl.u32 %v3473, 7
    %v3475 = vsub.s32 %v3472, %v3474
    %v3476 = vrot.slane %v3462, %v3475
    %v3478 = vunpack.c.l.s4 1966171168
    %v3479 = vunpack.c.0.s8 %v3478
    %v3480 = vlaneseq
    %v3481 = vshrl.u32 %v3480, 7
    %v3482 = vsub.s32 %v3479, %v3481
    %v3483 = vrot.slane %v2177, %v3482
    %v3484 = vcombine.high %v3483, %v3483
    %v3486 = vunpack.c.l.s4 1966171168
    %v3487 = vunpack.c.0.s8 %v3486
    %v3488 = vlaneseq
    %v3489 = vshrl.u32 %v3488, 7
    %v3490 = vsub.s32 %v3487, %v3489
    %v3491 = vrot.slane %v3483, %v3490
    %v3493 = vunpack.c.l.s4 1966171168
    %v3494 = vunpack.c.0.s8 %v3493
    %v3495 = vlaneseq
    %v3496 = vshrl.u32 %v3495, 7
    %v3497 = vsub.s32 %v3494, %v3496
    %v3498 = vrot.slane %v3484, %v3497
    %v3500 = vunpack.c.l.s4 1966171168
    %v3501 = vunpack.c.0.s8 %v3500
    %v3502 = vlaneseq
    %v3503 = vshrl.u32 %v3502, 7
    %v3504 = vsub.s32 %v3501, %v3503
    %v3505 = vrot.slane %v2580, %v3504
    %v3506 = vcombine.high %v3505, %v3505
    %v3508 = vunpack.c.l.s4 1966171168
    %v3509 = vunpack.c.0.s8 %v3508
    %v3510 = vlaneseq
    %v3511 = vshrl.u32 %v3510, 7
    %v3512 = vsub.s32 %v3509, %v3511
    %v3513 = vrot.slane %v3505, %v3512
    %v3515 = vunpack.c.l.s4 1966171168
    %v3516 = vunpack.c.0.s8 %v3515
    %v3517 = vlaneseq
    %v3518 = vshrl.u32 %v3517, 7
    %v3519 = vsub.s32 %v3516, %v3518
    %v3520 = vrot.slane %v3506, %v3519
    %v3522 = vunpack.c.l.s4 1966171168
    %v3523 = vunpack.c.0.s8 %v3522
    %v3524 = vlaneseq
    %v3525 = vshrl.u32 %v3524, 7
    %v3526 = vsub.s32 %v3523, %v3525
    %v3527 = vrot.slane %v2983, %v3526
    %v3528 = vcombine.high %v3527, %v3527
    %v3530 = vunpack.c.l.s4 1966171168
    %v3531 = vunpack.c.0.s8 %v3530
    %v3532 = vlaneseq
    %v3533 = vshrl.u32 %v3532, 7
    %v3534 = vsub.s32 %v3531, %v3533
    %v3535 = vrot.slane %v3527, %v3534
    %v3537 = vunpack.c.l.s4 1966171168
    %v3538 = vunpack.c.0.s8 %v3537
    %v3539 = vlaneseq
    %v3540 = vshrl.u32 %v3539, 7
    %v3541 = vsub.s32 %v3538, %v3540
    %v3542 = vrot.slane %v3528, %v3541
    %v3545 = vunpack.c.l.s4 1966171168
    %v3546 = vunpack.c.0.s8 %v3545
    %v3547 = vlaneseq
    %v3548 = vshrl.u32 %v3547, 7
    %v3549 = vsub.s32 %v3546, %v3548
    %v3550 = vrot.slane %v3386, %v3549
    %v3551 = vcombine.high %v3550, %v3550
    %v3553 = vunpack.c.l.s4 1966171168
    %v3554 = vunpack.c.0.s8 %v3553
    %v3555 = vlaneseq
    %v3556 = vshrl.u32 %v3555, 7
    %v3557 = vsub.s32 %v3554, %v3556
    %v3558 = vrot.slane %v3550, %v3557
    %v3560 = vunpack.c.l.s4 1966171168
    %v3561 = vunpack.c.0.s8 %v3560
    %v3562 = vlaneseq
    %v3563 = vshrl.u32 %v3562, 7
    %v3564 = vsub.s32 %v3561, %v3563
    %v3565 = vrot.slane %v3551, %v3564
    %v3566 = vlaneseq
    %v3567 = vshrl.u32 %v3566, 7
    %v3568 = vsub.s32 0, %v3567
    %v3569 = vrot.slane %v3425, %v3568
    %v3570 = vlaneseq
    %v3571 = vshrl.u32 %v3570, 7
    %v3572 = vsub.s32 0, %v3571
    %v3573 = vrot.slane %v3432, %v3572
    %v3576 = vlaneseq
    %v3577 = vshrl.u32 %v3576, 7
    %v3578 = vsub.s32 0, %v3577
    %v3579 = vrot.slane %v3447, %v3578
    %v3580 = vlaneseq
    %v3581 = vshrl.u32 %v3580, 7
    %v3582 = vsub.s32 0, %v3581
    %v3583 = vrot.slane %v3454, %v3582
    %v3586 = vlaneseq
    %v3587 = vshrl.u32 %v3586, 7
    %v3588 = vsub.s32 0, %v3587
    %v3589 = vrot.slane %v3469, %v3588
    %v3590 = vlaneseq
    %v3591 = vshrl.u32 %v3590, 7
    %v3592 = vsub.s32 0, %v3591
    %v3593 = vrot.slane %v3476, %v3592
    %v3596 = vlaneseq
    %v3597 = vshrl.u32 %v3596, 7
    %v3598 = vsub.s32 0, %v3597
    %v3599 = vrot.slane %v3491, %v3598
    %v3600 = vlaneseq
    %v3601 = vshrl.u32 %v3600, 7
    %v3602 = vsub.s32 0, %v3601
    %v3603 = vrot.slane %v3498, %v3602
    %v3606 = vlaneseq
    %v3607 = vshrl.u32 %v3606, 7
    %v3608 = vsub.s32 0, %v3607
    %v3609 = vrot.slane %v3513, %v3608
    %v3610 = vlaneseq
    %v3611 = vshrl.u32 %v3610, 7
    %v3612 = vsub.s32 0, %v3611
    %v3613 = vrot.slane %v3520, %v3612
    %v3616 = vlaneseq
    %v3617 = vshrl.u32 %v3616, 7
    %v3618 = vsub.s32 0, %v3617
    %v3619 = vrot.slane %v3535, %v3618
    %v3620 = vlaneseq
    %v3621 = vshrl.u32 %v3620, 7
    %v3622 = vsub.s32 0, %v3621
    %v3623 = vrot.slane %v3542, %v3622
    %v3626 = vlaneseq
    %v3627 = vshrl.u32 %v3626, 7
    %v3628 = vsub.s32 0, %v3627
    %v3629 = vrot.slane %v3558, %v3628
    %v3630 = vlaneseq
    %v3631 = vshrl.u32 %v3630, 7
    %v3632 = vsub.s32 0, %v3631
    %v3633 = vrot.slane %v3565, %v3632
    %vm3636 = vcmask 1040384
    %v3637 = vsel %vm3636, %v3401, %v3569
    %v3638 = vsel %vm3636, %v3408, %v3573
    %vm3639 = vcmask 1041408
    %v3640 = vsel %vm3639, %v3637, %v3579
    %v3641 = vsel %vm3639, %v3638, %v3583
    %vm3642 = vcmask 1042432
    %v3643 = vsel %vm3642, %v3640, %v3589
    %v3644 = vsel %vm3642, %v3641, %v3593
    %v3645 = vsel %vm468, %v3643, %v3599
    %v3646 = vsel %vm468, %v3644, %v3603
    %vm3647 = vcmask 1044480
    %v3648 = vsel %vm3647, %v3645, %v3609
    %v3649 = vsel %vm3647, %v3646, %v3613
    %vm3650 = vcmask 1045504
    %v3651 = vsel %vm3650, %v3648, %v3619
    %v3652 = vsel %vm3650, %v3649, %v3623
    %vm3653 = vcmask 1046528
    %v3654 = vsel %vm3653, %v3651, %v3629
    %v3655 = vsel %vm3653, %v3652, %v3633
    %v3656 = vlaneseq
    %v3657 = vshrl.u32 %v3656, 7
    %v3658 = vsub.s32 0, %v3657
    %v3659 = vrot.slane %v54, %v3658
    %3662 = vrot.lane.b32.xlu0 %v3654, 64
    %v3663 = vpop.permute.xlu0 %3662
    %3664 = vrot.lane.b32.xlu0 %v3655, 64
    %v3665 = vpop.permute.xlu0 %3664
    %v3666 = vsel %vm140, %v3663, 0
    %v3668 = vsel %vm140, %v3665, 0
    %3670 = vmatprep.subr.mxu0 0.0
    %3671 = vmatpush1.msra.mxu0 0.0
    %3672 = vmatprep.subr.mxu0 0.0
    %3673 = vmatpush1.msra.mxu0 0.0
    %3674 = vmatprep.subr.mxu0 0.0
    %3675 = vmatpush1.msra.mxu0 0.0
    %3676 = vmatprep.subr.mxu0 0.0
    %3677 = vmatpush1.msra.mxu0 0.0
    %3678 = vmatprep.subr.mxu0 0.0
    %3679 = vmatpush1.msra.mxu0 0.0
    %3680 = vmatprep.subr.mxu0 0.0
    %3681 = vmatpush1.msra.mxu0 0.0
    %3682 = vmatprep.subr.mxu0 0.0
    %3683 = vmatpush1.msra.mxu0 0.0
    %3684 = vmatprep.subr.mxu0 0.0
    %3685 = vmatpush1.msra.mxu0 0.0
    %3686 = vmatprep.subr.mxu0 0.0
    %3687 = vmatpush1.msra.mxu0 0.0
    %3688 = vmatprep.subr.mxu0 0.0
    %3689 = vmatpush1.msra.mxu0 0.0
    %3690 = vmatprep.subr.mxu0 0.0
    %3691 = vmatpush1.msra.mxu0 0.0
    %3692 = vmatprep.subr.mxu0 0.0
    %3693 = vmatpush1.msra.mxu0 0.0
    %3694 = vmatprep.subr.mxu0 0.0
    %3695 = vmatpush1.msra.mxu0 %v45
    %3696 = vmatprep.subr.mxu0 0.0
    %3697 = vmatpush1.msra.mxu0 %v44
    %3698 = vmatprep.subr.mxu0 0.0
    %3699 = vmatpush1.msra.mxu0 %v43
    %3700 = vmatprep.subr.mxu0 0.0
    %3701 = vmatpush1.msra.mxu0 %v42
    %3702 = vmatprep.subr.mxu0 0.0
    %3703 = vmatpush2.msra.mxu0 0.0
    %3704 = vmatprep.subr.mxu0 0.0
    %3705 = vmatpush2.msra.mxu0 0.0
    %3706 = vmatprep.subr.mxu0 0.0
    %3707 = vmatpush2.msra.mxu0 0.0
    %3708 = vmatprep.subr.mxu0 0.0
    %3709 = vmatpush2.msra.mxu0 0.0
    %3710 = vmatprep.subr.mxu0 0.0
    %3711 = vmatpush2.msra.mxu0 0.0
    %3712 = vmatprep.subr.mxu0 0.0
    %3713 = vmatpush2.msra.mxu0 0.0
    %3714 = vmatprep.subr.mxu0 0.0
    %3715 = vmatpush2.msra.mxu0 0.0
    %3716 = vmatprep.subr.mxu0 0.0
    %3717 = vmatpush2.msra.mxu0 0.0
    %3718 = vmatprep.subr.mxu0 0.0
    %3719 = vmatpush2.msra.mxu0 0.0
    %3720 = vmatprep.subr.mxu0 0.0
    %3721 = vmatpush2.msra.mxu0 0.0
    %3722 = vmatprep.subr.mxu0 0.0
    %3723 = vmatpush2.msra.mxu0 0.0
    %3724 = vmatprep.subr.mxu0 0.0
    %3725 = vmatpush2.msra.mxu0 0.0
    %3726 = vmatprep.subr.mxu0 0.0
    %3727 = vmatpush2.msra.mxu0 0.0
    %3728 = vmatprep.subr.mxu0 0.0
    %3729 = vmatpush2.msra.mxu0 0.0
    %3730 = vmatprep.subr.mxu0 0.0
    %3731 = vmatpush2.msra.mxu0 0.0
    %3732 = vmatprep.subr.mxu0 0.0
    %3733 = vmatpush2.msra.mxu0 0.0
    %3734 = vmatprep.mubr.f32.mxu0 0.0
    %3735 = vmatmul.mubr.f32.gmra.mxu0 %v3666
    %v3736 = vpop.f32.mrf.mxu0
    %v3737 = vadd.f32 %v3659, %v3736
    %v3738 = vpop.f32.mrf.mxu0
    %3739 = vmatprep.mubr.f32.mxu0 0.0
    %3740 = vmatmul.mubr.f32.gmra.mxu0 %v3668
    %v3741 = vpop.f32.mrf.mxu0
    %v3742 = vadd.f32 %v3659, %v3741
    %v3743 = vpop.f32.mrf.mxu0
    %3744 = vdwg.mxu0
    %v3745 = vtanh.pop %v3737
    %v3746 = vtanh.pop %v3742
    %v3747 = vlaneseq
    %v3748 = vshrl.u32 %v3747, 7
    %v3749 = vsub.s32 1, %v3748
    %v3750 = vrot.slane %v54, %v3749
    %v3751 = vmul.f32 %v3745, %v3750
    %v3752 = vmul.f32 %v3746, %v3750
    %v3753 = vsel %vm140, %v3751, 0.0
    %3754 = vadd.xlane.f32.xlu0 %v3753
    %v3755 = vpop.xlane.xlu0 %3754
    %v3756 = vsel %vm140, %v3752, 0.0
    %3757 = vadd.xlane.f32.xlu0 %v3756
    %v3758 = vpop.xlane.xlu0 %3757
    %3759 = vrot.lane.b32.xlu0 %v340, 125
    %v3760 = vpop.permute.xlu0 %3759
    %s3761 = vtos %v3760
    %v3762 = vstv %s3761
    %v3764 = vadd.f32 %v3755, %v3762
    %v3765 = vadd.f32 %v3758, %v3762
    %v3768 = vlaneseq
    %v3769 = vshrl.u32 %v3768, 7
    %v3770 = vsub.s32 %v351, %v3769
    %v3771 = vrot.slane %v3764, %v3770
    %v3772 = vlaneseq
    %v3773 = vshrl.u32 %v3772, 7
    %v3774 = vsub.s32 %v351, %v3773
    %v3775 = vrot.slane %v3765, %v3774
    %v3776 = vsel %vm360, %v3775, %v3771
    %vm3778 = vcmask 58368
    %v3779 = vsel %vm3778, %v3776, -inf
    %3780 = vmax.xlane.f32.xlu0 %v3779
    %v3781 = vpop.xlane.xlu0 %3780
    %v3783 = vlaneseq
    %v3784 = vshrl.u32 %v3783, 7
    %v3785 = vsub.s32 0, %v3784
    %v3786 = vrot.slane %v3781, %v3785
    %v3787 = vlaneseq
    %v3788 = vshrl.u32 %v3787, 7
    %v3789 = vsub.s32 1, %v3788
    %v3790 = vrot.slane %v3781, %v3789
    %v3793 = vsub.f32 %v3764, %v3786
    %v3794 = vsub.f32 %v3765, %v3790
    %v3795 = vmul.f32 %v3793, 1.442695
    %v3796 = vpow.pop %v3795
    %v3797 = vmul.f32 %v3794, 1.442695
    %v3798 = vpow.pop %v3797
    %3801 = vset.pattern.permute.xlu0 0
    %3802 = vperm.xlu0 %3801, %v3796
    %v3803 = vpop.permute.xlu0 %3802
    %3804 = vset.pattern.permute.xlu0 0
    %3805 = vperm.xlu0 %3804, %v3798
    %v3806 = vpop.permute.xlu0 %3805
    %v3807 = vlaneseq
    %v3808 = vshrl.u32 %v3807, 7
    %v3809 = vsub.s32 %v351, %v3808
    %v3810 = vrot.slane %v3803, %v3809
    %v3811 = vlaneseq
    %v3812 = vshrl.u32 %v3811, 7
    %v3813 = vsub.s32 %v351, %v3812
    %v3814 = vrot.slane %v3806, %v3813
    %v3815 = vsel %vm360, %v3814, %v3810
    %v3817 = vsel %vm3778, %v3815, 0.0
    %3818 = vadd.xlane.f32.xlu0 %v3817
    %v3819 = vpop.xlane.xlu0 %3818
    %v3821 = vlaneseq
    %v3822 = vshrl.u32 %v3821, 7
    %v3823 = vsub.s32 0, %v3822
    %v3824 = vrot.slane %v3819, %v3823
    %v3825 = vlaneseq
    %v3826 = vshrl.u32 %v3825, 7
    %v3827 = vsub.s32 1, %v3826
    %v3828 = vrot.slane %v3819, %v3827
    %v3831 = vrcp.pop %v3824
    %v3832 = vmul.f32 %v3796, %v3831
    %v3833 = vrcp.pop %v3828
    %v3834 = vmul.f32 %v3798, %v3833
    %3836 = vset.pattern.permute.xlu0 0
    %3837 = vperm.xlu0 %3836, %v3832
    %v3838 = vpop.permute.xlu0 %3837
    %3841 = vset.pattern.permute.xlu0 0
    %3842 = vperm.xlu0 %3841, %v3834
    %v3843 = vpop.permute.xlu0 %3842
    %v3845 = vmul.f32 %v3838, %v3654
    %v3846 = vmul.f32 %v3843, %v3655
    %vm3847 = vcmask 785920
    %v3848 = vsel %vm3847, %v3845, 0.0
    %v3849 = vrot.slane %v3848, 4
    %v3850 = vadd.f32 %v3848, %v3849
    %v3851 = vrot.slane %v3850, 2
    %v3852 = vadd.f32 %v3850, %v3851
    %v3853 = vrot.slane %v3852, 1
    %v3854 = vadd.f32 %v3852, %v3853
    %v3855 = vsel %vm3847, %v3846, 0.0
    %v3856 = vrot.slane %v3855, 4
    %v3857 = vadd.f32 %v3855, %v3856
    %v3858 = vrot.slane %v3857, 2
    %v3859 = vadd.f32 %v3857, %v3858
    %v3860 = vrot.slane %v3859, 1
    %v3861 = vadd.f32 %v3859, %v3860
    %v3862 = vlaneseq
    %v3863 = vshrl.u32 %v3862, 7
    %v3864 = vsub.s32 4, %v3863
    %v3865 = vrot.slane %v54, %v3864
    %3867 = vrot.lane.b32.xlu0 %v3865, 64
    %v3868 = vpop.permute.xlu0 %3867
    %v3870 = vmul.f32 %v3854, %v3868
    %v3871 = vmul.f32 %v3861, %v3868
    %v3874 = vrot.slane %v3871, 7
    %v3875 = vsel %vm360, %v3874, %v3870
    %3876 = vrot.lane.b32.xlu0 %v3875, 64
    %v3877 = vpop.permute.xlu0 %3876
    %vm3879 = vcmask 254976
    %v3880 = vsel %vm3879, %v3877, 0.0
    %3881 = vadd.xlane.f32.xlu0 %v3880
    %v3882 = vpop.xlane.xlu0 %3881
    %v3883 = vlaneseq
    %v3884 = vshrl.u32 %v3883, 7
    %v3885 = vsub.s32 5, %v3884
    %v3886 = vrot.slane %v54, %v3885
    %v3887 = vmul.f32 %v58, %v3886
    %v3888 = vadd.f32 %v3882, %v3887
    %3890 = vrot.lane.b32.xlu0 %v3886, 127
    %v3891 = vpop.permute.xlu0 %3890
    %v3893 = vadd.f32 %v3888, %v3891
    %3895 = vset.pattern.permute.xlu0 0
    %3896 = vperm.xlu0 %3895, %v3893
    %v3897 = vpop.permute.xlu0 %3896
    %v3899 = vlaneseq
    %v3900 = vshrl.u32 %v3899, 7
    %v3901 = vsub.s32 1, %v3900
    %v3902 = vrot.slane %v26, %v3901
    %v3903 = vmul.f32 %v3897, %v3902
    %v3904 = vlaneseq
    %v3905 = vshrl.u32 %v3904, 7
    %v3906 = vsub.s32 2, %v3905
    %v3907 = vrot.slane %v26, %v3906
    %v3908 = vadd.f32 %v3903, %v3907
    %v3909 = vxor.u32 %v3908, 2147483648
    %v3910 = vmul.f32 %v3909, 1.442695
    %v3911 = vpow.pop %v3910
    %v3912 = vadd.f32 %v3911, 1.0
    %v3913 = vrcp.pop %v3912
    %v3914 = vmul.f32 1.0, %v3913
    %v3915 = vtanh.pop %v3908
    %3917 = vrot.lane.b32.xlu0 %v3915, 32
    %v3918 = vpop.permute.xlu0 %3917
    %v3920 = vmul.f32 %v3914, %v3918
    %v3921 = vtanh.pop %v3920
    %3923 = vrot.lane.b32.xlu0 %v3921, 64
    %v3924 = vpop.permute.xlu0 %3923
    %v3926 = vmul.f32 %v3914, %v3924
    %v3929 = vsel %vm360, %v3861, %v3854
    %3930 = vrot.lane.b32.xlu0 %v3929, 64
    %v3931 = vpop.permute.xlu0 %3930
    %v3932 = vsel %vm140, %v3931, 0
    %3934 = vmatprep.subr.mxu0 0.0
    %3935 = vmatpush1.msra.mxu0 0.0
    %3936 = vmatprep.subr.mxu0 0.0
    %3937 = vmatpush1.msra.mxu0 0.0
    %3938 = vmatprep.subr.mxu0 0.0
    %3939 = vmatpush1.msra.mxu0 0.0
    %3940 = vmatprep.subr.mxu0 0.0
    %3941 = vmatpush1.msra.mxu0 0.0
    %3942 = vmatprep.subr.mxu0 0.0
    %3943 = vmatpush1.msra.mxu0 0.0
    %3944 = vmatprep.subr.mxu0 0.0
    %3945 = vmatpush1.msra.mxu0 0.0
    %3946 = vmatprep.subr.mxu0 0.0
    %3947 = vmatpush1.msra.mxu0 0.0
    %3948 = vmatprep.subr.mxu0 0.0
    %3949 = vmatpush1.msra.mxu0 0.0
    %3950 = vmatprep.subr.mxu0 0.0
    %3951 = vmatpush1.msra.mxu0 0.0
    %3952 = vmatprep.subr.mxu0 0.0
    %3953 = vmatpush1.msra.mxu0 0.0
    %3954 = vmatprep.subr.mxu0 0.0
    %3955 = vmatpush1.msra.mxu0 0.0
    %3956 = vmatprep.subr.mxu0 0.0
    %3957 = vmatpush1.msra.mxu0 0.0
    %3958 = vmatprep.subr.mxu0 0.0
    %3959 = vmatpush1.msra.mxu0 %v53
    %3960 = vmatprep.subr.mxu0 0.0
    %3961 = vmatpush1.msra.mxu0 %v52
    %3962 = vmatprep.subr.mxu0 0.0
    %3963 = vmatpush1.msra.mxu0 %v51
    %3964 = vmatprep.subr.mxu0 0.0
    %3965 = vmatpush1.msra.mxu0 %v50
    %3966 = vmatprep.subr.mxu0 0.0
    %3967 = vmatpush2.msra.mxu0 0.0
    %3968 = vmatprep.subr.mxu0 0.0
    %3969 = vmatpush2.msra.mxu0 0.0
    %3970 = vmatprep.subr.mxu0 0.0
    %3971 = vmatpush2.msra.mxu0 0.0
    %3972 = vmatprep.subr.mxu0 0.0
    %3973 = vmatpush2.msra.mxu0 0.0
    %3974 = vmatprep.subr.mxu0 0.0
    %3975 = vmatpush2.msra.mxu0 0.0
    %3976 = vmatprep.subr.mxu0 0.0
    %3977 = vmatpush2.msra.mxu0 0.0
    %3978 = vmatprep.subr.mxu0 0.0
    %3979 = vmatpush2.msra.mxu0 0.0
    %3980 = vmatprep.subr.mxu0 0.0
    %3981 = vmatpush2.msra.mxu0 0.0
    %3982 = vmatprep.subr.mxu0 0.0
    %3983 = vmatpush2.msra.mxu0 0.0
    %3984 = vmatprep.subr.mxu0 0.0
    %3985 = vmatpush2.msra.mxu0 0.0
    %3986 = vmatprep.subr.mxu0 0.0
    %3987 = vmatpush2.msra.mxu0 0.0
    %3988 = vmatprep.subr.mxu0 0.0
    %3989 = vmatpush2.msra.mxu0 0.0
    %3990 = vmatprep.subr.mxu0 0.0
    %3991 = vmatpush2.msra.mxu0 0.0
    %3992 = vmatprep.subr.mxu0 0.0
    %3993 = vmatpush2.msra.mxu0 0.0
    %3994 = vmatprep.subr.mxu0 0.0
    %3995 = vmatpush2.msra.mxu0 0.0
    %3996 = vmatprep.subr.mxu0 0.0
    %3997 = vmatpush2.msra.mxu0 0.0
    %3998 = vmatprep.mubr.f32.mxu0 0.0
    %3999 = vmatmul.mubr.f32.gmra.mxu0 %v3932
    %v4000 = vpop.f32.mrf.mxu0
    %v4001 = vadd.f32 0.0, %v4000
    %v4002 = vpop.f32.mrf.mxu0
    %4003 = vdwg.mxu0
    %4005 = vrot.lane.b32.xlu0 %v3926, 64
    %v4006 = vpop.permute.xlu0 %4005
    %v4007 = vsel %vm140, %v4006, 0
    %4009 = vmatprep.subr.mxu0 0.0
    %4010 = vmatpush1.msra.mxu0 0.0
    %4011 = vmatprep.subr.mxu0 0.0
    %4012 = vmatpush1.msra.mxu0 0.0
    %4013 = vmatprep.subr.mxu0 0.0
    %4014 = vmatpush1.msra.mxu0 0.0
    %4015 = vmatprep.subr.mxu0 0.0
    %4016 = vmatpush1.msra.mxu0 0.0
    %4017 = vmatprep.subr.mxu0 0.0
    %4018 = vmatpush1.msra.mxu0 0.0
    %4019 = vmatprep.subr.mxu0 0.0
    %4020 = vmatpush1.msra.mxu0 0.0
    %4021 = vmatprep.subr.mxu0 0.0
    %4022 = vmatpush1.msra.mxu0 0.0
    %4023 = vmatprep.subr.mxu0 0.0
    %4024 = vmatpush1.msra.mxu0 0.0
    %4025 = vmatprep.subr.mxu0 0.0
    %4026 = vmatpush1.msra.mxu0 0.0
    %4027 = vmatprep.subr.mxu0 0.0
    %4028 = vmatpush1.msra.mxu0 0.0
    %4029 = vmatprep.subr.mxu0 0.0
    %4030 = vmatpush1.msra.mxu0 0.0
    %4031 = vmatprep.subr.mxu0 0.0
    %4032 = vmatpush1.msra.mxu0 0.0
    %4033 = vmatprep.subr.mxu0 0.0
    %4034 = vmatpush1.msra.mxu0 %v49
    %4035 = vmatprep.subr.mxu0 0.0
    %4036 = vmatpush1.msra.mxu0 %v48
    %4037 = vmatprep.subr.mxu0 0.0
    %4038 = vmatpush1.msra.mxu0 %v47
    %4039 = vmatprep.subr.mxu0 0.0
    %4040 = vmatpush1.msra.mxu0 %v46
    %4041 = vmatprep.subr.mxu0 0.0
    %4042 = vmatpush2.msra.mxu0 0.0
    %4043 = vmatprep.subr.mxu0 0.0
    %4044 = vmatpush2.msra.mxu0 0.0
    %4045 = vmatprep.subr.mxu0 0.0
    %4046 = vmatpush2.msra.mxu0 0.0
    %4047 = vmatprep.subr.mxu0 0.0
    %4048 = vmatpush2.msra.mxu0 0.0
    %4049 = vmatprep.subr.mxu0 0.0
    %4050 = vmatpush2.msra.mxu0 0.0
    %4051 = vmatprep.subr.mxu0 0.0
    %4052 = vmatpush2.msra.mxu0 0.0
    %4053 = vmatprep.subr.mxu0 0.0
    %4054 = vmatpush2.msra.mxu0 0.0
    %4055 = vmatprep.subr.mxu0 0.0
    %4056 = vmatpush2.msra.mxu0 0.0
    %4057 = vmatprep.subr.mxu0 0.0
    %4058 = vmatpush2.msra.mxu0 0.0
    %4059 = vmatprep.subr.mxu0 0.0
    %4060 = vmatpush2.msra.mxu0 0.0
    %4061 = vmatprep.subr.mxu0 0.0
    %4062 = vmatpush2.msra.mxu0 0.0
    %4063 = vmatprep.subr.mxu0 0.0
    %4064 = vmatpush2.msra.mxu0 0.0
    %4065 = vmatprep.subr.mxu0 0.0
    %4066 = vmatpush2.msra.mxu0 0.0
    %4067 = vmatprep.subr.mxu0 0.0
    %4068 = vmatpush2.msra.mxu0 0.0
    %4069 = vmatprep.subr.mxu0 0.0
    %4070 = vmatpush2.msra.mxu0 0.0
    %4071 = vmatprep.subr.mxu0 0.0
    %4072 = vmatpush2.msra.mxu0 0.0
    %4073 = vmatprep.mubr.f32.mxu0 0.0
    %4074 = vmatmul.mubr.f32.gmra.mxu0 %v4007
    %v4075 = vpop.f32.mrf.mxu0
    %v4076 = vadd.f32 %v4001, %v4075
    %v4077 = vpop.f32.mrf.mxu0
    %4078 = vdwg.mxu0
    %v4079 = vlaneseq
    %v4080 = vshrl.u32 %v4079, 7
    %v4081 = vsub.s32 2, %v4080
    %v4082 = vrot.slane %v54, %v4081
    %v4083 = vadd.f32 %v4076, %v4082
    %v4084 = vlaneseq
    %v4085 = vshrl.u32 %v4084, 7
    %v4086 = vsub.s32 3, %v4085
    %v4087 = vrot.slane %v54, %v4086
    %v4088 = vmul.f32 %v4083, %v4087
    %v4089 = vsel %vm3879, %v4088, 0.0
    %4090 = vadd.xlane.f32.xlu0 %v4089
    %v4091 = vpop.xlane.xlu0 %4090
    %v4092 = vadd.f32 %v4091, %v3886
    %4094 = vrot.lane.b32.xlu0 %v4092, 124
    %v4095 = vpop.permute.xlu0 %4094
    %vm4097 = vcmask 1024
    %4098 = vst.msk [vmem:[%s6] sm:$0x3] %vm4097, %v4095
    %4101 = vset.pattern.permute.xlu0 0
    %4102 = vperm.xlu0 %4101, %v3247
    %v4103 = vpop.permute.xlu0 %4102
    %4104 = vset.pattern.permute.xlu0 0
    %4105 = vperm.xlu0 %4104, %v3249
    %v4106 = vpop.permute.xlu0 %4105
    %v4107 = vlaneseq
    %v4108 = vshrl.u32 %v4107, 7
    %v4109 = vsub.s32 %v351, %v4108
    %v4110 = vrot.slane %v4103, %v4109
    %v4111 = vlaneseq
    %v4112 = vshrl.u32 %v4111, 7
    %v4113 = vsub.s32 %v351, %v4112
    %v4114 = vrot.slane %v4106, %v4113
    %v4115 = vsel %vm360, %v4114, %v4110
    %4117 = vst.msk [vmem:[#allocation2] sm:$0x3] %vm363, %v4115
    // Predicated region
    $region26: #{tpu_custom_call.1} parent=1 // pred_check
      _
    $region27: #{tpu_custom_call.1} parent=1 // pred_check_branch
      %4119 = sbr.rel (0) target = $region29
    $region28: #{tpu_custom_call.1} parent=1 // pred_region
      _
    $region29: #{tpu_custom_call.1} parent=1 // pred_fallthru
      _
    // Predicated region
    $region30: #{tpu_custom_call.1} parent=1 // pred_check
      _
    $region31: #{tpu_custom_call.1} parent=1 // pred_check_branch
      %4121 = sbr.rel (0) target = $region33
    $region32: #{tpu_custom_call.1} parent=1 // pred_region
      %s4123 = ssub.s32 32, 32
      %4124 = vsyncadd [#allocation3], %s4123
      %s4126 = sshll.u32 [#allocation2], 4
      %s4127 = int_to_ptr.vmem [resolvable:$true] %s4126
      %4129 = dma.vmem_to_hbm [thread:$0]  %s4127, 32, %s7, [#allocation3]
    $region33: #{tpu_custom_call.1} parent=1 // pred_fallthru
      _
    // Predicated region
    $region34: #{tpu_custom_call.1} parent=1 // pred_check
      _
    $region35: #{tpu_custom_call.1} parent=1 // pred_check_branch
      %4131 = sbr.rel (0) target = $region37
    $region36: #{tpu_custom_call.1} parent=1 // pred_region
      _
    $region37: #{tpu_custom_call.1} parent=1 // pred_fallthru
      _
    // Predicated region
    $region38: #{tpu_custom_call.1} parent=1 // pred_check
      _
    $region39: #{tpu_custom_call.1} parent=1 // pred_check_branch
      %4133 = sbr.rel (0) target = $region41
    $region40: #{tpu_custom_call.1} parent=1 // pred_region
      %4134 = dma.done [#allocation3], 32
    $region41: #{tpu_custom_call.1} parent=1 // pred_fallthru
      _
    %4135 = vsyncpa [#allocation3], 1

</llo_original>
